<compile_context>
chip_gen: v7x
topology: tpu7x:2x2x1
jax: 0.10.0
libtpu: 0.0.40
codegen_flags: <defaults>
</compile_context>

<pallas_src>
import jax
import jax.numpy as jnp
from jax import lax
from jax.experimental import pallas as pl
from jax.experimental.pallas import tpu as pltpu


def decoder_kernel(x_ref, wih1_ref, whh1_ref, b1_ref,
                   w2_hbm, b2_ref,
                   wout_ref, bout_ref,
                   out_ref,
                   w2_vmem, h2seq, w2_sem):
    Dp = whh1_ref.shape[0]      # lane-padded hidden of rnn1
    Hp = h2seq.shape[1]         # lane-padded hidden of rnn2
    S = out_ref.shape[0]        # seq_len

    # Kick off the largest weight transfer immediately; it is hidden behind
    # xproj + layer-1 step 0 and waited on just before the first layer-2 dot.
    w2_copy = pltpu.make_async_copy(w2_hbm, w2_vmem, w2_sem)
    w2_copy.start()

    # Hoisted: the layer-1 input projection is identical at every timestep
    # (the decoder input is the same code vector). i/f/o columns of wih1/b1
    # are pre-scaled by 0.5 host-side (sigmoid fold).
    xproj = (jnp.dot(x_ref[...].astype(jnp.bfloat16), wih1_ref[...],
                     preferred_element_type=jnp.float32)
             + b1_ref[...])                                    # (1, 4*Dp) f32
    b2 = b2_ref[...]                                           # (1, 4*Hp) f32

    # Recurrent state lives in values (vregs), not VMEM scratch.
    h1 = jnp.zeros((1, Dp), jnp.float32)
    c1 = jnp.zeros((1, Dp), jnp.float32)
    h2 = jnp.zeros((1, Hp), jnp.float32)
    c2 = jnp.zeros((1, Hp), jnp.float32)

    def gates(g, G):
        # i/f/o pre-activations already carry the 0.5 scale (folded into the
        # weights), so a single tanh over the full 4*G vector covers all gates:
        #   sigmoid(z) = 0.5 * tanh(0.5 z) + 0.5     (i, f, o)
        #   tanh(z)                                   (g)
        th = jnp.tanh(g)                       # one EUP sweep over 4 vregs
        i = 0.5 * th[:, 0 * G:1 * G] + 0.5
        f = 0.5 * th[:, 1 * G:2 * G] + 0.5
        gg = th[:, 2 * G:3 * G]
        o = 0.5 * th[:, 3 * G:4 * G] + 0.5
        return i, f, gg, o

    # Static unroll over the (small, fixed) sequence length.
    for t in range(S):
        # ---- LSTM layer 1: single recurrent matmul per step ----
        g1 = xproj + jnp.dot(h1.astype(jnp.bfloat16), whh1_ref[...],
                             preferred_element_type=jnp.float32)   # (1, 4*Dp)
        i1, f1, gg1, o1 = gates(g1, Dp)
        c1 = f1 * c1 + i1 * gg1
        h1 = o1 * jnp.tanh(c1)

        if t == 0:
            w2_copy.wait()   # w2 is first needed here

        # ---- LSTM layer 2: fused [Wih2; Whh2] -> single matmul per step ----
        xh = jnp.concatenate([h1, h2], axis=-1).astype(jnp.bfloat16)  # (1, Dp+Hp)
        g2 = (jnp.dot(xh, w2_vmem[...],
                      preferred_element_type=jnp.float32)
              + b2)                                                   # (1, 4*Hp)
        i2, f2, gg2, o2 = gates(g2, Hp)
        c2 = f2 * c2 + i2 * gg2
        h2 = o2 * jnp.tanh(c2)

        # Static-index store; not read until after the loop.
        h2seq[pl.ds(t, 1), :] = h2

    # output_layer: lane-dense (seq_len, 128) store; real column is [:, :1].
    out_ref[...] = (jnp.dot(h2seq[...].astype(jnp.bfloat16), wout_ref[...],
                            preferred_element_type=jnp.float32)
                    + bout_ref[...])


# ---------------- host-side one-time weight relayout ----------------

def _scale_ifo(w, g):
    """Multiply the i, f, o gate blocks (0,1,3) along the last axis by 0.5."""
    blocks = [w[..., k * g:(k + 1) * g] * (0.5 if k != 2 else 1.0)
              for k in range(4)]
    return jnp.concatenate(blocks, axis=-1)


def _gate_pad(w, g_in, g_out):
    """Pad each of the 4 gate blocks along the last axis from g_in to g_out."""
    if g_out == g_in:
        return w
    pad_width = [(0, 0)] * (w.ndim - 1) + [(0, g_out - g_in)]
    blocks = [jnp.pad(w[..., k * g_in:(k + 1) * g_in], pad_width)
              for k in range(4)]
    return jnp.concatenate(blocks, axis=-1)


def _row_pad(w, rows_out):
    rows_in = w.shape[0]
    if rows_out == rows_in:
        return w
    return jnp.pad(w, ((0, rows_out - rows_in), (0, 0)))


def decoder_forward(x, params, seq_len, input_dim, n_features=1):
    D = input_dim
    H = 2 * D
    Dp = -(-D // 128) * 128          # lane-aligned gate width for rnn1
    Hp = -(-H // 128) * 128          # lane-aligned gate width for rnn2
    OUTP = 128                       # lane-dense output width

    # The code vector itself; no tiling across seq_len needed.
    x = x.reshape(1, D).astype(jnp.float32)

    # Gate-pad to 128-lane boundaries, fold the sigmoid 0.5 pre-scale into the
    # i/f/o columns, zero-pad rows for the padded state, fuse layer-2 weights,
    # and store weight matrices in bf16 (MXU-native at default precision).
    wih1 = _gate_pad(_scale_ifo(params["wih1"], D), D, Dp).astype(jnp.bfloat16)
    whh1 = _row_pad(_gate_pad(_scale_ifo(params["whh1"], D), D, Dp),
                    Dp).astype(jnp.bfloat16)                      # (Dp, 4*Dp)
    b1 = _gate_pad(_scale_ifo(params["b1"], D), D, Dp)            # (1, 4*Dp) f32

    wih2_p = _row_pad(_gate_pad(_scale_ifo(params["wih2"], H), H, Hp), Dp)
    whh2_p = _row_pad(_gate_pad(_scale_ifo(params["whh2"], H), H, Hp), Hp)
    w2 = jnp.concatenate([wih2_p, whh2_p], axis=0).astype(jnp.bfloat16)  # (Dp+Hp, 4*Hp)
    b2 = _gate_pad(_scale_ifo(params["b2"], H), H, Hp)            # (1, 4*Hp) f32

    wout = jnp.pad(_row_pad(params["wout"], Hp),
                   ((0, 0), (0, OUTP - n_features))).astype(jnp.bfloat16)  # (Hp, 128)
    bout = jnp.pad(params["bout"], ((0, 0), (0, OUTP - n_features)))       # (1, 128) f32

    vmem = pl.BlockSpec(memory_space=pltpu.MemorySpace.VMEM)
    hbm = pl.BlockSpec(memory_space=pl.ANY)   # w2: copied manually in-kernel

    out = pl.pallas_call(
        decoder_kernel,
        out_shape=jax.ShapeDtypeStruct((seq_len, OUTP), jnp.float32),
        in_specs=[vmem, vmem, vmem, vmem, hbm, vmem, vmem, vmem],
        out_specs=vmem,
        scratch_shapes=[
            pltpu.VMEM((Dp + Hp, 4 * Hp), jnp.bfloat16),   # w2 staging buffer
            pltpu.VMEM((seq_len, Hp), jnp.float32),        # layer-2 hidden sequence
            pltpu.SemaphoreType.DMA,                       # w2 copy done
        ],
    )(x, wih1, whh1, b1, w2, b2, wout, bout)
    return out[:, :n_features]


def init_params(key, input_dim, n_features):
    # Deterministic synthetic init, same scale rule as PyTorch
    # (U[-1/sqrt(h), 1/sqrt(h)]). Canonical (unpadded, pre-transposed) layout.
    D = input_dim
    H = 2 * D
    ks = jax.random.split(key, 8)
    s1 = 1.0 / float(D) ** 0.5
    s2 = 1.0 / float(H) ** 0.5

    def u(k, shape, s):
        return jax.random.uniform(k, shape, jnp.float32, -s, s)

    return dict(
        wih1=u(ks[0], (D, 4 * D), s1),   # W_ih1^T
        whh1=u(ks[1], (D, 4 * D), s1),   # W_hh1^T
        b1=u(ks[2], (1, 4 * D), s1),     # bias_ih1 + bias_hh1 (combined)
        wih2=u(ks[3], (D, 4 * H), s2),   # W_ih2^T
        whh2=u(ks[4], (H, 4 * H), s2),   # W_hh2^T
        b2=u(ks[5], (1, 4 * H), s2),     # bias_ih2 + bias_hh2 (combined)
        wout=u(ks[6], (H, n_features), s2),
        bout=u(ks[7], (1, n_features), s2),
    )


# ---- pure-JAX reference (for correctness check only) ----
def _lstm_ref(x_seq, w_ih, w_hh, b, hidden):
    def step(carry, x_t):
        h, c = carry
        g = x_t @ w_ih + h @ w_hh + b[0]
        i, f, gg, o = jnp.split(g, 4)
        i = jax.nn.sigmoid(i)
        f = jax.nn.sigmoid(f)
        gg = jnp.tanh(gg)
        o = jax.nn.sigmoid(o)
        c = f * c + i * gg
        h = o * jnp.tanh(c)
        return (h, c), h

    init = (jnp.zeros((hidden,), jnp.float32), jnp.zeros((hidden,), jnp.float32))
    _, hs = lax.scan(step, init, x_seq)
    return hs


def decoder_ref(x, params, seq_len, input_dim, n_features):
    D = input_dim
    x_rep = jnp.tile(x.reshape(1, D), (seq_len, 1))
    h1 = _lstm_ref(x_rep, params["wih1"], params["whh1"], params["b1"], D)
    h2 = _lstm_ref(h1, params["wih2"], params["whh2"], params["b2"], 2 * D)
    return h2 @ params["wout"] + params["bout"]


if __name__ == "__main__":
    seq_len = 8        # small seq, consistent with Decoder(seq_len, ...)
    input_dim = 64     # module default embedding dim
    n_features = 1

    key = jax.random.PRNGKey(0)
    kx, kp = jax.random.split(key)
    # Encoder code vector (batch == n_features == 1): shape (1, input_dim).
    x = jax.random.normal(kx, (1, input_dim), jnp.float32)
    params = init_params(kp, input_dim, n_features)

    out = decoder_forward(x, params, seq_len, input_dim, n_features)
    out = jax.block_until_ready(out)
    assert out.shape == (seq_len, n_features)

    ref = decoder_ref(x, params, seq_len, input_dim, n_features)
    # Weights are intentionally stored in bf16 (MXU-native), so compare at
    # bf16-grade matmul tolerance.
    if not jnp.allclose(out, ref, atol=5e-3, rtol=5e-3):
        raise AssertionError("Pallas kernel mismatch vs JAX reference")

    print("KERNEL_OK")
</pallas_src>

<mosaic_0001>
module attributes {stable_mosaic.version = 11 : i64} {
  func.func @decoder_kernel(%arg0: memref<1x64xf32, #tpu.memory_space<vmem>>, %arg1: memref<64x512xbf16, #tpu.memory_space<vmem>>, %arg2: memref<128x512xbf16, #tpu.memory_space<vmem>>, %arg3: memref<1x512xf32, #tpu.memory_space<vmem>>, %arg4: memref<256x512xbf16, #tpu.memory_space<any>>, %arg5: memref<1x512xf32, #tpu.memory_space<vmem>>, %arg6: memref<128x128xbf16, #tpu.memory_space<vmem>>, %arg7: memref<1x128xf32, #tpu.memory_space<vmem>>, %arg8: memref<8x128xf32, #tpu.memory_space<vmem>>, %arg9: memref<256x512xbf16, #tpu.memory_space<vmem>>, %arg10: memref<8x128xf32, #tpu.memory_space<vmem>>, %arg11: memref<!tpu.dma_semaphore, #tpu.memory_space<semaphore_mem>>) attributes {dimension_semantics = [], scalar_prefetch = 0 : i64, scratch_operands = 3 : i64, tpu.core_type = #tpu.core_type<tc>} {
    tpu.enqueue_dma source(%arg4 : memref<256x512xbf16, #tpu.memory_space<any>>) target(%arg9 : memref<256x512xbf16, #tpu.memory_space<vmem>>) target_semaphore(%arg11 : memref<!tpu.dma_semaphore, #tpu.memory_space<semaphore_mem>>)
    %c0 = arith.constant 0 : index
    %c0_0 = arith.constant 0 : index
    %0 = vector.load %arg0[%c0, %c0_0] : memref<1x64xf32, #tpu.memory_space<vmem>>, vector<1x64xf32>
    %1 = arith.truncf %0 : vector<1x64xf32> to vector<1x64xbf16>
    %c0_1 = arith.constant 0 : index
    %c0_2 = arith.constant 0 : index
    %2 = vector.load %arg1[%c0_1, %c0_2] : memref<64x512xbf16, #tpu.memory_space<vmem>>, vector<64x512xbf16>
    %cst = arith.constant dense<0.000000e+00> : vector<1x512xf32>
    %3 = tpu.matmul %1, %2, %cst {dimension_numbers = #tpu.dot_dimension_numbers<[1], [0], [0], [1], [0, 0, 1, 1], [], []>} : vector<1x64xbf16>, vector<64x512xbf16>, vector<1x512xf32> -> vector<1x512xf32>
    %c0_3 = arith.constant 0 : index
    %c0_4 = arith.constant 0 : index
    %4 = vector.load %arg3[%c0_3, %c0_4] : memref<1x512xf32, #tpu.memory_space<vmem>>, vector<1x512xf32>
    %5 = arith.addf %3, %4 : vector<1x512xf32>
    %c0_5 = arith.constant 0 : index
    %c0_6 = arith.constant 0 : index
    %6 = vector.load %arg5[%c0_5, %c0_6] : memref<1x512xf32, #tpu.memory_space<vmem>>, vector<1x512xf32>
    %cst_7 = arith.constant 0.000000e+00 : f32
    %7 = vector.broadcast %cst_7 : f32 to vector<1x128xf32>
    %cst_8 = arith.constant 0.000000e+00 : f32
    %8 = vector.broadcast %cst_8 : f32 to vector<1x128xf32>
    %cst_9 = arith.constant 0.000000e+00 : f32
    %9 = vector.broadcast %cst_9 : f32 to vector<1x128xf32>
    %cst_10 = arith.constant 0.000000e+00 : f32
    %10 = vector.broadcast %cst_10 : f32 to vector<1x128xf32>
    %11 = arith.truncf %7 : vector<1x128xf32> to vector<1x128xbf16>
    %c0_11 = arith.constant 0 : index
    %c0_12 = arith.constant 0 : index
    %12 = vector.load %arg2[%c0_11, %c0_12] : memref<128x512xbf16, #tpu.memory_space<vmem>>, vector<128x512xbf16>
    %cst_13 = arith.constant dense<0.000000e+00> : vector<1x512xf32>
    %13 = tpu.matmul %11, %12, %cst_13 {dimension_numbers = #tpu.dot_dimension_numbers<[1], [0], [0], [1], [0, 0, 1, 1], [], []>} : vector<1x128xbf16>, vector<128x512xbf16>, vector<1x512xf32> -> vector<1x512xf32>
    %14 = arith.addf %5, %13 : vector<1x512xf32>
    %15 = math.tanh %14 : vector<1x512xf32>
    %16 = vector.extract_strided_slice %15 {offsets = [0, 0], sizes = [1, 128], strides = [1, 1]} : vector<1x512xf32> to vector<1x128xf32>
    %cst_14 = arith.constant 5.000000e-01 : f32
    %17 = vector.broadcast %cst_14 : f32 to vector<1x128xf32>
    %18 = arith.mulf %17, %16 : vector<1x128xf32>
    %cst_15 = arith.constant 5.000000e-01 : f32
    %19 = vector.broadcast %cst_15 : f32 to vector<1x128xf32>
    %20 = arith.addf %18, %19 : vector<1x128xf32>
    %21 = vector.extract_strided_slice %15 {offsets = [0, 128], sizes = [1, 128], strides = [1, 1]} : vector<1x512xf32> to vector<1x128xf32>
    %cst_16 = arith.constant 5.000000e-01 : f32
    %22 = vector.broadcast %cst_16 : f32 to vector<1x128xf32>
    %23 = arith.mulf %22, %21 : vector<1x128xf32>
    %cst_17 = arith.constant 5.000000e-01 : f32
    %24 = vector.broadcast %cst_17 : f32 to vector<1x128xf32>
    %25 = arith.addf %23, %24 : vector<1x128xf32>
    %26 = vector.extract_strided_slice %15 {offsets = [0, 256], sizes = [1, 128], strides = [1, 1]} : vector<1x512xf32> to vector<1x128xf32>
    %27 = vector.extract_strided_slice %15 {offsets = [0, 384], sizes = [1, 128], strides = [1, 1]} : vector<1x512xf32> to vector<1x128xf32>
    %cst_18 = arith.constant 5.000000e-01 : f32
    %28 = vector.broadcast %cst_18 : f32 to vector<1x128xf32>
    %29 = arith.mulf %28, %27 : vector<1x128xf32>
    %cst_19 = arith.constant 5.000000e-01 : f32
    %30 = vector.broadcast %cst_19 : f32 to vector<1x128xf32>
    %31 = arith.addf %29, %30 : vector<1x128xf32>
    %32 = arith.mulf %25, %8 : vector<1x128xf32>
    %33 = arith.mulf %20, %26 : vector<1x128xf32>
    %34 = arith.addf %32, %33 : vector<1x128xf32>
    %35 = math.tanh %34 : vector<1x128xf32>
    %36 = arith.mulf %31, %35 : vector<1x128xf32>
    tpu.wait_dma2 semaphore(%arg11 : memref<!tpu.dma_semaphore, #tpu.memory_space<semaphore_mem>>) src(%arg4 : memref<256x512xbf16, #tpu.memory_space<any>>) dst(%arg9 : memref<256x512xbf16, #tpu.memory_space<vmem>>)
    %37 = tpu.concatenate %36, %9 in 1 : vector<1x128xf32>, vector<1x128xf32> -> vector<1x256xf32>
    %38 = arith.truncf %37 : vector<1x256xf32> to vector<1x256xbf16>
    %c0_20 = arith.constant 0 : index
    %c0_21 = arith.constant 0 : index
    %39 = vector.load %arg9[%c0_20, %c0_21] : memref<256x512xbf16, #tpu.memory_space<vmem>>, vector<256x512xbf16>
    %cst_22 = arith.constant dense<0.000000e+00> : vector<1x512xf32>
    %40 = tpu.matmul %38, %39, %cst_22 {dimension_numbers = #tpu.dot_dimension_numbers<[1], [0], [0], [1], [0, 0, 1, 1], [], []>} : vector<1x256xbf16>, vector<256x512xbf16>, vector<1x512xf32> -> vector<1x512xf32>
    %41 = arith.addf %40, %6 : vector<1x512xf32>
    %42 = math.tanh %41 : vector<1x512xf32>
    %43 = vector.extract_strided_slice %42 {offsets = [0, 0], sizes = [1, 128], strides = [1, 1]} : vector<1x512xf32> to vector<1x128xf32>
    %cst_23 = arith.constant 5.000000e-01 : f32
    %44 = vector.broadcast %cst_23 : f32 to vector<1x128xf32>
    %45 = arith.mulf %44, %43 : vector<1x128xf32>
    %cst_24 = arith.constant 5.000000e-01 : f32
    %46 = vector.broadcast %cst_24 : f32 to vector<1x128xf32>
    %47 = arith.addf %45, %46 : vector<1x128xf32>
    %48 = vector.extract_strided_slice %42 {offsets = [0, 128], sizes = [1, 128], strides = [1, 1]} : vector<1x512xf32> to vector<1x128xf32>
    %cst_25 = arith.constant 5.000000e-01 : f32
    %49 = vector.broadcast %cst_25 : f32 to vector<1x128xf32>
    %50 = arith.mulf %49, %48 : vector<1x128xf32>
    %cst_26 = arith.constant 5.000000e-01 : f32
    %51 = vector.broadcast %cst_26 : f32 to vector<1x128xf32>
    %52 = arith.addf %50, %51 : vector<1x128xf32>
    %53 = vector.extract_strided_slice %42 {offsets = [0, 256], sizes = [1, 128], strides = [1, 1]} : vector<1x512xf32> to vector<1x128xf32>
    %54 = vector.extract_strided_slice %42 {offsets = [0, 384], sizes = [1, 128], strides = [1, 1]} : vector<1x512xf32> to vector<1x128xf32>
    %cst_27 = arith.constant 5.000000e-01 : f32
    %55 = vector.broadcast %cst_27 : f32 to vector<1x128xf32>
    %56 = arith.mulf %55, %54 : vector<1x128xf32>
    %cst_28 = arith.constant 5.000000e-01 : f32
    %57 = vector.broadcast %cst_28 : f32 to vector<1x128xf32>
    %58 = arith.addf %56, %57 : vector<1x128xf32>
    %59 = arith.mulf %52, %10 : vector<1x128xf32>
    %60 = arith.mulf %47, %53 : vector<1x128xf32>
    %61 = arith.addf %59, %60 : vector<1x128xf32>
    %62 = math.tanh %61 : vector<1x128xf32>
    %63 = arith.mulf %58, %62 : vector<1x128xf32>
    %c0_29 = arith.constant 0 : index
    %c0_30 = arith.constant 0 : index
    %64 = vector.load %arg10[%c0_29, %c0_30] : memref<8x128xf32, #tpu.memory_space<vmem>>, vector<1x128xf32>
    tpu.vector_store %arg10[%c0_29, %c0_30], %63 {strides = array<i32>} : memref<8x128xf32, #tpu.memory_space<vmem>>, vector<1x128xf32>,
    %65 = arith.truncf %36 : vector<1x128xf32> to vector<1x128xbf16>
    %c0_31 = arith.constant 0 : index
    %c0_32 = arith.constant 0 : index
    %66 = vector.load %arg2[%c0_31, %c0_32] : memref<128x512xbf16, #tpu.memory_space<vmem>>, vector<128x512xbf16>
    %cst_33 = arith.constant dense<0.000000e+00> : vector<1x512xf32>
    %67 = tpu.matmul %65, %66, %cst_33 {dimension_numbers = #tpu.dot_dimension_numbers<[1], [0], [0], [1], [0, 0, 1, 1], [], []>} : vector<1x128xbf16>, vector<128x512xbf16>, vector<1x512xf32> -> vector<1x512xf32>
    %68 = arith.addf %5, %67 : vector<1x512xf32>
    %69 = math.tanh %68 : vector<1x512xf32>
    %70 = vector.extract_strided_slice %69 {offsets = [0, 0], sizes = [1, 128], strides = [1, 1]} : vector<1x512xf32> to vector<1x128xf32>
    %cst_34 = arith.constant 5.000000e-01 : f32
    %71 = vector.broadcast %cst_34 : f32 to vector<1x128xf32>
    %72 = arith.mulf %71, %70 : vector<1x128xf32>
    %cst_35 = arith.constant 5.000000e-01 : f32
    %73 = vector.broadcast %cst_35 : f32 to vector<1x128xf32>
    %74 = arith.addf %72, %73 : vector<1x128xf32>
    %75 = vector.extract_strided_slice %69 {offsets = [0, 128], sizes = [1, 128], strides = [1, 1]} : vector<1x512xf32> to vector<1x128xf32>
    %cst_36 = arith.constant 5.000000e-01 : f32
    %76 = vector.broadcast %cst_36 : f32 to vector<1x128xf32>
    %77 = arith.mulf %76, %75 : vector<1x128xf32>
    %cst_37 = arith.constant 5.000000e-01 : f32
    %78 = vector.broadcast %cst_37 : f32 to vector<1x128xf32>
    %79 = arith.addf %77, %78 : vector<1x128xf32>
    %80 = vector.extract_strided_slice %69 {offsets = [0, 256], sizes = [1, 128], strides = [1, 1]} : vector<1x512xf32> to vector<1x128xf32>
    %81 = vector.extract_strided_slice %69 {offsets = [0, 384], sizes = [1, 128], strides = [1, 1]} : vector<1x512xf32> to vector<1x128xf32>
    %cst_38 = arith.constant 5.000000e-01 : f32
    %82 = vector.broadcast %cst_38 : f32 to vector<1x128xf32>
    %83 = arith.mulf %82, %81 : vector<1x128xf32>
    %cst_39 = arith.constant 5.000000e-01 : f32
    %84 = vector.broadcast %cst_39 : f32 to vector<1x128xf32>
    %85 = arith.addf %83, %84 : vector<1x128xf32>
    %86 = arith.mulf %79, %34 : vector<1x128xf32>
    %87 = arith.mulf %74, %80 : vector<1x128xf32>
    %88 = arith.addf %86, %87 : vector<1x128xf32>
    %89 = math.tanh %88 : vector<1x128xf32>
    %90 = arith.mulf %85, %89 : vector<1x128xf32>
    %91 = tpu.concatenate %90, %63 in 1 : vector<1x128xf32>, vector<1x128xf32> -> vector<1x256xf32>
    %92 = arith.truncf %91 : vector<1x256xf32> to vector<1x256xbf16>
    %c0_40 = arith.constant 0 : index
    %c0_41 = arith.constant 0 : index
    %93 = vector.load %arg9[%c0_40, %c0_41] : memref<256x512xbf16, #tpu.memory_space<vmem>>, vector<256x512xbf16>
    %cst_42 = arith.constant dense<0.000000e+00> : vector<1x512xf32>
    %94 = tpu.matmul %92, %93, %cst_42 {dimension_numbers = #tpu.dot_dimension_numbers<[1], [0], [0], [1], [0, 0, 1, 1], [], []>} : vector<1x256xbf16>, vector<256x512xbf16>, vector<1x512xf32> -> vector<1x512xf32>
    %95 = arith.addf %94, %6 : vector<1x512xf32>
    %96 = math.tanh %95 : vector<1x512xf32>
    %97 = vector.extract_strided_slice %96 {offsets = [0, 0], sizes = [1, 128], strides = [1, 1]} : vector<1x512xf32> to vector<1x128xf32>
    %cst_43 = arith.constant 5.000000e-01 : f32
    %98 = vector.broadcast %cst_43 : f32 to vector<1x128xf32>
    %99 = arith.mulf %98, %97 : vector<1x128xf32>
    %cst_44 = arith.constant 5.000000e-01 : f32
    %100 = vector.broadcast %cst_44 : f32 to vector<1x128xf32>
    %101 = arith.addf %99, %100 : vector<1x128xf32>
    %102 = vector.extract_strided_slice %96 {offsets = [0, 128], sizes = [1, 128], strides = [1, 1]} : vector<1x512xf32> to vector<1x128xf32>
    %cst_45 = arith.constant 5.000000e-01 : f32
    %103 = vector.broadcast %cst_45 : f32 to vector<1x128xf32>
    %104 = arith.mulf %103, %102 : vector<1x128xf32>
    %cst_46 = arith.constant 5.000000e-01 : f32
    %105 = vector.broadcast %cst_46 : f32 to vector<1x128xf32>
    %106 = arith.addf %104, %105 : vector<1x128xf32>
    %107 = vector.extract_strided_slice %96 {offsets = [0, 256], sizes = [1, 128], strides = [1, 1]} : vector<1x512xf32> to vector<1x128xf32>
    %108 = vector.extract_strided_slice %96 {offsets = [0, 384], sizes = [1, 128], strides = [1, 1]} : vector<1x512xf32> to vector<1x128xf32>
    %cst_47 = arith.constant 5.000000e-01 : f32
    %109 = vector.broadcast %cst_47 : f32 to vector<1x128xf32>
    %110 = arith.mulf %109, %108 : vector<1x128xf32>
    %cst_48 = arith.constant 5.000000e-01 : f32
    %111 = vector.broadcast %cst_48 : f32 to vector<1x128xf32>
    %112 = arith.addf %110, %111 : vector<1x128xf32>
    %113 = arith.mulf %106, %61 : vector<1x128xf32>
    %114 = arith.mulf %101, %107 : vector<1x128xf32>
    %115 = arith.addf %113, %114 : vector<1x128xf32>
    %116 = math.tanh %115 : vector<1x128xf32>
    %117 = arith.mulf %112, %116 : vector<1x128xf32>
    %c1 = arith.constant 1 : index
    %c0_49 = arith.constant 0 : index
    %118 = vector.load %arg10[%c1, %c0_49] : memref<8x128xf32, #tpu.memory_space<vmem>>, vector<1x128xf32>
    tpu.vector_store %arg10[%c1, %c0_49], %117 {strides = array<i32>} : memref<8x128xf32, #tpu.memory_space<vmem>>, vector<1x128xf32>,
    %119 = arith.truncf %90 : vector<1x128xf32> to vector<1x128xbf16>
    %c0_50 = arith.constant 0 : index
    %c0_51 = arith.constant 0 : index
    %120 = vector.load %arg2[%c0_50, %c0_51] : memref<128x512xbf16, #tpu.memory_space<vmem>>, vector<128x512xbf16>
    %cst_52 = arith.constant dense<0.000000e+00> : vector<1x512xf32>
    %121 = tpu.matmul %119, %120, %cst_52 {dimension_numbers = #tpu.dot_dimension_numbers<[1], [0], [0], [1], [0, 0, 1, 1], [], []>} : vector<1x128xbf16>, vector<128x512xbf16>, vector<1x512xf32> -> vector<1x512xf32>
    %122 = arith.addf %5, %121 : vector<1x512xf32>
    %123 = math.tanh %122 : vector<1x512xf32>
    %124 = vector.extract_strided_slice %123 {offsets = [0, 0], sizes = [1, 128], strides = [1, 1]} : vector<1x512xf32> to vector<1x128xf32>
    %cst_53 = arith.constant 5.000000e-01 : f32
    %125 = vector.broadcast %cst_53 : f32 to vector<1x128xf32>
    %126 = arith.mulf %125, %124 : vector<1x128xf32>
    %cst_54 = arith.constant 5.000000e-01 : f32
    %127 = vector.broadcast %cst_54 : f32 to vector<1x128xf32>
    %128 = arith.addf %126, %127 : vector<1x128xf32>
    %129 = vector.extract_strided_slice %123 {offsets = [0, 128], sizes = [1, 128], strides = [1, 1]} : vector<1x512xf32> to vector<1x128xf32>
    %cst_55 = arith.constant 5.000000e-01 : f32
    %130 = vector.broadcast %cst_55 : f32 to vector<1x128xf32>
    %131 = arith.mulf %130, %129 : vector<1x128xf32>
    %cst_56 = arith.constant 5.000000e-01 : f32
    %132 = vector.broadcast %cst_56 : f32 to vector<1x128xf32>
    %133 = arith.addf %131, %132 : vector<1x128xf32>
    %134 = vector.extract_strided_slice %123 {offsets = [0, 256], sizes = [1, 128], strides = [1, 1]} : vector<1x512xf32> to vector<1x128xf32>
    %135 = vector.extract_strided_slice %123 {offsets = [0, 384], sizes = [1, 128], strides = [1, 1]} : vector<1x512xf32> to vector<1x128xf32>
    %cst_57 = arith.constant 5.000000e-01 : f32
    %136 = vector.broadcast %cst_57 : f32 to vector<1x128xf32>
    %137 = arith.mulf %136, %135 : vector<1x128xf32>
    %cst_58 = arith.constant 5.000000e-01 : f32
    %138 = vector.broadcast %cst_58 : f32 to vector<1x128xf32>
    %139 = arith.addf %137, %138 : vector<1x128xf32>
    %140 = arith.mulf %133, %88 : vector<1x128xf32>
    %141 = arith.mulf %128, %134 : vector<1x128xf32>
    %142 = arith.addf %140, %141 : vector<1x128xf32>
    %143 = math.tanh %142 : vector<1x128xf32>
    %144 = arith.mulf %139, %143 : vector<1x128xf32>
    %145 = tpu.concatenate %144, %117 in 1 : vector<1x128xf32>, vector<1x128xf32> -> vector<1x256xf32>
    %146 = arith.truncf %145 : vector<1x256xf32> to vector<1x256xbf16>
    %c0_59 = arith.constant 0 : index
    %c0_60 = arith.constant 0 : index
    %147 = vector.load %arg9[%c0_59, %c0_60] : memref<256x512xbf16, #tpu.memory_space<vmem>>, vector<256x512xbf16>
    %cst_61 = arith.constant dense<0.000000e+00> : vector<1x512xf32>
    %148 = tpu.matmul %146, %147, %cst_61 {dimension_numbers = #tpu.dot_dimension_numbers<[1], [0], [0], [1], [0, 0, 1, 1], [], []>} : vector<1x256xbf16>, vector<256x512xbf16>, vector<1x512xf32> -> vector<1x512xf32>
    %149 = arith.addf %148, %6 : vector<1x512xf32>
    %150 = math.tanh %149 : vector<1x512xf32>
    %151 = vector.extract_strided_slice %150 {offsets = [0, 0], sizes = [1, 128], strides = [1, 1]} : vector<1x512xf32> to vector<1x128xf32>
    %cst_62 = arith.constant 5.000000e-01 : f32
    %152 = vector.broadcast %cst_62 : f32 to vector<1x128xf32>
    %153 = arith.mulf %152, %151 : vector<1x128xf32>
    %cst_63 = arith.constant 5.000000e-01 : f32
    %154 = vector.broadcast %cst_63 : f32 to vector<1x128xf32>
    %155 = arith.addf %153, %154 : vector<1x128xf32>
    %156 = vector.extract_strided_slice %150 {offsets = [0, 128], sizes = [1, 128], strides = [1, 1]} : vector<1x512xf32> to vector<1x128xf32>
    %cst_64 = arith.constant 5.000000e-01 : f32
    %157 = vector.broadcast %cst_64 : f32 to vector<1x128xf32>
    %158 = arith.mulf %157, %156 : vector<1x128xf32>
    %cst_65 = arith.constant 5.000000e-01 : f32
    %159 = vector.broadcast %cst_65 : f32 to vector<1x128xf32>
    %160 = arith.addf %158, %159 : vector<1x128xf32>
    %161 = vector.extract_strided_slice %150 {offsets = [0, 256], sizes = [1, 128], strides = [1, 1]} : vector<1x512xf32> to vector<1x128xf32>
    %162 = vector.extract_strided_slice %150 {offsets = [0, 384], sizes = [1, 128], strides = [1, 1]} : vector<1x512xf32> to vector<1x128xf32>
    %cst_66 = arith.constant 5.000000e-01 : f32
    %163 = vector.broadcast %cst_66 : f32 to vector<1x128xf32>
    %164 = arith.mulf %163, %162 : vector<1x128xf32>
    %cst_67 = arith.constant 5.000000e-01 : f32
    %165 = vector.broadcast %cst_67 : f32 to vector<1x128xf32>
    %166 = arith.addf %164, %165 : vector<1x128xf32>
    %167 = arith.mulf %160, %115 : vector<1x128xf32>
    %168 = arith.mulf %155, %161 : vector<1x128xf32>
    %169 = arith.addf %167, %168 : vector<1x128xf32>
    %170 = math.tanh %169 : vector<1x128xf32>
    %171 = arith.mulf %166, %170 : vector<1x128xf32>
    %c2 = arith.constant 2 : index
    %c0_68 = arith.constant 0 : index
    %172 = vector.load %arg10[%c2, %c0_68] : memref<8x128xf32, #tpu.memory_space<vmem>>, vector<1x128xf32>
    tpu.vector_store %arg10[%c2, %c0_68], %171 {strides = array<i32>} : memref<8x128xf32, #tpu.memory_space<vmem>>, vector<1x128xf32>,
    %173 = arith.truncf %144 : vector<1x128xf32> to vector<1x128xbf16>
    %c0_69 = arith.constant 0 : index
    %c0_70 = arith.constant 0 : index
    %174 = vector.load %arg2[%c0_69, %c0_70] : memref<128x512xbf16, #tpu.memory_space<vmem>>, vector<128x512xbf16>
    %cst_71 = arith.constant dense<0.000000e+00> : vector<1x512xf32>
    %175 = tpu.matmul %173, %174, %cst_71 {dimension_numbers = #tpu.dot_dimension_numbers<[1], [0], [0], [1], [0, 0, 1, 1], [], []>} : vector<1x128xbf16>, vector<128x512xbf16>, vector<1x512xf32> -> vector<1x512xf32>
    %176 = arith.addf %5, %175 : vector<1x512xf32>
    %177 = math.tanh %176 : vector<1x512xf32>
    %178 = vector.extract_strided_slice %177 {offsets = [0, 0], sizes = [1, 128], strides = [1, 1]} : vector<1x512xf32> to vector<1x128xf32>
    %cst_72 = arith.constant 5.000000e-01 : f32
    %179 = vector.broadcast %cst_72 : f32 to vector<1x128xf32>
    %180 = arith.mulf %179, %178 : vector<1x128xf32>
    %cst_73 = arith.constant 5.000000e-01 : f32
    %181 = vector.broadcast %cst_73 : f32 to vector<1x128xf32>
    %182 = arith.addf %180, %181 : vector<1x128xf32>
    %183 = vector.extract_strided_slice %177 {offsets = [0, 128], sizes = [1, 128], strides = [1, 1]} : vector<1x512xf32> to vector<1x128xf32>
    %cst_74 = arith.constant 5.000000e-01 : f32
    %184 = vector.broadcast %cst_74 : f32 to vector<1x128xf32>
    %185 = arith.mulf %184, %183 : vector<1x128xf32>
    %cst_75 = arith.constant 5.000000e-01 : f32
    %186 = vector.broadcast %cst_75 : f32 to vector<1x128xf32>
    %187 = arith.addf %185, %186 : vector<1x128xf32>
    %188 = vector.extract_strided_slice %177 {offsets = [0, 256], sizes = [1, 128], strides = [1, 1]} : vector<1x512xf32> to vector<1x128xf32>
    %189 = vector.extract_strided_slice %177 {offsets = [0, 384], sizes = [1, 128], strides = [1, 1]} : vector<1x512xf32> to vector<1x128xf32>
    %cst_76 = arith.constant 5.000000e-01 : f32
    %190 = vector.broadcast %cst_76 : f32 to vector<1x128xf32>
    %191 = arith.mulf %190, %189 : vector<1x128xf32>
    %cst_77 = arith.constant 5.000000e-01 : f32
    %192 = vector.broadcast %cst_77 : f32 to vector<1x128xf32>
    %193 = arith.addf %191, %192 : vector<1x128xf32>
    %194 = arith.mulf %187, %142 : vector<1x128xf32>
    %195 = arith.mulf %182, %188 : vector<1x128xf32>
    %196 = arith.addf %194, %195 : vector<1x128xf32>
    %197 = math.tanh %196 : vector<1x128xf32>
    %198 = arith.mulf %193, %197 : vector<1x128xf32>
    %199 = tpu.concatenate %198, %171 in 1 : vector<1x128xf32>, vector<1x128xf32> -> vector<1x256xf32>
    %200 = arith.truncf %199 : vector<1x256xf32> to vector<1x256xbf16>
    %c0_78 = arith.constant 0 : index
    %c0_79 = arith.constant 0 : index
    %201 = vector.load %arg9[%c0_78, %c0_79] : memref<256x512xbf16, #tpu.memory_space<vmem>>, vector<256x512xbf16>
    %cst_80 = arith.constant dense<0.000000e+00> : vector<1x512xf32>
    %202 = tpu.matmul %200, %201, %cst_80 {dimension_numbers = #tpu.dot_dimension_numbers<[1], [0], [0], [1], [0, 0, 1, 1], [], []>} : vector<1x256xbf16>, vector<256x512xbf16>, vector<1x512xf32> -> vector<1x512xf32>
    %203 = arith.addf %202, %6 : vector<1x512xf32>
    %204 = math.tanh %203 : vector<1x512xf32>
    %205 = vector.extract_strided_slice %204 {offsets = [0, 0], sizes = [1, 128], strides = [1, 1]} : vector<1x512xf32> to vector<1x128xf32>
    %cst_81 = arith.constant 5.000000e-01 : f32
    %206 = vector.broadcast %cst_81 : f32 to vector<1x128xf32>
    %207 = arith.mulf %206, %205 : vector<1x128xf32>
    %cst_82 = arith.constant 5.000000e-01 : f32
    %208 = vector.broadcast %cst_82 : f32 to vector<1x128xf32>
    %209 = arith.addf %207, %208 : vector<1x128xf32>
    %210 = vector.extract_strided_slice %204 {offsets = [0, 128], sizes = [1, 128], strides = [1, 1]} : vector<1x512xf32> to vector<1x128xf32>
    %cst_83 = arith.constant 5.000000e-01 : f32
    %211 = vector.broadcast %cst_83 : f32 to vector<1x128xf32>
    %212 = arith.mulf %211, %210 : vector<1x128xf32>
    %cst_84 = arith.constant 5.000000e-01 : f32
    %213 = vector.broadcast %cst_84 : f32 to vector<1x128xf32>
    %214 = arith.addf %212, %213 : vector<1x128xf32>
    %215 = vector.extract_strided_slice %204 {offsets = [0, 256], sizes = [1, 128], strides = [1, 1]} : vector<1x512xf32> to vector<1x128xf32>
    %216 = vector.extract_strided_slice %204 {offsets = [0, 384], sizes = [1, 128], strides = [1, 1]} : vector<1x512xf32> to vector<1x128xf32>
    %cst_85 = arith.constant 5.000000e-01 : f32
    %217 = vector.broadcast %cst_85 : f32 to vector<1x128xf32>
    %218 = arith.mulf %217, %216 : vector<1x128xf32>
    %cst_86 = arith.constant 5.000000e-01 : f32
    %219 = vector.broadcast %cst_86 : f32 to vector<1x128xf32>
    %220 = arith.addf %218, %219 : vector<1x128xf32>
    %221 = arith.mulf %214, %169 : vector<1x128xf32>
    %222 = arith.mulf %209, %215 : vector<1x128xf32>
    %223 = arith.addf %221, %222 : vector<1x128xf32>
    %224 = math.tanh %223 : vector<1x128xf32>
    %225 = arith.mulf %220, %224 : vector<1x128xf32>
    %c3 = arith.constant 3 : index
    %c0_87 = arith.constant 0 : index
    %226 = vector.load %arg10[%c3, %c0_87] : memref<8x128xf32, #tpu.memory_space<vmem>>, vector<1x128xf32>
    tpu.vector_store %arg10[%c3, %c0_87], %225 {strides = array<i32>} : memref<8x128xf32, #tpu.memory_space<vmem>>, vector<1x128xf32>,
    %227 = arith.truncf %198 : vector<1x128xf32> to vector<1x128xbf16>
    %c0_88 = arith.constant 0 : index
    %c0_89 = arith.constant 0 : index
    %228 = vector.load %arg2[%c0_88, %c0_89] : memref<128x512xbf16, #tpu.memory_space<vmem>>, vector<128x512xbf16>
    %cst_90 = arith.constant dense<0.000000e+00> : vector<1x512xf32>
    %229 = tpu.matmul %227, %228, %cst_90 {dimension_numbers = #tpu.dot_dimension_numbers<[1], [0], [0], [1], [0, 0, 1, 1], [], []>} : vector<1x128xbf16>, vector<128x512xbf16>, vector<1x512xf32> -> vector<1x512xf32>
    %230 = arith.addf %5, %229 : vector<1x512xf32>
    %231 = math.tanh %230 : vector<1x512xf32>
    %232 = vector.extract_strided_slice %231 {offsets = [0, 0], sizes = [1, 128], strides = [1, 1]} : vector<1x512xf32> to vector<1x128xf32>
    %cst_91 = arith.constant 5.000000e-01 : f32
    %233 = vector.broadcast %cst_91 : f32 to vector<1x128xf32>
    %234 = arith.mulf %233, %232 : vector<1x128xf32>
    %cst_92 = arith.constant 5.000000e-01 : f32
    %235 = vector.broadcast %cst_92 : f32 to vector<1x128xf32>
    %236 = arith.addf %234, %235 : vector<1x128xf32>
    %237 = vector.extract_strided_slice %231 {offsets = [0, 128], sizes = [1, 128], strides = [1, 1]} : vector<1x512xf32> to vector<1x128xf32>
    %cst_93 = arith.constant 5.000000e-01 : f32
    %238 = vector.broadcast %cst_93 : f32 to vector<1x128xf32>
    %239 = arith.mulf %238, %237 : vector<1x128xf32>
    %cst_94 = arith.constant 5.000000e-01 : f32
    %240 = vector.broadcast %cst_94 : f32 to vector<1x128xf32>
    %241 = arith.addf %239, %240 : vector<1x128xf32>
    %242 = vector.extract_strided_slice %231 {offsets = [0, 256], sizes = [1, 128], strides = [1, 1]} : vector<1x512xf32> to vector<1x128xf32>
    %243 = vector.extract_strided_slice %231 {offsets = [0, 384], sizes = [1, 128], strides = [1, 1]} : vector<1x512xf32> to vector<1x128xf32>
    %cst_95 = arith.constant 5.000000e-01 : f32
    %244 = vector.broadcast %cst_95 : f32 to vector<1x128xf32>
    %245 = arith.mulf %244, %243 : vector<1x128xf32>
    %cst_96 = arith.constant 5.000000e-01 : f32
    %246 = vector.broadcast %cst_96 : f32 to vector<1x128xf32>
    %247 = arith.addf %245, %246 : vector<1x128xf32>
    %248 = arith.mulf %241, %196 : vector<1x128xf32>
    %249 = arith.mulf %236, %242 : vector<1x128xf32>
    %250 = arith.addf %248, %249 : vector<1x128xf32>
    %251 = math.tanh %250 : vector<1x128xf32>
    %252 = arith.mulf %247, %251 : vector<1x128xf32>
    %253 = tpu.concatenate %252, %225 in 1 : vector<1x128xf32>, vector<1x128xf32> -> vector<1x256xf32>
    %254 = arith.truncf %253 : vector<1x256xf32> to vector<1x256xbf16>
    %c0_97 = arith.constant 0 : index
    %c0_98 = arith.constant 0 : index
    %255 = vector.load %arg9[%c0_97, %c0_98] : memref<256x512xbf16, #tpu.memory_space<vmem>>, vector<256x512xbf16>
    %cst_99 = arith.constant dense<0.000000e+00> : vector<1x512xf32>
    %256 = tpu.matmul %254, %255, %cst_99 {dimension_numbers = #tpu.dot_dimension_numbers<[1], [0], [0], [1], [0, 0, 1, 1], [], []>} : vector<1x256xbf16>, vector<256x512xbf16>, vector<1x512xf32> -> vector<1x512xf32>
    %257 = arith.addf %256, %6 : vector<1x512xf32>
    %258 = math.tanh %257 : vector<1x512xf32>
    %259 = vector.extract_strided_slice %258 {offsets = [0, 0], sizes = [1, 128], strides = [1, 1]} : vector<1x512xf32> to vector<1x128xf32>
    %cst_100 = arith.constant 5.000000e-01 : f32
    %260 = vector.broadcast %cst_100 : f32 to vector<1x128xf32>
    %261 = arith.mulf %260, %259 : vector<1x128xf32>
    %cst_101 = arith.constant 5.000000e-01 : f32
    %262 = vector.broadcast %cst_101 : f32 to vector<1x128xf32>
    %263 = arith.addf %261, %262 : vector<1x128xf32>
    %264 = vector.extract_strided_slice %258 {offsets = [0, 128], sizes = [1, 128], strides = [1, 1]} : vector<1x512xf32> to vector<1x128xf32>
    %cst_102 = arith.constant 5.000000e-01 : f32
    %265 = vector.broadcast %cst_102 : f32 to vector<1x128xf32>
    %266 = arith.mulf %265, %264 : vector<1x128xf32>
    %cst_103 = arith.constant 5.000000e-01 : f32
    %267 = vector.broadcast %cst_103 : f32 to vector<1x128xf32>
    %268 = arith.addf %266, %267 : vector<1x128xf32>
    %269 = vector.extract_strided_slice %258 {offsets = [0, 256], sizes = [1, 128], strides = [1, 1]} : vector<1x512xf32> to vector<1x128xf32>
    %270 = vector.extract_strided_slice %258 {offsets = [0, 384], sizes = [1, 128], strides = [1, 1]} : vector<1x512xf32> to vector<1x128xf32>
    %cst_104 = arith.constant 5.000000e-01 : f32
    %271 = vector.broadcast %cst_104 : f32 to vector<1x128xf32>
    %272 = arith.mulf %271, %270 : vector<1x128xf32>
    %cst_105 = arith.constant 5.000000e-01 : f32
    %273 = vector.broadcast %cst_105 : f32 to vector<1x128xf32>
    %274 = arith.addf %272, %273 : vector<1x128xf32>
    %275 = arith.mulf %268, %223 : vector<1x128xf32>
    %276 = arith.mulf %263, %269 : vector<1x128xf32>
    %277 = arith.addf %275, %276 : vector<1x128xf32>
    %278 = math.tanh %277 : vector<1x128xf32>
    %279 = arith.mulf %274, %278 : vector<1x128xf32>
    %c4 = arith.constant 4 : index
    %c0_106 = arith.constant 0 : index
    %280 = vector.load %arg10[%c4, %c0_106] : memref<8x128xf32, #tpu.memory_space<vmem>>, vector<1x128xf32>
    tpu.vector_store %arg10[%c4, %c0_106], %279 {strides = array<i32>} : memref<8x128xf32, #tpu.memory_space<vmem>>, vector<1x128xf32>,
    %281 = arith.truncf %252 : vector<1x128xf32> to vector<1x128xbf16>
    %c0_107 = arith.constant 0 : index
    %c0_108 = arith.constant 0 : index
    %282 = vector.load %arg2[%c0_107, %c0_108] : memref<128x512xbf16, #tpu.memory_space<vmem>>, vector<128x512xbf16>
    %cst_109 = arith.constant dense<0.000000e+00> : vector<1x512xf32>
    %283 = tpu.matmul %281, %282, %cst_109 {dimension_numbers = #tpu.dot_dimension_numbers<[1], [0], [0], [1], [0, 0, 1, 1], [], []>} : vector<1x128xbf16>, vector<128x512xbf16>, vector<1x512xf32> -> vector<1x512xf32>
    %284 = arith.addf %5, %283 : vector<1x512xf32>
    %285 = math.tanh %284 : vector<1x512xf32>
    %286 = vector.extract_strided_slice %285 {offsets = [0, 0], sizes = [1, 128], strides = [1, 1]} : vector<1x512xf32> to vector<1x128xf32>
    %cst_110 = arith.constant 5.000000e-01 : f32
    %287 = vector.broadcast %cst_110 : f32 to vector<1x128xf32>
    %288 = arith.mulf %287, %286 : vector<1x128xf32>
    %cst_111 = arith.constant 5.000000e-01 : f32
    %289 = vector.broadcast %cst_111 : f32 to vector<1x128xf32>
    %290 = arith.addf %288, %289 : vector<1x128xf32>
    %291 = vector.extract_strided_slice %285 {offsets = [0, 128], sizes = [1, 128], strides = [1, 1]} : vector<1x512xf32> to vector<1x128xf32>
    %cst_112 = arith.constant 5.000000e-01 : f32
    %292 = vector.broadcast %cst_112 : f32 to vector<1x128xf32>
    %293 = arith.mulf %292, %291 : vector<1x128xf32>
    %cst_113 = arith.constant 5.000000e-01 : f32
    %294 = vector.broadcast %cst_113 : f32 to vector<1x128xf32>
    %295 = arith.addf %293, %294 : vector<1x128xf32>
    %296 = vector.extract_strided_slice %285 {offsets = [0, 256], sizes = [1, 128], strides = [1, 1]} : vector<1x512xf32> to vector<1x128xf32>
    %297 = vector.extract_strided_slice %285 {offsets = [0, 384], sizes = [1, 128], strides = [1, 1]} : vector<1x512xf32> to vector<1x128xf32>
    %cst_114 = arith.constant 5.000000e-01 : f32
    %298 = vector.broadcast %cst_114 : f32 to vector<1x128xf32>
    %299 = arith.mulf %298, %297 : vector<1x128xf32>
    %cst_115 = arith.constant 5.000000e-01 : f32
    %300 = vector.broadcast %cst_115 : f32 to vector<1x128xf32>
    %301 = arith.addf %299, %300 : vector<1x128xf32>
    %302 = arith.mulf %295, %250 : vector<1x128xf32>
    %303 = arith.mulf %290, %296 : vector<1x128xf32>
    %304 = arith.addf %302, %303 : vector<1x128xf32>
    %305 = math.tanh %304 : vector<1x128xf32>
    %306 = arith.mulf %301, %305 : vector<1x128xf32>
    %307 = tpu.concatenate %306, %279 in 1 : vector<1x128xf32>, vector<1x128xf32> -> vector<1x256xf32>
    %308 = arith.truncf %307 : vector<1x256xf32> to vector<1x256xbf16>
    %c0_116 = arith.constant 0 : index
    %c0_117 = arith.constant 0 : index
    %309 = vector.load %arg9[%c0_116, %c0_117] : memref<256x512xbf16, #tpu.memory_space<vmem>>, vector<256x512xbf16>
    %cst_118 = arith.constant dense<0.000000e+00> : vector<1x512xf32>
    %310 = tpu.matmul %308, %309, %cst_118 {dimension_numbers = #tpu.dot_dimension_numbers<[1], [0], [0], [1], [0, 0, 1, 1], [], []>} : vector<1x256xbf16>, vector<256x512xbf16>, vector<1x512xf32> -> vector<1x512xf32>
    %311 = arith.addf %310, %6 : vector<1x512xf32>
    %312 = math.tanh %311 : vector<1x512xf32>
    %313 = vector.extract_strided_slice %312 {offsets = [0, 0], sizes = [1, 128], strides = [1, 1]} : vector<1x512xf32> to vector<1x128xf32>
    %cst_119 = arith.constant 5.000000e-01 : f32
    %314 = vector.broadcast %cst_119 : f32 to vector<1x128xf32>
    %315 = arith.mulf %314, %313 : vector<1x128xf32>
    %cst_120 = arith.constant 5.000000e-01 : f32
    %316 = vector.broadcast %cst_120 : f32 to vector<1x128xf32>
    %317 = arith.addf %315, %316 : vector<1x128xf32>
    %318 = vector.extract_strided_slice %312 {offsets = [0, 128], sizes = [1, 128], strides = [1, 1]} : vector<1x512xf32> to vector<1x128xf32>
    %cst_121 = arith.constant 5.000000e-01 : f32
    %319 = vector.broadcast %cst_121 : f32 to vector<1x128xf32>
    %320 = arith.mulf %319, %318 : vector<1x128xf32>
    %cst_122 = arith.constant 5.000000e-01 : f32
    %321 = vector.broadcast %cst_122 : f32 to vector<1x128xf32>
    %322 = arith.addf %320, %321 : vector<1x128xf32>
    %323 = vector.extract_strided_slice %312 {offsets = [0, 256], sizes = [1, 128], strides = [1, 1]} : vector<1x512xf32> to vector<1x128xf32>
    %324 = vector.extract_strided_slice %312 {offsets = [0, 384], sizes = [1, 128], strides = [1, 1]} : vector<1x512xf32> to vector<1x128xf32>
    %cst_123 = arith.constant 5.000000e-01 : f32
    %325 = vector.broadcast %cst_123 : f32 to vector<1x128xf32>
    %326 = arith.mulf %325, %324 : vector<1x128xf32>
    %cst_124 = arith.constant 5.000000e-01 : f32
    %327 = vector.broadcast %cst_124 : f32 to vector<1x128xf32>
    %328 = arith.addf %326, %327 : vector<1x128xf32>
    %329 = arith.mulf %322, %277 : vector<1x128xf32>
    %330 = arith.mulf %317, %323 : vector<1x128xf32>
    %331 = arith.addf %329, %330 : vector<1x128xf32>
    %332 = math.tanh %331 : vector<1x128xf32>
    %333 = arith.mulf %328, %332 : vector<1x128xf32>
    %c5 = arith.constant 5 : index
    %c0_125 = arith.constant 0 : index
    %334 = vector.load %arg10[%c5, %c0_125] : memref<8x128xf32, #tpu.memory_space<vmem>>, vector<1x128xf32>
    tpu.vector_store %arg10[%c5, %c0_125], %333 {strides = array<i32>} : memref<8x128xf32, #tpu.memory_space<vmem>>, vector<1x128xf32>,
    %335 = arith.truncf %306 : vector<1x128xf32> to vector<1x128xbf16>
    %c0_126 = arith.constant 0 : index
    %c0_127 = arith.constant 0 : index
    %336 = vector.load %arg2[%c0_126, %c0_127] : memref<128x512xbf16, #tpu.memory_space<vmem>>, vector<128x512xbf16>
    %cst_128 = arith.constant dense<0.000000e+00> : vector<1x512xf32>
    %337 = tpu.matmul %335, %336, %cst_128 {dimension_numbers = #tpu.dot_dimension_numbers<[1], [0], [0], [1], [0, 0, 1, 1], [], []>} : vector<1x128xbf16>, vector<128x512xbf16>, vector<1x512xf32> -> vector<1x512xf32>
    %338 = arith.addf %5, %337 : vector<1x512xf32>
    %339 = math.tanh %338 : vector<1x512xf32>
    %340 = vector.extract_strided_slice %339 {offsets = [0, 0], sizes = [1, 128], strides = [1, 1]} : vector<1x512xf32> to vector<1x128xf32>
    %cst_129 = arith.constant 5.000000e-01 : f32
    %341 = vector.broadcast %cst_129 : f32 to vector<1x128xf32>
    %342 = arith.mulf %341, %340 : vector<1x128xf32>
    %cst_130 = arith.constant 5.000000e-01 : f32
    %343 = vector.broadcast %cst_130 : f32 to vector<1x128xf32>
    %344 = arith.addf %342, %343 : vector<1x128xf32>
    %345 = vector.extract_strided_slice %339 {offsets = [0, 128], sizes = [1, 128], strides = [1, 1]} : vector<1x512xf32> to vector<1x128xf32>
    %cst_131 = arith.constant 5.000000e-01 : f32
    %346 = vector.broadcast %cst_131 : f32 to vector<1x128xf32>
    %347 = arith.mulf %346, %345 : vector<1x128xf32>
    %cst_132 = arith.constant 5.000000e-01 : f32
    %348 = vector.broadcast %cst_132 : f32 to vector<1x128xf32>
    %349 = arith.addf %347, %348 : vector<1x128xf32>
    %350 = vector.extract_strided_slice %339 {offsets = [0, 256], sizes = [1, 128], strides = [1, 1]} : vector<1x512xf32> to vector<1x128xf32>
    %351 = vector.extract_strided_slice %339 {offsets = [0, 384], sizes = [1, 128], strides = [1, 1]} : vector<1x512xf32> to vector<1x128xf32>
    %cst_133 = arith.constant 5.000000e-01 : f32
    %352 = vector.broadcast %cst_133 : f32 to vector<1x128xf32>
    %353 = arith.mulf %352, %351 : vector<1x128xf32>
    %cst_134 = arith.constant 5.000000e-01 : f32
    %354 = vector.broadcast %cst_134 : f32 to vector<1x128xf32>
    %355 = arith.addf %353, %354 : vector<1x128xf32>
    %356 = arith.mulf %349, %304 : vector<1x128xf32>
    %357 = arith.mulf %344, %350 : vector<1x128xf32>
    %358 = arith.addf %356, %357 : vector<1x128xf32>
    %359 = math.tanh %358 : vector<1x128xf32>
    %360 = arith.mulf %355, %359 : vector<1x128xf32>
    %361 = tpu.concatenate %360, %333 in 1 : vector<1x128xf32>, vector<1x128xf32> -> vector<1x256xf32>
    %362 = arith.truncf %361 : vector<1x256xf32> to vector<1x256xbf16>
    %c0_135 = arith.constant 0 : index
    %c0_136 = arith.constant 0 : index
    %363 = vector.load %arg9[%c0_135, %c0_136] : memref<256x512xbf16, #tpu.memory_space<vmem>>, vector<256x512xbf16>
    %cst_137 = arith.constant dense<0.000000e+00> : vector<1x512xf32>
    %364 = tpu.matmul %362, %363, %cst_137 {dimension_numbers = #tpu.dot_dimension_numbers<[1], [0], [0], [1], [0, 0, 1, 1], [], []>} : vector<1x256xbf16>, vector<256x512xbf16>, vector<1x512xf32> -> vector<1x512xf32>
    %365 = arith.addf %364, %6 : vector<1x512xf32>
    %366 = math.tanh %365 : vector<1x512xf32>
    %367 = vector.extract_strided_slice %366 {offsets = [0, 0], sizes = [1, 128], strides = [1, 1]} : vector<1x512xf32> to vector<1x128xf32>
    %cst_138 = arith.constant 5.000000e-01 : f32
    %368 = vector.broadcast %cst_138 : f32 to vector<1x128xf32>
    %369 = arith.mulf %368, %367 : vector<1x128xf32>
    %cst_139 = arith.constant 5.000000e-01 : f32
    %370 = vector.broadcast %cst_139 : f32 to vector<1x128xf32>
    %371 = arith.addf %369, %370 : vector<1x128xf32>
    %372 = vector.extract_strided_slice %366 {offsets = [0, 128], sizes = [1, 128], strides = [1, 1]} : vector<1x512xf32> to vector<1x128xf32>
    %cst_140 = arith.constant 5.000000e-01 : f32
    %373 = vector.broadcast %cst_140 : f32 to vector<1x128xf32>
    %374 = arith.mulf %373, %372 : vector<1x128xf32>
    %cst_141 = arith.constant 5.000000e-01 : f32
    %375 = vector.broadcast %cst_141 : f32 to vector<1x128xf32>
    %376 = arith.addf %374, %375 : vector<1x128xf32>
    %377 = vector.extract_strided_slice %366 {offsets = [0, 256], sizes = [1, 128], strides = [1, 1]} : vector<1x512xf32> to vector<1x128xf32>
    %378 = vector.extract_strided_slice %366 {offsets = [0, 384], sizes = [1, 128], strides = [1, 1]} : vector<1x512xf32> to vector<1x128xf32>
    %cst_142 = arith.constant 5.000000e-01 : f32
    %379 = vector.broadcast %cst_142 : f32 to vector<1x128xf32>
    %380 = arith.mulf %379, %378 : vector<1x128xf32>
    %cst_143 = arith.constant 5.000000e-01 : f32
    %381 = vector.broadcast %cst_143 : f32 to vector<1x128xf32>
    %382 = arith.addf %380, %381 : vector<1x128xf32>
    %383 = arith.mulf %376, %331 : vector<1x128xf32>
    %384 = arith.mulf %371, %377 : vector<1x128xf32>
    %385 = arith.addf %383, %384 : vector<1x128xf32>
    %386 = math.tanh %385 : vector<1x128xf32>
    %387 = arith.mulf %382, %386 : vector<1x128xf32>
    %c6 = arith.constant 6 : index
    %c0_144 = arith.constant 0 : index
    %388 = vector.load %arg10[%c6, %c0_144] : memref<8x128xf32, #tpu.memory_space<vmem>>, vector<1x128xf32>
    tpu.vector_store %arg10[%c6, %c0_144], %387 {strides = array<i32>} : memref<8x128xf32, #tpu.memory_space<vmem>>, vector<1x128xf32>,
    %389 = arith.truncf %360 : vector<1x128xf32> to vector<1x128xbf16>
    %c0_145 = arith.constant 0 : index
    %c0_146 = arith.constant 0 : index
    %390 = vector.load %arg2[%c0_145, %c0_146] : memref<128x512xbf16, #tpu.memory_space<vmem>>, vector<128x512xbf16>
    %cst_147 = arith.constant dense<0.000000e+00> : vector<1x512xf32>
    %391 = tpu.matmul %389, %390, %cst_147 {dimension_numbers = #tpu.dot_dimension_numbers<[1], [0], [0], [1], [0, 0, 1, 1], [], []>} : vector<1x128xbf16>, vector<128x512xbf16>, vector<1x512xf32> -> vector<1x512xf32>
    %392 = arith.addf %5, %391 : vector<1x512xf32>
    %393 = math.tanh %392 : vector<1x512xf32>
    %394 = vector.extract_strided_slice %393 {offsets = [0, 0], sizes = [1, 128], strides = [1, 1]} : vector<1x512xf32> to vector<1x128xf32>
    %cst_148 = arith.constant 5.000000e-01 : f32
    %395 = vector.broadcast %cst_148 : f32 to vector<1x128xf32>
    %396 = arith.mulf %395, %394 : vector<1x128xf32>
    %cst_149 = arith.constant 5.000000e-01 : f32
    %397 = vector.broadcast %cst_149 : f32 to vector<1x128xf32>
    %398 = arith.addf %396, %397 : vector<1x128xf32>
    %399 = vector.extract_strided_slice %393 {offsets = [0, 128], sizes = [1, 128], strides = [1, 1]} : vector<1x512xf32> to vector<1x128xf32>
    %cst_150 = arith.constant 5.000000e-01 : f32
    %400 = vector.broadcast %cst_150 : f32 to vector<1x128xf32>
    %401 = arith.mulf %400, %399 : vector<1x128xf32>
    %cst_151 = arith.constant 5.000000e-01 : f32
    %402 = vector.broadcast %cst_151 : f32 to vector<1x128xf32>
    %403 = arith.addf %401, %402 : vector<1x128xf32>
    %404 = vector.extract_strided_slice %393 {offsets = [0, 256], sizes = [1, 128], strides = [1, 1]} : vector<1x512xf32> to vector<1x128xf32>
    %405 = vector.extract_strided_slice %393 {offsets = [0, 384], sizes = [1, 128], strides = [1, 1]} : vector<1x512xf32> to vector<1x128xf32>
    %cst_152 = arith.constant 5.000000e-01 : f32
    %406 = vector.broadcast %cst_152 : f32 to vector<1x128xf32>
    %407 = arith.mulf %406, %405 : vector<1x128xf32>
    %cst_153 = arith.constant 5.000000e-01 : f32
    %408 = vector.broadcast %cst_153 : f32 to vector<1x128xf32>
    %409 = arith.addf %407, %408 : vector<1x128xf32>
    %410 = arith.mulf %403, %358 : vector<1x128xf32>
    %411 = arith.mulf %398, %404 : vector<1x128xf32>
    %412 = arith.addf %410, %411 : vector<1x128xf32>
    %413 = math.tanh %412 : vector<1x128xf32>
    %414 = arith.mulf %409, %413 : vector<1x128xf32>
    %415 = tpu.concatenate %414, %387 in 1 : vector<1x128xf32>, vector<1x128xf32> -> vector<1x256xf32>
    %416 = arith.truncf %415 : vector<1x256xf32> to vector<1x256xbf16>
    %c0_154 = arith.constant 0 : index
    %c0_155 = arith.constant 0 : index
    %417 = vector.load %arg9[%c0_154, %c0_155] : memref<256x512xbf16, #tpu.memory_space<vmem>>, vector<256x512xbf16>
    %cst_156 = arith.constant dense<0.000000e+00> : vector<1x512xf32>
    %418 = tpu.matmul %416, %417, %cst_156 {dimension_numbers = #tpu.dot_dimension_numbers<[1], [0], [0], [1], [0, 0, 1, 1], [], []>} : vector<1x256xbf16>, vector<256x512xbf16>, vector<1x512xf32> -> vector<1x512xf32>
    %419 = arith.addf %418, %6 : vector<1x512xf32>
    %420 = math.tanh %419 : vector<1x512xf32>
    %421 = vector.extract_strided_slice %420 {offsets = [0, 0], sizes = [1, 128], strides = [1, 1]} : vector<1x512xf32> to vector<1x128xf32>
    %cst_157 = arith.constant 5.000000e-01 : f32
    %422 = vector.broadcast %cst_157 : f32 to vector<1x128xf32>
    %423 = arith.mulf %422, %421 : vector<1x128xf32>
    %cst_158 = arith.constant 5.000000e-01 : f32
    %424 = vector.broadcast %cst_158 : f32 to vector<1x128xf32>
    %425 = arith.addf %423, %424 : vector<1x128xf32>
    %426 = vector.extract_strided_slice %420 {offsets = [0, 128], sizes = [1, 128], strides = [1, 1]} : vector<1x512xf32> to vector<1x128xf32>
    %cst_159 = arith.constant 5.000000e-01 : f32
    %427 = vector.broadcast %cst_159 : f32 to vector<1x128xf32>
    %428 = arith.mulf %427, %426 : vector<1x128xf32>
    %cst_160 = arith.constant 5.000000e-01 : f32
    %429 = vector.broadcast %cst_160 : f32 to vector<1x128xf32>
    %430 = arith.addf %428, %429 : vector<1x128xf32>
    %431 = vector.extract_strided_slice %420 {offsets = [0, 256], sizes = [1, 128], strides = [1, 1]} : vector<1x512xf32> to vector<1x128xf32>
    %432 = vector.extract_strided_slice %420 {offsets = [0, 384], sizes = [1, 128], strides = [1, 1]} : vector<1x512xf32> to vector<1x128xf32>
    %cst_161 = arith.constant 5.000000e-01 : f32
    %433 = vector.broadcast %cst_161 : f32 to vector<1x128xf32>
    %434 = arith.mulf %433, %432 : vector<1x128xf32>
    %cst_162 = arith.constant 5.000000e-01 : f32
    %435 = vector.broadcast %cst_162 : f32 to vector<1x128xf32>
    %436 = arith.addf %434, %435 : vector<1x128xf32>
    %437 = arith.mulf %430, %385 : vector<1x128xf32>
    %438 = arith.mulf %425, %431 : vector<1x128xf32>
    %439 = arith.addf %437, %438 : vector<1x128xf32>
    %440 = math.tanh %439 : vector<1x128xf32>
    %441 = arith.mulf %436, %440 : vector<1x128xf32>
    %c7 = arith.constant 7 : index
    %c0_163 = arith.constant 0 : index
    %442 = vector.load %arg10[%c7, %c0_163] : memref<8x128xf32, #tpu.memory_space<vmem>>, vector<1x128xf32>
    tpu.vector_store %arg10[%c7, %c0_163], %441 {strides = array<i32>} : memref<8x128xf32, #tpu.memory_space<vmem>>, vector<1x128xf32>,
    %c0_164 = arith.constant 0 : index
    %c0_165 = arith.constant 0 : index
    %443 = vector.load %arg10[%c0_164, %c0_165] : memref<8x128xf32, #tpu.memory_space<vmem>>, vector<8x128xf32>
    %444 = arith.truncf %443 : vector<8x128xf32> to vector<8x128xbf16>
    %c0_166 = arith.constant 0 : index
    %c0_167 = arith.constant 0 : index
    %445 = vector.load %arg6[%c0_166, %c0_167] : memref<128x128xbf16, #tpu.memory_space<vmem>>, vector<128x128xbf16>
    %cst_168 = arith.constant dense<0.000000e+00> : vector<8x128xf32>
    %446 = tpu.matmul %444, %445, %cst_168 {dimension_numbers = #tpu.dot_dimension_numbers<[1], [0], [0], [1], [0, 0, 1, 1], [], []>} : vector<8x128xbf16>, vector<128x128xbf16>, vector<8x128xf32> -> vector<8x128xf32>
    %c0_169 = arith.constant 0 : index
    %c0_170 = arith.constant 0 : index
    %447 = vector.load %arg7[%c0_169, %c0_170] : memref<1x128xf32, #tpu.memory_space<vmem>>, vector<1x128xf32>
    %448 = vector.broadcast %447 : vector<1x128xf32> to vector<8x128xf32>
    %449 = arith.addf %446, %448 : vector<8x128xf32>
    %c0_171 = arith.constant 0 : index
    %c0_172 = arith.constant 0 : index
    %450 = vector.load %arg8[%c0_171, %c0_172] : memref<8x128xf32, #tpu.memory_space<vmem>>, vector<8x128xf32>
    tpu.vector_store %arg8[%c0_171, %c0_172], %449 {strides = array<i32>} : memref<8x128xf32, #tpu.memory_space<vmem>>, vector<8x128xf32>,
    return
  }
}

</mosaic_0001>

<llo_original>
// kernel: tpu_custom_call.1
$region0: #{tpu_custom_call.1}
  #allocation0 [shape = 'u32[]', space=smem, size = 0x4, offset = 0x4, fixed_abs, tag = 'smem constant byte address 0x4 - core index']
  #allocation1 [shape = 'u32[144,128]{1,0:T(1,128)}', space=vmem, size = 0x12000, scoped, tag = 'internal scratch']
  #allocation2 [shape = 'bf16[256,512]{1,0:T(16,128)(2,1)}', space=vmem, size = 0x40000, scoped, tag = 'scratch operand']
  #allocation3 [shape = 'f32[8,128]{1,0:T(8,128)}', space=vmem, size = 0x1000, scoped, tag = 'scratch operand']
  #allocation4 [shape = 's32[1]{0}', space=sflag, size = 0x4, scoped, tag = 'scratch operand']
  #allocation14 [shape = 's32[]', space=sflag, size = 0x4, offset = 0, fixed_abs, tag = 'sflag constant byte address 0x0 - dummy sync flag']
  %s0 = inlined_call_operand.hbm [shape: f32[1,64], index: 0, kind: input, shape index: {}]
  %s1 = inlined_call_operand.hbm [shape: bf16[64,512], index: 1, kind: input, shape index: {}]
  %s2 = inlined_call_operand.hbm [shape: bf16[128,512], index: 2, kind: input, shape index: {}]
  %s3 = inlined_call_operand.vmem [shape: f32[1,512], index: 3, kind: input, shape index: {}]
  %s4 = inlined_call_operand.hbm [shape: bf16[256,512], index: 4, kind: input, shape index: {}]
  %s5 = inlined_call_operand.vmem [shape: f32[1,512], index: 5, kind: input, shape index: {}]
  %s6 = inlined_call_operand.hbm [shape: bf16[128,128], index: 6, kind: input, shape index: {}]
  %s7 = inlined_call_operand.vmem [shape: f32[1,128], index: 7, kind: input, shape index: {}]
  %s8 = inlined_call_operand.hbm [shape: f32[8,128], index: 8, kind: output, shape index: {}]
  %s9 = sld [smem:[#allocation0]]
  $region54: #{tpu_custom_call.1} parent=0
    _
  %s11 = ssub.s32 1, %s9
  %s12 = scalar_select 0, %s11, %s9
  $region1: #{tpu_custom_call.1} parent=0
    #allocation5 [shape = 'u8[512]{0}', space=vmem, size = 0x400, scoped, tag = 'input window, operand 0, single buffered']
    #allocation6 [shape = 's32[1]{0}', space=sflag, size = 0x4, scoped, tag = 'scoped memory for tpu_custom_call.1']
    #allocation7 [shape = 's32[1]{0}', space=sflag, size = 0x4, scoped, tag = 'scoped memory for tpu_custom_call.1']
    #allocation8 [shape = 'u8[65536]{0}', space=vmem, size = 0x10000, scoped, tag = 'input window, operand 1, single buffered']
    #allocation9 [shape = 's32[1]{0}', space=sflag, size = 0x4, scoped, tag = 'scoped memory for tpu_custom_call.1']
    #allocation10 [shape = 'u8[131072]{0}', space=vmem, size = 0x20000, scoped, tag = 'input window, operand 2, single buffered']
    #allocation11 [shape = 'u8[32768]{0}', space=vmem, size = 0x8000, scoped, tag = 'input window, operand 6, single buffered']
    #allocation12 [shape = 's32[1]{0}', space=sflag, size = 0x4, scoped, tag = 'scoped memory for tpu_custom_call.1']
    #allocation13 [shape = 'u8[4096]{0}', space=vmem, size = 0x1000, scoped, tag = 'output window, operand 0, single buffered']
    #allocation15 [shape = 'u32[9]{0}', space=smem, size = 0x24, scoped, tag = 'DMA stride descriptor']
    %13 = vsyncpa [#allocation6], 0
    %14 = vsyncpa [#allocation9], 0
    %15 = vsyncpa [#allocation12], 0
    %16 = vsyncpa [#allocation7], 0
    // Predicated region
    $region2: #{tpu_custom_call.1} parent=1 // pred_check
      _
    $region3: #{tpu_custom_call.1} parent=1 // pred_check_branch
      %18 = sbr.rel (0) target = $region5
    $region4: #{tpu_custom_call.1} parent=1 // pred_region
      %s20 = ssub.s32 16, 16
      %21 = vsyncadd [#allocation6], %s20
      %s23 = sshll.u32 [#allocation5], 4
      %s24 = int_to_ptr.vmem [resolvable:$true] %s23
      %26 = dma.hbm_to_vmem [thread:$0]  %s0, 16, %s24, [#allocation6]
    $region5: #{tpu_custom_call.1} parent=1 // pred_fallthru
      _
    // Predicated region
    $region6: #{tpu_custom_call.1} parent=1 // pred_check
      _
    $region7: #{tpu_custom_call.1} parent=1 // pred_check_branch
      %28 = sbr.rel (0) target = $region9
    $region8: #{tpu_custom_call.1} parent=1 // pred_region
      %s30 = ssub.s32 2048, 2048
      %31 = vsyncadd [#allocation9], %s30
      %s32 = sshll.u32 [#allocation8], 4
      %s33 = int_to_ptr.vmem [resolvable:$true] %s32
      %38 = dma.hbm_to_vmem [thread:$0]  %s1, 2048, %s33, [#allocation9], 256, 256, 16
    $region9: #{tpu_custom_call.1} parent=1 // pred_fallthru
      _
    // Predicated region
    $region10: #{tpu_custom_call.1} parent=1 // pred_check
      _
    $region11: #{tpu_custom_call.1} parent=1 // pred_check_branch
      %40 = sbr.rel (0) target = $region13
    $region12: #{tpu_custom_call.1} parent=1 // pred_region
      %s42 = ssub.s32 4096, 4096
      %43 = vsyncadd [#allocation9], %s42
      %s44 = sshll.u32 [#allocation10], 4
      %s45 = int_to_ptr.vmem [resolvable:$true] %s44
      %50 = dma.hbm_to_vmem [thread:$0]  %s2, 4096, %s45, [#allocation9], 256, 256, 16
    $region13: #{tpu_custom_call.1} parent=1 // pred_fallthru
      _
    // Predicated region
    $region14: #{tpu_custom_call.1} parent=1 // pred_check
      _
    $region15: #{tpu_custom_call.1} parent=1 // pred_check_branch
      %52 = sbr.rel (0) target = $region17
    $region16: #{tpu_custom_call.1} parent=1 // pred_region
      _
    $region17: #{tpu_custom_call.1} parent=1 // pred_fallthru
      _
    // Predicated region
    $region18: #{tpu_custom_call.1} parent=1 // pred_check
      _
    $region19: #{tpu_custom_call.1} parent=1 // pred_check_branch
      %54 = sbr.rel (0) target = $region21
    $region20: #{tpu_custom_call.1} parent=1 // pred_region
      _
    $region21: #{tpu_custom_call.1} parent=1 // pred_fallthru
      _
    // Predicated region
    $region22: #{tpu_custom_call.1} parent=1 // pred_check
      _
    $region23: #{tpu_custom_call.1} parent=1 // pred_check_branch
      %56 = sbr.rel (0) target = $region25
    $region24: #{tpu_custom_call.1} parent=1 // pred_region
      %s58 = ssub.s32 1024, 1024
      %59 = vsyncadd [#allocation12], %s58
      %s60 = sshll.u32 [#allocation11], 4
      %s61 = int_to_ptr.vmem [resolvable:$true] %s60
      %66 = dma.hbm_to_vmem [thread:$0]  %s6, 1024, %s61, [#allocation12], 64, 64, 4
    $region25: #{tpu_custom_call.1} parent=1 // pred_fallthru
      _
    // Predicated region
    $region26: #{tpu_custom_call.1} parent=1 // pred_check
      _
    $region27: #{tpu_custom_call.1} parent=1 // pred_check_branch
      %68 = sbr.rel (0) target = $region29
    $region28: #{tpu_custom_call.1} parent=1 // pred_region
      _
    $region29: #{tpu_custom_call.1} parent=1 // pred_fallthru
      _
    // Predicated region
    $region30: #{tpu_custom_call.1} parent=1 // pred_check
      _
    $region31: #{tpu_custom_call.1} parent=1 // pred_check_branch
      %70 = sbr.rel (0) target = $region33
    $region32: #{tpu_custom_call.1} parent=1 // pred_region
      %71 = dma.done [#allocation6], 16
    $region33: #{tpu_custom_call.1} parent=1 // pred_fallthru
      _
    // Predicated region
    $region34: #{tpu_custom_call.1} parent=1 // pred_check
      _
    $region35: #{tpu_custom_call.1} parent=1 // pred_check_branch
      %73 = sbr.rel (0) target = $region37
    $region36: #{tpu_custom_call.1} parent=1 // pred_region
      %74 = dma.done [#allocation9], 2048
    $region37: #{tpu_custom_call.1} parent=1 // pred_fallthru
      _
    // Predicated region
    $region38: #{tpu_custom_call.1} parent=1 // pred_check
      _
    $region39: #{tpu_custom_call.1} parent=1 // pred_check_branch
      %76 = sbr.rel (0) target = $region41
    $region40: #{tpu_custom_call.1} parent=1 // pred_region
      %77 = dma.done [#allocation9], 4096
    $region41: #{tpu_custom_call.1} parent=1 // pred_fallthru
      _
    // Predicated region
    $region42: #{tpu_custom_call.1} parent=1 // pred_check
      _
    $region43: #{tpu_custom_call.1} parent=1 // pred_check_branch
      %79 = sbr.rel (0) target = $region45
    $region44: #{tpu_custom_call.1} parent=1 // pred_region
      %80 = dma.done [#allocation12], 1024
    $region45: #{tpu_custom_call.1} parent=1 // pred_fallthru
      _
    %s83 = sshll.u32 1, 14
    %s84 = sxor.u32 4294967295, %s83
    %s86 = sld [smem:[#allocation0]]
    %s87 = sadd.s32 2, %s86
    %s89 = sshll.u32 7, 26
    %s90 = sxor.u32 4294967295, %s89
    %s91 = sand.u32 0, %s90
    %s92 = sshll.u32 %s87, 26
    %s93 = sor.u32 %s91, %s92
    %s94 = sshll.u32 [#allocation2], 4
    %s95 = int_to_ptr.vmem [resolvable:$true] %s94
    %98 = sst [smem:[#allocation15]] 512
    %s99 = scalar_lea.smem [#allocation15], 1
    %100 = sst [smem:[%s99]] 512
    %s101 = scalar_lea.smem [#allocation15], 2
    %102 = sst [smem:[%s101]] 4
    %s103 = scalar_lea.smem [#allocation15], 3
    %104 = sst [smem:[%s103]] 64
    %s105 = scalar_lea.smem [#allocation15], 4
    %106 = sst [smem:[%s105]] 128
    %s107 = scalar_lea.smem [#allocation15], 5
    %108 = sst [smem:[%s107]] 2
    %s109 = scalar_lea.smem [#allocation15], 6
    %110 = sst [smem:[%s109]] 256
    %s111 = scalar_lea.smem [#allocation15], 7
    %112 = sst [smem:[%s111]] 64
    %s113 = scalar_lea.smem [#allocation15], 8
    %114 = sst [smem:[%s113]] 4
    %116 = dma.general %s4, 8192, %s95, [#allocation4], [#allocation14], [#allocation15], %s93, 0
    %v117 = vld [vmem:[#allocation5] sm:$0x1]
    %v118 = vpack.c.bf16 %v117, %v117
    %v119 = vld [vmem:[#allocation8] sm:$0xff]
    %v120 = vld [vmem:[#allocation8 + $0x8] sm:$0xff]
    %v121 = vld [vmem:[#allocation8 + $0x10] sm:$0xff]
    %v122 = vld [vmem:[#allocation8 + $0x18] sm:$0xff]
    %v123 = vld [vmem:[#allocation8 + $0x20] sm:$0xff]
    %v124 = vld [vmem:[#allocation8 + $0x28] sm:$0xff]
    %v125 = vld [vmem:[#allocation8 + $0x30] sm:$0xff]
    %v126 = vld [vmem:[#allocation8 + $0x38] sm:$0xff]
    %v127 = vld [vmem:[#allocation8 + $0x40] sm:$0xff]
    %v128 = vld [vmem:[#allocation8 + $0x48] sm:$0xff]
    %v129 = vld [vmem:[#allocation8 + $0x50] sm:$0xff]
    %v130 = vld [vmem:[#allocation8 + $0x58] sm:$0xff]
    %v131 = vld [vmem:[#allocation8 + $0x60] sm:$0xff]
    %v132 = vld [vmem:[#allocation8 + $0x68] sm:$0xff]
    %v133 = vld [vmem:[#allocation8 + $0x70] sm:$0xff]
    %v134 = vld [vmem:[#allocation8 + $0x78] sm:$0xff]
    %v135 = vld [vmem:[%s3] sm:$0xf]
    %v152 = vunpack.c.l.b16 %v119
    %v153 = vunpack.c.h.b16 %v119
    %v154 = vunpack.c.l.b16 %v120
    %v155 = vunpack.c.h.b16 %v120
    %v156 = vunpack.c.l.b16 %v121
    %v157 = vunpack.c.h.b16 %v121
    %v158 = vunpack.c.l.b16 %v122
    %v159 = vunpack.c.h.b16 %v122
    %v160 = vunpack.c.l.b16 %v123
    %v161 = vunpack.c.h.b16 %v123
    %v162 = vunpack.c.l.b16 %v124
    %v163 = vunpack.c.h.b16 %v124
    %v164 = vunpack.c.l.b16 %v125
    %v165 = vunpack.c.h.b16 %v125
    %v166 = vunpack.c.l.b16 %v126
    %v167 = vunpack.c.h.b16 %v126
    %v168 = vunpack.c.l.b16 %v127
    %v169 = vunpack.c.h.b16 %v127
    %v170 = vunpack.c.l.b16 %v128
    %v171 = vunpack.c.h.b16 %v128
    %v172 = vunpack.c.l.b16 %v129
    %v173 = vunpack.c.h.b16 %v129
    %v174 = vunpack.c.l.b16 %v130
    %v175 = vunpack.c.h.b16 %v130
    %v176 = vunpack.c.l.b16 %v131
    %v177 = vunpack.c.h.b16 %v131
    %v178 = vunpack.c.l.b16 %v132
    %v179 = vunpack.c.h.b16 %v132
    %v180 = vunpack.c.l.b16 %v133
    %v181 = vunpack.c.h.b16 %v133
    %v182 = vunpack.c.l.b16 %v134
    %v183 = vunpack.c.h.b16 %v134
    %v184 = vpack.c.b16 %v156, %v152
    %v185 = vpack.c.b16 %v157, %v153
    %v186 = vpack.c.b16 %v158, %v154
    %v187 = vpack.c.b16 %v159, %v155
    %v188 = vpack.c.b16 %v164, %v160
    %v189 = vpack.c.b16 %v165, %v161
    %v190 = vpack.c.b16 %v166, %v162
    %v191 = vpack.c.b16 %v167, %v163
    %v192 = vpack.c.b16 %v172, %v168
    %v193 = vpack.c.b16 %v173, %v169
    %v194 = vpack.c.b16 %v174, %v170
    %v195 = vpack.c.b16 %v175, %v171
    %v196 = vpack.c.b16 %v180, %v176
    %v197 = vpack.c.b16 %v181, %v177
    %v198 = vpack.c.b16 %v182, %v178
    %v199 = vpack.c.b16 %v183, %v179
    %v217 = vlaneseq
    %v218 = vshrl.u32 %v217, 7
    %v219 = vsub.s32 0, %v218
    %v220 = vrot.slane %v135, %v219
    %v221 = vlaneseq
    %v222 = vshrl.u32 %v221, 7
    %v223 = vsub.s32 1, %v222
    %v224 = vrot.slane %v135, %v223
    %v225 = vlaneseq
    %v226 = vshrl.u32 %v225, 7
    %v227 = vsub.s32 2, %v226
    %v228 = vrot.slane %v135, %v227
    %v229 = vlaneseq
    %v230 = vshrl.u32 %v229, 7
    %v231 = vsub.s32 3, %v230
    %v232 = vrot.slane %v135, %v231
    %vm237 = vcmask 523264
    %v239 = vsel %vm237, %v118, 0
    %241 = vmatprep.subr.bf16.mxu0 %v185
    %242 = vmatpush1.bf16.msra.mxu0 %v184
    %243 = vmatprep.subr.bf16.mxu0 %v189
    %244 = vmatpush1.bf16.msra.mxu0 %v188
    %245 = vmatprep.subr.bf16.mxu0 %v193
    %246 = vmatpush1.bf16.msra.mxu0 %v192
    %247 = vmatprep.subr.bf16.mxu0 %v197
    %248 = vmatpush1.bf16.msra.mxu0 %v196
    %249 = vmatprep.subr.bf16.mxu0 0
    %250 = vmatpush1.bf16.msra.mxu0 0
    %251 = vmatprep.subr.bf16.mxu0 0
    %252 = vmatpush1.bf16.msra.mxu0 0
    %253 = vmatprep.subr.bf16.mxu0 0
    %254 = vmatpush1.bf16.msra.mxu0 0
    %255 = vmatprep.subr.bf16.mxu0 0
    %256 = vmatpush1.bf16.msra.mxu0 0
    %257 = vmatprep.subr.bf16.mxu0 0
    %258 = vmatpush1.bf16.msra.mxu0 0
    %259 = vmatprep.subr.bf16.mxu0 0
    %260 = vmatpush1.bf16.msra.mxu0 0
    %261 = vmatprep.subr.bf16.mxu0 0
    %262 = vmatpush1.bf16.msra.mxu0 0
    %263 = vmatprep.subr.bf16.mxu0 0
    %264 = vmatpush1.bf16.msra.mxu0 0
    %265 = vmatprep.subr.bf16.mxu0 0
    %266 = vmatpush1.bf16.msra.mxu0 0
    %267 = vmatprep.subr.bf16.mxu0 0
    %268 = vmatpush1.bf16.msra.mxu0 0
    %269 = vmatprep.subr.bf16.mxu0 0
    %270 = vmatpush1.bf16.msra.mxu0 0
    %271 = vmatprep.subr.bf16.mxu0 0
    %272 = vmatpush1.bf16.msra.mxu0 0
    %273 = vmatprep.mubr.bf16.mxu0 0
    %274 = vmatmul.mubr.bf16.gmra.mrb[0].mxu0 %v239
    %v275 = vpop.f32.mrb[0].mxu0
    %v276 = vadd.f32 %v220, %v275
    %v277 = vpop.f32.mrb[0].mxu0
    %v278 = vadd.f32 %v224, %v277
    %v279 = vpop.f32.mrb[0].mxu0
    %v280 = vpop.f32.mrb[0].mxu0
    %281 = vdwg.mxu0
    %282 = vmatprep.subr.bf16.mxu0 %v187
    %283 = vmatpush1.bf16.msra.mxu0 %v186
    %284 = vmatprep.subr.bf16.mxu0 %v191
    %285 = vmatpush1.bf16.msra.mxu0 %v190
    %286 = vmatprep.subr.bf16.mxu0 %v195
    %287 = vmatpush1.bf16.msra.mxu0 %v194
    %288 = vmatprep.subr.bf16.mxu0 %v199
    %289 = vmatpush1.bf16.msra.mxu0 %v198
    %290 = vmatprep.subr.bf16.mxu0 0
    %291 = vmatpush1.bf16.msra.mxu0 0
    %292 = vmatprep.subr.bf16.mxu0 0
    %293 = vmatpush1.bf16.msra.mxu0 0
    %294 = vmatprep.subr.bf16.mxu0 0
    %295 = vmatpush1.bf16.msra.mxu0 0
    %296 = vmatprep.subr.bf16.mxu0 0
    %297 = vmatpush1.bf16.msra.mxu0 0
    %298 = vmatprep.subr.bf16.mxu0 0
    %299 = vmatpush1.bf16.msra.mxu0 0
    %300 = vmatprep.subr.bf16.mxu0 0
    %301 = vmatpush1.bf16.msra.mxu0 0
    %302 = vmatprep.subr.bf16.mxu0 0
    %303 = vmatpush1.bf16.msra.mxu0 0
    %304 = vmatprep.subr.bf16.mxu0 0
    %305 = vmatpush1.bf16.msra.mxu0 0
    %306 = vmatprep.subr.bf16.mxu0 0
    %307 = vmatpush1.bf16.msra.mxu0 0
    %308 = vmatprep.subr.bf16.mxu0 0
    %309 = vmatpush1.bf16.msra.mxu0 0
    %310 = vmatprep.subr.bf16.mxu0 0
    %311 = vmatpush1.bf16.msra.mxu0 0
    %312 = vmatprep.subr.bf16.mxu0 0
    %313 = vmatpush1.bf16.msra.mxu0 0
    %314 = vmatprep.mubr.bf16.mxu0 0
    %315 = vmatmul.mubr.bf16.gmra.mrb[0].mxu0 %v239
    %v316 = vpop.f32.mrb[0].mxu0
    %v317 = vadd.f32 %v228, %v316
    %v318 = vpop.f32.mrb[0].mxu0
    %v319 = vadd.f32 %v232, %v318
    %v320 = vpop.f32.mrb[0].mxu0
    %v321 = vpop.f32.mrb[0].mxu0
    %322 = vdwg.mxu0
    %v323 = vld [vmem:[%s5] sm:$0xf]
    %v324 = vld [vmem:[#allocation10] sm:$0xff]
    %v325 = vld [vmem:[#allocation10 + $0x8] sm:$0xff]
    %v326 = vld [vmem:[#allocation10 + $0x10] sm:$0xff]
    %v327 = vld [vmem:[#allocation10 + $0x18] sm:$0xff]
    %v328 = vld [vmem:[#allocation10 + $0x20] sm:$0xff]
    %v329 = vld [vmem:[#allocation10 + $0x28] sm:$0xff]
    %v330 = vld [vmem:[#allocation10 + $0x30] sm:$0xff]
    %v331 = vld [vmem:[#allocation10 + $0x38] sm:$0xff]
    %v332 = vld [vmem:[#allocation10 + $0x40] sm:$0xff]
    %v333 = vld [vmem:[#allocation10 + $0x48] sm:$0xff]
    %v334 = vld [vmem:[#allocation10 + $0x50] sm:$0xff]
    %v335 = vld [vmem:[#allocation10 + $0x58] sm:$0xff]
    %v336 = vld [vmem:[#allocation10 + $0x60] sm:$0xff]
    %v337 = vld [vmem:[#allocation10 + $0x68] sm:$0xff]
    %v338 = vld [vmem:[#allocation10 + $0x70] sm:$0xff]
    %v339 = vld [vmem:[#allocation10 + $0x78] sm:$0xff]
    %v340 = vld [vmem:[#allocation10 + $0x80] sm:$0xff]
    %v341 = vld [vmem:[#allocation10 + $0x88] sm:$0xff]
    %v342 = vld [vmem:[#allocation10 + $0x90] sm:$0xff]
    %v343 = vld [vmem:[#allocation10 + $0x98] sm:$0xff]
    %v344 = vld [vmem:[#allocation10 + $0xa0] sm:$0xff]
    %v345 = vld [vmem:[#allocation10 + $0xa8] sm:$0xff]
    %v346 = vld [vmem:[#allocation10 + $0xb0] sm:$0xff]
    %v347 = vld [vmem:[#allocation10 + $0xb8] sm:$0xff]
    %v348 = vld [vmem:[#allocation10 + $0xc0] sm:$0xff]
    %v349 = vld [vmem:[#allocation10 + $0xc8] sm:$0xff]
    %v350 = vld [vmem:[#allocation10 + $0xd0] sm:$0xff]
    %v351 = vld [vmem:[#allocation10 + $0xd8] sm:$0xff]
    %v352 = vld [vmem:[#allocation10 + $0xe0] sm:$0xff]
    %v353 = vld [vmem:[#allocation10 + $0xe8] sm:$0xff]
    %v354 = vld [vmem:[#allocation10 + $0xf0] sm:$0xff]
    %v355 = vld [vmem:[#allocation10 + $0xf8] sm:$0xff]
    %v388 = vunpack.c.l.b16 %v324
    %v389 = vunpack.c.h.b16 %v324
    %v390 = vunpack.c.l.b16 %v325
    %v391 = vunpack.c.h.b16 %v325
    %v392 = vunpack.c.l.b16 %v326
    %v393 = vunpack.c.h.b16 %v326
    %v394 = vunpack.c.l.b16 %v327
    %v395 = vunpack.c.h.b16 %v327
    %v396 = vunpack.c.l.b16 %v328
    %v397 = vunpack.c.h.b16 %v328
    %v398 = vunpack.c.l.b16 %v329
    %v399 = vunpack.c.h.b16 %v329
    %v400 = vunpack.c.l.b16 %v330
    %v401 = vunpack.c.h.b16 %v330
    %v402 = vunpack.c.l.b16 %v331
    %v403 = vunpack.c.h.b16 %v331
    %v404 = vunpack.c.l.b16 %v332
    %v405 = vunpack.c.h.b16 %v332
    %v406 = vunpack.c.l.b16 %v333
    %v407 = vunpack.c.h.b16 %v333
    %v408 = vunpack.c.l.b16 %v334
    %v409 = vunpack.c.h.b16 %v334
    %v410 = vunpack.c.l.b16 %v335
    %v411 = vunpack.c.h.b16 %v335
    %v412 = vunpack.c.l.b16 %v336
    %v413 = vunpack.c.h.b16 %v336
    %v414 = vunpack.c.l.b16 %v337
    %v415 = vunpack.c.h.b16 %v337
    %v416 = vunpack.c.l.b16 %v338
    %v417 = vunpack.c.h.b16 %v338
    %v418 = vunpack.c.l.b16 %v339
    %v419 = vunpack.c.h.b16 %v339
    %v420 = vunpack.c.l.b16 %v340
    %v421 = vunpack.c.h.b16 %v340
    %v422 = vunpack.c.l.b16 %v341
    %v423 = vunpack.c.h.b16 %v341
    %v424 = vunpack.c.l.b16 %v342
    %v425 = vunpack.c.h.b16 %v342
    %v426 = vunpack.c.l.b16 %v343
    %v427 = vunpack.c.h.b16 %v343
    %v428 = vunpack.c.l.b16 %v344
    %v429 = vunpack.c.h.b16 %v344
    %v430 = vunpack.c.l.b16 %v345
    %v431 = vunpack.c.h.b16 %v345
    %v432 = vunpack.c.l.b16 %v346
    %v433 = vunpack.c.h.b16 %v346
    %v434 = vunpack.c.l.b16 %v347
    %v435 = vunpack.c.h.b16 %v347
    %v436 = vunpack.c.l.b16 %v348
    %v437 = vunpack.c.h.b16 %v348
    %v438 = vunpack.c.l.b16 %v349
    %v439 = vunpack.c.h.b16 %v349
    %v440 = vunpack.c.l.b16 %v350
    %v441 = vunpack.c.h.b16 %v350
    %v442 = vunpack.c.l.b16 %v351
    %v443 = vunpack.c.h.b16 %v351
    %v444 = vunpack.c.l.b16 %v352
    %v445 = vunpack.c.h.b16 %v352
    %v446 = vunpack.c.l.b16 %v353
    %v447 = vunpack.c.h.b16 %v353
    %v448 = vunpack.c.l.b16 %v354
    %v449 = vunpack.c.h.b16 %v354
    %v450 = vunpack.c.l.b16 %v355
    %v451 = vunpack.c.h.b16 %v355
    %v452 = vpack.c.b16 %v392, %v388
    %v453 = vpack.c.b16 %v393, %v389
    %v454 = vpack.c.b16 %v394, %v390
    %v455 = vpack.c.b16 %v395, %v391
    %v456 = vpack.c.b16 %v400, %v396
    %v457 = vpack.c.b16 %v401, %v397
    %v458 = vpack.c.b16 %v402, %v398
    %v459 = vpack.c.b16 %v403, %v399
    %v460 = vpack.c.b16 %v408, %v404
    %v461 = vpack.c.b16 %v409, %v405
    %v462 = vpack.c.b16 %v410, %v406
    %v463 = vpack.c.b16 %v411, %v407
    %v464 = vpack.c.b16 %v416, %v412
    %v465 = vpack.c.b16 %v417, %v413
    %v466 = vpack.c.b16 %v418, %v414
    %v467 = vpack.c.b16 %v419, %v415
    %v468 = vpack.c.b16 %v424, %v420
    %v469 = vpack.c.b16 %v425, %v421
    %v470 = vpack.c.b16 %v426, %v422
    %v471 = vpack.c.b16 %v427, %v423
    %v472 = vpack.c.b16 %v432, %v428
    %v473 = vpack.c.b16 %v433, %v429
    %v474 = vpack.c.b16 %v434, %v430
    %v475 = vpack.c.b16 %v435, %v431
    %v476 = vpack.c.b16 %v440, %v436
    %v477 = vpack.c.b16 %v441, %v437
    %v478 = vpack.c.b16 %v442, %v438
    %v479 = vpack.c.b16 %v443, %v439
    %v480 = vpack.c.b16 %v448, %v444
    %v481 = vpack.c.b16 %v449, %v445
    %v482 = vpack.c.b16 %v450, %v446
    %v483 = vpack.c.b16 %v451, %v447
    %516 = vmatprep.subr.bf16.mxu0 %v453
    %517 = vmatpush1.bf16.msra.mxu0 %v452
    %518 = vmatprep.subr.bf16.mxu0 %v457
    %519 = vmatpush1.bf16.msra.mxu0 %v456
    %520 = vmatprep.subr.bf16.mxu0 %v461
    %521 = vmatpush1.bf16.msra.mxu0 %v460
    %522 = vmatprep.subr.bf16.mxu0 %v465
    %523 = vmatpush1.bf16.msra.mxu0 %v464
    %524 = vmatprep.subr.bf16.mxu0 %v469
    %525 = vmatpush1.bf16.msra.mxu0 %v468
    %526 = vmatprep.subr.bf16.mxu0 %v473
    %527 = vmatpush1.bf16.msra.mxu0 %v472
    %528 = vmatprep.subr.bf16.mxu0 %v477
    %529 = vmatpush1.bf16.msra.mxu0 %v476
    %530 = vmatprep.subr.bf16.mxu0 %v481
    %531 = vmatpush1.bf16.msra.mxu0 %v480
    %532 = vmatprep.subr.bf16.mxu0 0
    %533 = vmatpush1.bf16.msra.mxu0 0
    %534 = vmatprep.subr.bf16.mxu0 0
    %535 = vmatpush1.bf16.msra.mxu0 0
    %536 = vmatprep.subr.bf16.mxu0 0
    %537 = vmatpush1.bf16.msra.mxu0 0
    %538 = vmatprep.subr.bf16.mxu0 0
    %539 = vmatpush1.bf16.msra.mxu0 0
    %540 = vmatprep.subr.bf16.mxu0 0
    %541 = vmatpush1.bf16.msra.mxu0 0
    %542 = vmatprep.subr.bf16.mxu0 0
    %543 = vmatpush1.bf16.msra.mxu0 0
    %544 = vmatprep.subr.bf16.mxu0 0
    %545 = vmatpush1.bf16.msra.mxu0 0
    %546 = vmatprep.subr.bf16.mxu0 0
    %547 = vmatpush1.bf16.msra.mxu0 0
    %548 = vmatprep.mubr.bf16.mxu0 0
    %549 = vmatmul.mubr.bf16.gmra.mrb[0].mxu0 0
    %v550 = vpop.f32.mrb[0].mxu0
    %v551 = vadd.f32 0.0, %v550
    %v552 = vpop.f32.mrb[0].mxu0
    %v553 = vadd.f32 0.0, %v552
    %v554 = vpop.f32.mrb[0].mxu0
    %v555 = vpop.f32.mrb[0].mxu0
    %556 = vdwg.mxu0
    %557 = vmatprep.subr.bf16.mxu0 %v455
    %558 = vmatpush1.bf16.msra.mxu0 %v454
    %559 = vmatprep.subr.bf16.mxu0 %v459
    %560 = vmatpush1.bf16.msra.mxu0 %v458
    %561 = vmatprep.subr.bf16.mxu0 %v463
    %562 = vmatpush1.bf16.msra.mxu0 %v462
    %563 = vmatprep.subr.bf16.mxu0 %v467
    %564 = vmatpush1.bf16.msra.mxu0 %v466
    %565 = vmatprep.subr.bf16.mxu0 %v471
    %566 = vmatpush1.bf16.msra.mxu0 %v470
    %567 = vmatprep.subr.bf16.mxu0 %v475
    %568 = vmatpush1.bf16.msra.mxu0 %v474
    %569 = vmatprep.subr.bf16.mxu0 %v479
    %570 = vmatpush1.bf16.msra.mxu0 %v478
    %571 = vmatprep.subr.bf16.mxu0 %v483
    %572 = vmatpush1.bf16.msra.mxu0 %v482
    %573 = vmatprep.subr.bf16.mxu0 0
    %574 = vmatpush1.bf16.msra.mxu0 0
    %575 = vmatprep.subr.bf16.mxu0 0
    %576 = vmatpush1.bf16.msra.mxu0 0
    %577 = vmatprep.subr.bf16.mxu0 0
    %578 = vmatpush1.bf16.msra.mxu0 0
    %579 = vmatprep.subr.bf16.mxu0 0
    %580 = vmatpush1.bf16.msra.mxu0 0
    %581 = vmatprep.subr.bf16.mxu0 0
    %582 = vmatpush1.bf16.msra.mxu0 0
    %583 = vmatprep.subr.bf16.mxu0 0
    %584 = vmatpush1.bf16.msra.mxu0 0
    %585 = vmatprep.subr.bf16.mxu0 0
    %586 = vmatpush1.bf16.msra.mxu0 0
    %587 = vmatprep.subr.bf16.mxu0 0
    %588 = vmatpush1.bf16.msra.mxu0 0
    %589 = vmatprep.mubr.bf16.mxu0 0
    %590 = vmatmul.mubr.bf16.gmra.mrb[0].mxu0 0
    %v591 = vpop.f32.mrb[0].mxu0
    %v592 = vadd.f32 0.0, %v591
    %v593 = vpop.f32.mrb[0].mxu0
    %v594 = vadd.f32 0.0, %v593
    %v595 = vpop.f32.mrb[0].mxu0
    %v596 = vpop.f32.mrb[0].mxu0
    %597 = vdwg.mxu0
    %v598 = vadd.f32 %v276, %v551
    %v599 = vadd.f32 %v278, %v553
    %v600 = vadd.f32 %v317, %v592
    %v601 = vadd.f32 %v319, %v594
    %v602 = vtanh.pop %v598
    %v603 = vtanh.pop %v599
    %v604 = vtanh.pop %v600
    %v605 = vtanh.pop %v601
    %v606 = vmul.f32 %v602, 0.5
    %v607 = vadd.f32 %v606, 0.5
    %v608 = vmul.f32 %v603, 0.5
    %v609 = vadd.f32 %v608, 0.5
    %v610 = vmul.f32 %v605, 0.5
    %v611 = vadd.f32 %v610, 0.5
    %v612 = vmul.f32 %v609, 0.0
    %v613 = vmul.f32 %v607, %v604
    %v614 = vadd.f32 %v612, %v613
    %v615 = vtanh.pop %v614
    %v616 = vmul.f32 %v611, %v615
    %s617 = smul.u32 4, 32
    %s618 = smul.u32 %s617, 4
    %s619 = sshll.u32 %s618, 4
    %620 = dma.done [#allocation4], %s619
    %v621 = vpack.c.bf16 %v616, %v616
    %v622 = vpack.c.bf16 0.0, 0.0
    %v623 = vld [vmem:[#allocation2] sm:$0xff]
    %v624 = vld [vmem:[#allocation2 + $0x8] sm:$0xff]
    %v625 = vld [vmem:[#allocation2 + $0x10] sm:$0xff]
    %v626 = vld [vmem:[#allocation2 + $0x18] sm:$0xff]
    %v627 = vld [vmem:[#allocation2 + $0x20] sm:$0xff]
    %v628 = vld [vmem:[#allocation2 + $0x28] sm:$0xff]
    %v629 = vld [vmem:[#allocation2 + $0x30] sm:$0xff]
    %v630 = vld [vmem:[#allocation2 + $0x38] sm:$0xff]
    %v631 = vld [vmem:[#allocation2 + $0x40] sm:$0xff]
    %v632 = vld [vmem:[#allocation2 + $0x48] sm:$0xff]
    %v633 = vld [vmem:[#allocation2 + $0x50] sm:$0xff]
    %v634 = vld [vmem:[#allocation2 + $0x58] sm:$0xff]
    %v635 = vld [vmem:[#allocation2 + $0x60] sm:$0xff]
    %v636 = vld [vmem:[#allocation2 + $0x68] sm:$0xff]
    %v637 = vld [vmem:[#allocation2 + $0x70] sm:$0xff]
    %v638 = vld [vmem:[#allocation2 + $0x78] sm:$0xff]
    %v639 = vld [vmem:[#allocation2 + $0x80] sm:$0xff]
    %v640 = vld [vmem:[#allocation2 + $0x88] sm:$0xff]
    %v641 = vld [vmem:[#allocation2 + $0x90] sm:$0xff]
    %v642 = vld [vmem:[#allocation2 + $0x98] sm:$0xff]
    %v643 = vld [vmem:[#allocation2 + $0xa0] sm:$0xff]
    %v644 = vld [vmem:[#allocation2 + $0xa8] sm:$0xff]
    %v645 = vld [vmem:[#allocation2 + $0xb0] sm:$0xff]
    %v646 = vld [vmem:[#allocation2 + $0xb8] sm:$0xff]
    %v647 = vld [vmem:[#allocation2 + $0xc0] sm:$0xff]
    %v648 = vld [vmem:[#allocation2 + $0xc8] sm:$0xff]
    %v649 = vld [vmem:[#allocation2 + $0xd0] sm:$0xff]
    %v650 = vld [vmem:[#allocation2 + $0xd8] sm:$0xff]
    %v651 = vld [vmem:[#allocation2 + $0xe0] sm:$0xff]
    %v652 = vld [vmem:[#allocation2 + $0xe8] sm:$0xff]
    %v653 = vld [vmem:[#allocation2 + $0xf0] sm:$0xff]
    %v654 = vld [vmem:[#allocation2 + $0xf8] sm:$0xff]
    %v655 = vld [vmem:[#allocation2 + $0x100] sm:$0xff]
    %v656 = vld [vmem:[#allocation2 + $0x108] sm:$0xff]
    %v657 = vld [vmem:[#allocation2 + $0x110] sm:$0xff]
    %v658 = vld [vmem:[#allocation2 + $0x118] sm:$0xff]
    %v659 = vld [vmem:[#allocation2 + $0x120] sm:$0xff]
    %v660 = vld [vmem:[#allocation2 + $0x128] sm:$0xff]
    %v661 = vld [vmem:[#allocation2 + $0x130] sm:$0xff]
    %v662 = vld [vmem:[#allocation2 + $0x138] sm:$0xff]
    %v663 = vld [vmem:[#allocation2 + $0x140] sm:$0xff]
    %v664 = vld [vmem:[#allocation2 + $0x148] sm:$0xff]
    %v665 = vld [vmem:[#allocation2 + $0x150] sm:$0xff]
    %v666 = vld [vmem:[#allocation2 + $0x158] sm:$0xff]
    %v667 = vld [vmem:[#allocation2 + $0x160] sm:$0xff]
    %v668 = vld [vmem:[#allocation2 + $0x168] sm:$0xff]
    %v669 = vld [vmem:[#allocation2 + $0x170] sm:$0xff]
    %v670 = vld [vmem:[#allocation2 + $0x178] sm:$0xff]
    %v671 = vld [vmem:[#allocation2 + $0x180] sm:$0xff]
    %v672 = vld [vmem:[#allocation2 + $0x188] sm:$0xff]
    %v673 = vld [vmem:[#allocation2 + $0x190] sm:$0xff]
    %v674 = vld [vmem:[#allocation2 + $0x198] sm:$0xff]
    %v675 = vld [vmem:[#allocation2 + $0x1a0] sm:$0xff]
    %v676 = vld [vmem:[#allocation2 + $0x1a8] sm:$0xff]
    %v677 = vld [vmem:[#allocation2 + $0x1b0] sm:$0xff]
    %v678 = vld [vmem:[#allocation2 + $0x1b8] sm:$0xff]
    %v679 = vld [vmem:[#allocation2 + $0x1c0] sm:$0xff]
    %v680 = vld [vmem:[#allocation2 + $0x1c8] sm:$0xff]
    %v681 = vld [vmem:[#allocation2 + $0x1d0] sm:$0xff]
    %v682 = vld [vmem:[#allocation2 + $0x1d8] sm:$0xff]
    %v683 = vld [vmem:[#allocation2 + $0x1e0] sm:$0xff]
    %v684 = vld [vmem:[#allocation2 + $0x1e8] sm:$0xff]
    %v685 = vld [vmem:[#allocation2 + $0x1f0] sm:$0xff]
    %v686 = vld [vmem:[#allocation2 + $0x1f8] sm:$0xff]
    %v688 = vlaneseq
    %v689 = vshrl.u32 %v688, 7
    %v690 = vsub.s32 0, %v689
    %v691 = vrot.slane %v323, %v690
    %v692 = vlaneseq
    %v693 = vshrl.u32 %v692, 7
    %v694 = vsub.s32 1, %v693
    %v695 = vrot.slane %v323, %v694
    %v696 = vlaneseq
    %v697 = vshrl.u32 %v696, 7
    %v698 = vsub.s32 2, %v697
    %v699 = vrot.slane %v323, %v698
    %v700 = vlaneseq
    %v701 = vshrl.u32 %v700, 7
    %v702 = vsub.s32 3, %v701
    %v703 = vrot.slane %v323, %v702
    %708 = vmatprep.subr.bf16.mxu0 %v624
    %709 = vmatpush1.bf16.msra.mxu0 %v623
    %710 = vmatprep.subr.bf16.mxu0 %v628
    %711 = vmatpush1.bf16.msra.mxu0 %v627
    %712 = vmatprep.subr.bf16.mxu0 %v632
    %713 = vmatpush1.bf16.msra.mxu0 %v631
    %714 = vmatprep.subr.bf16.mxu0 %v636
    %715 = vmatpush1.bf16.msra.mxu0 %v635
    %716 = vmatprep.subr.bf16.mxu0 %v640
    %717 = vmatpush1.bf16.msra.mxu0 %v639
    %718 = vmatprep.subr.bf16.mxu0 %v644
    %719 = vmatpush1.bf16.msra.mxu0 %v643
    %720 = vmatprep.subr.bf16.mxu0 %v648
    %721 = vmatpush1.bf16.msra.mxu0 %v647
    %722 = vmatprep.subr.bf16.mxu0 %v652
    %723 = vmatpush1.bf16.msra.mxu0 %v651
    %724 = vmatprep.subr.bf16.mxu0 %v656
    %725 = vmatpush1.bf16.msra.mxu0 %v655
    %726 = vmatprep.subr.bf16.mxu0 %v660
    %727 = vmatpush1.bf16.msra.mxu0 %v659
    %728 = vmatprep.subr.bf16.mxu0 %v664
    %729 = vmatpush1.bf16.msra.mxu0 %v663
    %730 = vmatprep.subr.bf16.mxu0 %v668
    %731 = vmatpush1.bf16.msra.mxu0 %v667
    %732 = vmatprep.subr.bf16.mxu0 %v672
    %733 = vmatpush1.bf16.msra.mxu0 %v671
    %734 = vmatprep.subr.bf16.mxu0 %v676
    %735 = vmatpush1.bf16.msra.mxu0 %v675
    %736 = vmatprep.subr.bf16.mxu0 %v680
    %737 = vmatpush1.bf16.msra.mxu0 %v679
    %738 = vmatprep.subr.bf16.mxu0 %v684
    %739 = vmatpush1.bf16.msra.mxu0 %v683
    %740 = vmatprep.mubr.bf16.mxu0 %v622
    %741 = vmatmul.mubr.bf16.gmra.mrb[0].mxu0 %v621
    %v742 = vpop.f32.mrb[0].mxu0
    %v743 = vadd.f32 %v691, %v742
    %v744 = vpop.f32.mrb[0].mxu0
    %v745 = vadd.f32 %v695, %v744
    %v746 = vpop.f32.mrb[0].mxu0
    %v747 = vpop.f32.mrb[0].mxu0
    %748 = vdwg.mxu0
    %749 = vmatprep.subr.bf16.mxu0 %v626
    %750 = vmatpush1.bf16.msra.mxu0 %v625
    %751 = vmatprep.subr.bf16.mxu0 %v630
    %752 = vmatpush1.bf16.msra.mxu0 %v629
    %753 = vmatprep.subr.bf16.mxu0 %v634
    %754 = vmatpush1.bf16.msra.mxu0 %v633
    %755 = vmatprep.subr.bf16.mxu0 %v638
    %756 = vmatpush1.bf16.msra.mxu0 %v637
    %757 = vmatprep.subr.bf16.mxu0 %v642
    %758 = vmatpush1.bf16.msra.mxu0 %v641
    %759 = vmatprep.subr.bf16.mxu0 %v646
    %760 = vmatpush1.bf16.msra.mxu0 %v645
    %761 = vmatprep.subr.bf16.mxu0 %v650
    %762 = vmatpush1.bf16.msra.mxu0 %v649
    %763 = vmatprep.subr.bf16.mxu0 %v654
    %764 = vmatpush1.bf16.msra.mxu0 %v653
    %765 = vmatprep.subr.bf16.mxu0 %v658
    %766 = vmatpush1.bf16.msra.mxu0 %v657
    %767 = vmatprep.subr.bf16.mxu0 %v662
    %768 = vmatpush1.bf16.msra.mxu0 %v661
    %769 = vmatprep.subr.bf16.mxu0 %v666
    %770 = vmatpush1.bf16.msra.mxu0 %v665
    %771 = vmatprep.subr.bf16.mxu0 %v670
    %772 = vmatpush1.bf16.msra.mxu0 %v669
    %773 = vmatprep.subr.bf16.mxu0 %v674
    %774 = vmatpush1.bf16.msra.mxu0 %v673
    %775 = vmatprep.subr.bf16.mxu0 %v678
    %776 = vmatpush1.bf16.msra.mxu0 %v677
    %777 = vmatprep.subr.bf16.mxu0 %v682
    %778 = vmatpush1.bf16.msra.mxu0 %v681
    %779 = vmatprep.subr.bf16.mxu0 %v686
    %780 = vmatpush1.bf16.msra.mxu0 %v685
    %781 = vmatprep.mubr.bf16.mxu0 %v622
    %782 = vmatmul.mubr.bf16.gmra.mrb[0].mxu0 %v621
    %v783 = vpop.f32.mrb[0].mxu0
    %v784 = vadd.f32 %v699, %v783
    %v785 = vpop.f32.mrb[0].mxu0
    %v786 = vadd.f32 %v703, %v785
    %v787 = vpop.f32.mrb[0].mxu0
    %v788 = vpop.f32.mrb[0].mxu0
    %789 = vdwg.mxu0
    %v790 = vtanh.pop %v743
    %v791 = vtanh.pop %v745
    %v792 = vtanh.pop %v784
    %v793 = vtanh.pop %v786
    %v794 = vmul.f32 %v790, 0.5
    %v795 = vadd.f32 %v794, 0.5
    %v796 = vmul.f32 %v791, 0.5
    %v797 = vadd.f32 %v796, 0.5
    %v798 = vmul.f32 %v793, 0.5
    %v799 = vadd.f32 %v798, 0.5
    %v800 = vmul.f32 %v797, 0.0
    %v801 = vmul.f32 %v795, %v792
    %v802 = vadd.f32 %v800, %v801
    %v803 = vtanh.pop %v802
    %v804 = vmul.f32 %v799, %v803
    %805 = vst [vmem:[#allocation3] sm:$0x1] %v804
    %v806 = vld [vmem:[#allocation10] sm:$0xff]
    %v807 = vld [vmem:[#allocation10 + $0x8] sm:$0xff]
    %v808 = vld [vmem:[#allocation10 + $0x10] sm:$0xff]
    %v809 = vld [vmem:[#allocation10 + $0x18] sm:$0xff]
    %v810 = vld [vmem:[#allocation10 + $0x20] sm:$0xff]
    %v811 = vld [vmem:[#allocation10 + $0x28] sm:$0xff]
    %v812 = vld [vmem:[#allocation10 + $0x30] sm:$0xff]
    %v813 = vld [vmem:[#allocation10 + $0x38] sm:$0xff]
    %v814 = vld [vmem:[#allocation10 + $0x40] sm:$0xff]
    %v815 = vld [vmem:[#allocation10 + $0x48] sm:$0xff]
    %v816 = vld [vmem:[#allocation10 + $0x50] sm:$0xff]
    %v817 = vld [vmem:[#allocation10 + $0x58] sm:$0xff]
    %v818 = vld [vmem:[#allocation10 + $0x60] sm:$0xff]
    %v819 = vld [vmem:[#allocation10 + $0x68] sm:$0xff]
    %v820 = vld [vmem:[#allocation10 + $0x70] sm:$0xff]
    %v821 = vld [vmem:[#allocation10 + $0x78] sm:$0xff]
    %v822 = vld [vmem:[#allocation10 + $0x80] sm:$0xff]
    %v823 = vld [vmem:[#allocation10 + $0x88] sm:$0xff]
    %v824 = vld [vmem:[#allocation10 + $0x90] sm:$0xff]
    %v825 = vld [vmem:[#allocation10 + $0x98] sm:$0xff]
    %v826 = vld [vmem:[#allocation10 + $0xa0] sm:$0xff]
    %v827 = vld [vmem:[#allocation10 + $0xa8] sm:$0xff]
    %v828 = vld [vmem:[#allocation10 + $0xb0] sm:$0xff]
    %v829 = vld [vmem:[#allocation10 + $0xb8] sm:$0xff]
    %v830 = vld [vmem:[#allocation10 + $0xc0] sm:$0xff]
    %v831 = vld [vmem:[#allocation10 + $0xc8] sm:$0xff]
    %v832 = vld [vmem:[#allocation10 + $0xd0] sm:$0xff]
    %v833 = vld [vmem:[#allocation10 + $0xd8] sm:$0xff]
    %v834 = vld [vmem:[#allocation10 + $0xe0] sm:$0xff]
    %v835 = vld [vmem:[#allocation10 + $0xe8] sm:$0xff]
    %v836 = vld [vmem:[#allocation10 + $0xf0] sm:$0xff]
    %v837 = vld [vmem:[#allocation10 + $0xf8] sm:$0xff]
    %v870 = vunpack.c.l.b16 %v806
    %v871 = vunpack.c.h.b16 %v806
    %v872 = vunpack.c.l.b16 %v807
    %v873 = vunpack.c.h.b16 %v807
    %v874 = vunpack.c.l.b16 %v808
    %v875 = vunpack.c.h.b16 %v808
    %v876 = vunpack.c.l.b16 %v809
    %v877 = vunpack.c.h.b16 %v809
    %v878 = vunpack.c.l.b16 %v810
    %v879 = vunpack.c.h.b16 %v810
    %v880 = vunpack.c.l.b16 %v811
    %v881 = vunpack.c.h.b16 %v811
    %v882 = vunpack.c.l.b16 %v812
    %v883 = vunpack.c.h.b16 %v812
    %v884 = vunpack.c.l.b16 %v813
    %v885 = vunpack.c.h.b16 %v813
    %v886 = vunpack.c.l.b16 %v814
    %v887 = vunpack.c.h.b16 %v814
    %v888 = vunpack.c.l.b16 %v815
    %v889 = vunpack.c.h.b16 %v815
    %v890 = vunpack.c.l.b16 %v816
    %v891 = vunpack.c.h.b16 %v816
    %v892 = vunpack.c.l.b16 %v817
    %v893 = vunpack.c.h.b16 %v817
    %v894 = vunpack.c.l.b16 %v818
    %v895 = vunpack.c.h.b16 %v818
    %v896 = vunpack.c.l.b16 %v819
    %v897 = vunpack.c.h.b16 %v819
    %v898 = vunpack.c.l.b16 %v820
    %v899 = vunpack.c.h.b16 %v820
    %v900 = vunpack.c.l.b16 %v821
    %v901 = vunpack.c.h.b16 %v821
    %v902 = vunpack.c.l.b16 %v822
    %v903 = vunpack.c.h.b16 %v822
    %v904 = vunpack.c.l.b16 %v823
    %v905 = vunpack.c.h.b16 %v823
    %v906 = vunpack.c.l.b16 %v824
    %v907 = vunpack.c.h.b16 %v824
    %v908 = vunpack.c.l.b16 %v825
    %v909 = vunpack.c.h.b16 %v825
    %v910 = vunpack.c.l.b16 %v826
    %v911 = vunpack.c.h.b16 %v826
    %v912 = vunpack.c.l.b16 %v827
    %v913 = vunpack.c.h.b16 %v827
    %v914 = vunpack.c.l.b16 %v828
    %v915 = vunpack.c.h.b16 %v828
    %v916 = vunpack.c.l.b16 %v829
    %v917 = vunpack.c.h.b16 %v829
    %v918 = vunpack.c.l.b16 %v830
    %v919 = vunpack.c.h.b16 %v830
    %v920 = vunpack.c.l.b16 %v831
    %v921 = vunpack.c.h.b16 %v831
    %v922 = vunpack.c.l.b16 %v832
    %v923 = vunpack.c.h.b16 %v832
    %v924 = vunpack.c.l.b16 %v833
    %v925 = vunpack.c.h.b16 %v833
    %v926 = vunpack.c.l.b16 %v834
    %v927 = vunpack.c.h.b16 %v834
    %v928 = vunpack.c.l.b16 %v835
    %v929 = vunpack.c.h.b16 %v835
    %v930 = vunpack.c.l.b16 %v836
    %v931 = vunpack.c.h.b16 %v836
    %v932 = vunpack.c.l.b16 %v837
    %v933 = vunpack.c.h.b16 %v837
    %v934 = vpack.c.b16 %v874, %v870
    %v935 = vpack.c.b16 %v875, %v871
    %v936 = vpack.c.b16 %v876, %v872
    %v937 = vpack.c.b16 %v877, %v873
    %v938 = vpack.c.b16 %v882, %v878
    %v939 = vpack.c.b16 %v883, %v879
    %v940 = vpack.c.b16 %v884, %v880
    %v941 = vpack.c.b16 %v885, %v881
    %v942 = vpack.c.b16 %v890, %v886
    %v943 = vpack.c.b16 %v891, %v887
    %v944 = vpack.c.b16 %v892, %v888
    %v945 = vpack.c.b16 %v893, %v889
    %v946 = vpack.c.b16 %v898, %v894
    %v947 = vpack.c.b16 %v899, %v895
    %v948 = vpack.c.b16 %v900, %v896
    %v949 = vpack.c.b16 %v901, %v897
    %v950 = vpack.c.b16 %v906, %v902
    %v951 = vpack.c.b16 %v907, %v903
    %v952 = vpack.c.b16 %v908, %v904
    %v953 = vpack.c.b16 %v909, %v905
    %v954 = vpack.c.b16 %v914, %v910
    %v955 = vpack.c.b16 %v915, %v911
    %v956 = vpack.c.b16 %v916, %v912
    %v957 = vpack.c.b16 %v917, %v913
    %v958 = vpack.c.b16 %v922, %v918
    %v959 = vpack.c.b16 %v923, %v919
    %v960 = vpack.c.b16 %v924, %v920
    %v961 = vpack.c.b16 %v925, %v921
    %v962 = vpack.c.b16 %v930, %v926
    %v963 = vpack.c.b16 %v931, %v927
    %v964 = vpack.c.b16 %v932, %v928
    %v965 = vpack.c.b16 %v933, %v929
    %998 = vmatprep.subr.bf16.mxu0 %v935
    %999 = vmatpush1.bf16.msra.mxu0 %v934
    %1000 = vmatprep.subr.bf16.mxu0 %v939
    %1001 = vmatpush1.bf16.msra.mxu0 %v938
    %1002 = vmatprep.subr.bf16.mxu0 %v943
    %1003 = vmatpush1.bf16.msra.mxu0 %v942
    %1004 = vmatprep.subr.bf16.mxu0 %v947
    %1005 = vmatpush1.bf16.msra.mxu0 %v946
    %1006 = vmatprep.subr.bf16.mxu0 %v951
    %1007 = vmatpush1.bf16.msra.mxu0 %v950
    %1008 = vmatprep.subr.bf16.mxu0 %v955
    %1009 = vmatpush1.bf16.msra.mxu0 %v954
    %1010 = vmatprep.subr.bf16.mxu0 %v959
    %1011 = vmatpush1.bf16.msra.mxu0 %v958
    %1012 = vmatprep.subr.bf16.mxu0 %v963
    %1013 = vmatpush1.bf16.msra.mxu0 %v962
    %1014 = vmatprep.subr.bf16.mxu0 0
    %1015 = vmatpush1.bf16.msra.mxu0 0
    %1016 = vmatprep.subr.bf16.mxu0 0
    %1017 = vmatpush1.bf16.msra.mxu0 0
    %1018 = vmatprep.subr.bf16.mxu0 0
    %1019 = vmatpush1.bf16.msra.mxu0 0
    %1020 = vmatprep.subr.bf16.mxu0 0
    %1021 = vmatpush1.bf16.msra.mxu0 0
    %1022 = vmatprep.subr.bf16.mxu0 0
    %1023 = vmatpush1.bf16.msra.mxu0 0
    %1024 = vmatprep.subr.bf16.mxu0 0
    %1025 = vmatpush1.bf16.msra.mxu0 0
    %1026 = vmatprep.subr.bf16.mxu0 0
    %1027 = vmatpush1.bf16.msra.mxu0 0
    %1028 = vmatprep.subr.bf16.mxu0 0
    %1029 = vmatpush1.bf16.msra.mxu0 0
    %1030 = vmatprep.mubr.bf16.mxu0 0
    %1031 = vmatmul.mubr.bf16.gmra.mrb[0].mxu0 %v621
    %v1032 = vpop.f32.mrb[0].mxu0
    %v1033 = vadd.f32 0.0, %v1032
    %v1034 = vpop.f32.mrb[0].mxu0
    %v1035 = vadd.f32 0.0, %v1034
    %v1036 = vpop.f32.mrb[0].mxu0
    %v1037 = vpop.f32.mrb[0].mxu0
    %1038 = vdwg.mxu0
    %1039 = vmatprep.subr.bf16.mxu0 %v937
    %1040 = vmatpush1.bf16.msra.mxu0 %v936
    %1041 = vmatprep.subr.bf16.mxu0 %v941
    %1042 = vmatpush1.bf16.msra.mxu0 %v940
    %1043 = vmatprep.subr.bf16.mxu0 %v945
    %1044 = vmatpush1.bf16.msra.mxu0 %v944
    %1045 = vmatprep.subr.bf16.mxu0 %v949
    %1046 = vmatpush1.bf16.msra.mxu0 %v948
    %1047 = vmatprep.subr.bf16.mxu0 %v953
    %1048 = vmatpush1.bf16.msra.mxu0 %v952
    %1049 = vmatprep.subr.bf16.mxu0 %v957
    %1050 = vmatpush1.bf16.msra.mxu0 %v956
    %1051 = vmatprep.subr.bf16.mxu0 %v961
    %1052 = vmatpush1.bf16.msra.mxu0 %v960
    %1053 = vmatprep.subr.bf16.mxu0 %v965
    %1054 = vmatpush1.bf16.msra.mxu0 %v964
    %1055 = vmatprep.subr.bf16.mxu0 0
    %1056 = vmatpush1.bf16.msra.mxu0 0
    %1057 = vmatprep.subr.bf16.mxu0 0
    %1058 = vmatpush1.bf16.msra.mxu0 0
    %1059 = vmatprep.subr.bf16.mxu0 0
    %1060 = vmatpush1.bf16.msra.mxu0 0
    %1061 = vmatprep.subr.bf16.mxu0 0
    %1062 = vmatpush1.bf16.msra.mxu0 0
    %1063 = vmatprep.subr.bf16.mxu0 0
    %1064 = vmatpush1.bf16.msra.mxu0 0
    %1065 = vmatprep.subr.bf16.mxu0 0
    %1066 = vmatpush1.bf16.msra.mxu0 0
    %1067 = vmatprep.subr.bf16.mxu0 0
    %1068 = vmatpush1.bf16.msra.mxu0 0
    %1069 = vmatprep.subr.bf16.mxu0 0
    %1070 = vmatpush1.bf16.msra.mxu0 0
    %1071 = vmatprep.mubr.bf16.mxu0 0
    %1072 = vmatmul.mubr.bf16.gmra.mrb[0].mxu0 %v621
    %v1073 = vpop.f32.mrb[0].mxu0
    %v1074 = vadd.f32 0.0, %v1073
    %v1075 = vpop.f32.mrb[0].mxu0
    %v1076 = vadd.f32 0.0, %v1075
    %v1077 = vpop.f32.mrb[0].mxu0
    %v1078 = vpop.f32.mrb[0].mxu0
    %1079 = vdwg.mxu0
    %v1080 = vadd.f32 %v276, %v1033
    %v1081 = vadd.f32 %v278, %v1035
    %v1082 = vadd.f32 %v317, %v1074
    %v1083 = vadd.f32 %v319, %v1076
    %v1084 = vtanh.pop %v1080
    %v1085 = vtanh.pop %v1081
    %v1086 = vtanh.pop %v1082
    %v1087 = vtanh.pop %v1083
    %v1088 = vmul.f32 %v1084, 0.5
    %v1089 = vadd.f32 %v1088, 0.5
    %v1090 = vmul.f32 %v1085, 0.5
    %v1091 = vadd.f32 %v1090, 0.5
    %v1092 = vmul.f32 %v1087, 0.5
    %v1093 = vadd.f32 %v1092, 0.5
    %v1094 = vmul.f32 %v1091, %v614
    %v1095 = vmul.f32 %v1089, %v1086
    %v1096 = vadd.f32 %v1094, %v1095
    %v1097 = vtanh.pop %v1096
    %v1098 = vmul.f32 %v1093, %v1097
    %v1099 = vpack.c.bf16 %v1098, %v1098
    %v1100 = vpack.c.bf16 %v804, %v804
    %v1101 = vld [vmem:[#allocation2] sm:$0xff]
    %v1102 = vld [vmem:[#allocation2 + $0x8] sm:$0xff]
    %v1103 = vld [vmem:[#allocation2 + $0x10] sm:$0xff]
    %v1104 = vld [vmem:[#allocation2 + $0x18] sm:$0xff]
    %v1105 = vld [vmem:[#allocation2 + $0x20] sm:$0xff]
    %v1106 = vld [vmem:[#allocation2 + $0x28] sm:$0xff]
    %v1107 = vld [vmem:[#allocation2 + $0x30] sm:$0xff]
    %v1108 = vld [vmem:[#allocation2 + $0x38] sm:$0xff]
    %v1109 = vld [vmem:[#allocation2 + $0x40] sm:$0xff]
    %v1110 = vld [vmem:[#allocation2 + $0x48] sm:$0xff]
    %v1111 = vld [vmem:[#allocation2 + $0x50] sm:$0xff]
    %v1112 = vld [vmem:[#allocation2 + $0x58] sm:$0xff]
    %v1113 = vld [vmem:[#allocation2 + $0x60] sm:$0xff]
    %v1114 = vld [vmem:[#allocation2 + $0x68] sm:$0xff]
    %v1115 = vld [vmem:[#allocation2 + $0x70] sm:$0xff]
    %v1116 = vld [vmem:[#allocation2 + $0x78] sm:$0xff]
    %v1117 = vld [vmem:[#allocation2 + $0x80] sm:$0xff]
    %v1118 = vld [vmem:[#allocation2 + $0x88] sm:$0xff]
    %v1119 = vld [vmem:[#allocation2 + $0x90] sm:$0xff]
    %v1120 = vld [vmem:[#allocation2 + $0x98] sm:$0xff]
    %v1121 = vld [vmem:[#allocation2 + $0xa0] sm:$0xff]
    %v1122 = vld [vmem:[#allocation2 + $0xa8] sm:$0xff]
    %v1123 = vld [vmem:[#allocation2 + $0xb0] sm:$0xff]
    %v1124 = vld [vmem:[#allocation2 + $0xb8] sm:$0xff]
    %v1125 = vld [vmem:[#allocation2 + $0xc0] sm:$0xff]
    %v1126 = vld [vmem:[#allocation2 + $0xc8] sm:$0xff]
    %v1127 = vld [vmem:[#allocation2 + $0xd0] sm:$0xff]
    %v1128 = vld [vmem:[#allocation2 + $0xd8] sm:$0xff]
    %v1129 = vld [vmem:[#allocation2 + $0xe0] sm:$0xff]
    %v1130 = vld [vmem:[#allocation2 + $0xe8] sm:$0xff]
    %v1131 = vld [vmem:[#allocation2 + $0xf0] sm:$0xff]
    %v1132 = vld [vmem:[#allocation2 + $0xf8] sm:$0xff]
    %v1133 = vld [vmem:[#allocation2 + $0x100] sm:$0xff]
    %v1134 = vld [vmem:[#allocation2 + $0x108] sm:$0xff]
    %v1135 = vld [vmem:[#allocation2 + $0x110] sm:$0xff]
    %v1136 = vld [vmem:[#allocation2 + $0x118] sm:$0xff]
    %v1137 = vld [vmem:[#allocation2 + $0x120] sm:$0xff]
    %v1138 = vld [vmem:[#allocation2 + $0x128] sm:$0xff]
    %v1139 = vld [vmem:[#allocation2 + $0x130] sm:$0xff]
    %v1140 = vld [vmem:[#allocation2 + $0x138] sm:$0xff]
    %v1141 = vld [vmem:[#allocation2 + $0x140] sm:$0xff]
    %v1142 = vld [vmem:[#allocation2 + $0x148] sm:$0xff]
    %v1143 = vld [vmem:[#allocation2 + $0x150] sm:$0xff]
    %v1144 = vld [vmem:[#allocation2 + $0x158] sm:$0xff]
    %v1145 = vld [vmem:[#allocation2 + $0x160] sm:$0xff]
    %v1146 = vld [vmem:[#allocation2 + $0x168] sm:$0xff]
    %v1147 = vld [vmem:[#allocation2 + $0x170] sm:$0xff]
    %v1148 = vld [vmem:[#allocation2 + $0x178] sm:$0xff]
    %v1149 = vld [vmem:[#allocation2 + $0x180] sm:$0xff]
    %v1150 = vld [vmem:[#allocation2 + $0x188] sm:$0xff]
    %v1151 = vld [vmem:[#allocation2 + $0x190] sm:$0xff]
    %v1152 = vld [vmem:[#allocation2 + $0x198] sm:$0xff]
    %v1153 = vld [vmem:[#allocation2 + $0x1a0] sm:$0xff]
    %v1154 = vld [vmem:[#allocation2 + $0x1a8] sm:$0xff]
    %v1155 = vld [vmem:[#allocation2 + $0x1b0] sm:$0xff]
    %v1156 = vld [vmem:[#allocation2 + $0x1b8] sm:$0xff]
    %v1157 = vld [vmem:[#allocation2 + $0x1c0] sm:$0xff]
    %v1158 = vld [vmem:[#allocation2 + $0x1c8] sm:$0xff]
    %v1159 = vld [vmem:[#allocation2 + $0x1d0] sm:$0xff]
    %v1160 = vld [vmem:[#allocation2 + $0x1d8] sm:$0xff]
    %v1161 = vld [vmem:[#allocation2 + $0x1e0] sm:$0xff]
    %v1162 = vld [vmem:[#allocation2 + $0x1e8] sm:$0xff]
    %v1163 = vld [vmem:[#allocation2 + $0x1f0] sm:$0xff]
    %v1164 = vld [vmem:[#allocation2 + $0x1f8] sm:$0xff]
    %1165 = vmatprep.subr.bf16.mxu0 %v1102
    %1166 = vmatpush1.bf16.msra.mxu0 %v1101
    %1167 = vmatprep.subr.bf16.mxu0 %v1106
    %1168 = vmatpush1.bf16.msra.mxu0 %v1105
    %1169 = vmatprep.subr.bf16.mxu0 %v1110
    %1170 = vmatpush1.bf16.msra.mxu0 %v1109
    %1171 = vmatprep.subr.bf16.mxu0 %v1114
    %1172 = vmatpush1.bf16.msra.mxu0 %v1113
    %1173 = vmatprep.subr.bf16.mxu0 %v1118
    %1174 = vmatpush1.bf16.msra.mxu0 %v1117
    %1175 = vmatprep.subr.bf16.mxu0 %v1122
    %1176 = vmatpush1.bf16.msra.mxu0 %v1121
    %1177 = vmatprep.subr.bf16.mxu0 %v1126
    %1178 = vmatpush1.bf16.msra.mxu0 %v1125
    %1179 = vmatprep.subr.bf16.mxu0 %v1130
    %1180 = vmatpush1.bf16.msra.mxu0 %v1129
    %1181 = vmatprep.subr.bf16.mxu0 %v1134
    %1182 = vmatpush1.bf16.msra.mxu0 %v1133
    %1183 = vmatprep.subr.bf16.mxu0 %v1138
    %1184 = vmatpush1.bf16.msra.mxu0 %v1137
    %1185 = vmatprep.subr.bf16.mxu0 %v1142
    %1186 = vmatpush1.bf16.msra.mxu0 %v1141
    %1187 = vmatprep.subr.bf16.mxu0 %v1146
    %1188 = vmatpush1.bf16.msra.mxu0 %v1145
    %1189 = vmatprep.subr.bf16.mxu0 %v1150
    %1190 = vmatpush1.bf16.msra.mxu0 %v1149
    %1191 = vmatprep.subr.bf16.mxu0 %v1154
    %1192 = vmatpush1.bf16.msra.mxu0 %v1153
    %1193 = vmatprep.subr.bf16.mxu0 %v1158
    %1194 = vmatpush1.bf16.msra.mxu0 %v1157
    %1195 = vmatprep.subr.bf16.mxu0 %v1162
    %1196 = vmatpush1.bf16.msra.mxu0 %v1161
    %1197 = vmatprep.mubr.bf16.mxu0 %v1100
    %1198 = vmatmul.mubr.bf16.gmra.mrb[0].mxu0 %v1099
    %v1199 = vpop.f32.mrb[0].mxu0
    %v1200 = vadd.f32 %v691, %v1199
    %v1201 = vpop.f32.mrb[0].mxu0
    %v1202 = vadd.f32 %v695, %v1201
    %v1203 = vpop.f32.mrb[0].mxu0
    %v1204 = vpop.f32.mrb[0].mxu0
    %1205 = vdwg.mxu0
    %1206 = vmatprep.subr.bf16.mxu0 %v1104
    %1207 = vmatpush1.bf16.msra.mxu0 %v1103
    %1208 = vmatprep.subr.bf16.mxu0 %v1108
    %1209 = vmatpush1.bf16.msra.mxu0 %v1107
    %1210 = vmatprep.subr.bf16.mxu0 %v1112
    %1211 = vmatpush1.bf16.msra.mxu0 %v1111
    %1212 = vmatprep.subr.bf16.mxu0 %v1116
    %1213 = vmatpush1.bf16.msra.mxu0 %v1115
    %1214 = vmatprep.subr.bf16.mxu0 %v1120
    %1215 = vmatpush1.bf16.msra.mxu0 %v1119
    %1216 = vmatprep.subr.bf16.mxu0 %v1124
    %1217 = vmatpush1.bf16.msra.mxu0 %v1123
    %1218 = vmatprep.subr.bf16.mxu0 %v1128
    %1219 = vmatpush1.bf16.msra.mxu0 %v1127
    %1220 = vmatprep.subr.bf16.mxu0 %v1132
    %1221 = vmatpush1.bf16.msra.mxu0 %v1131
    %1222 = vmatprep.subr.bf16.mxu0 %v1136
    %1223 = vmatpush1.bf16.msra.mxu0 %v1135
    %1224 = vmatprep.subr.bf16.mxu0 %v1140
    %1225 = vmatpush1.bf16.msra.mxu0 %v1139
    %1226 = vmatprep.subr.bf16.mxu0 %v1144
    %1227 = vmatpush1.bf16.msra.mxu0 %v1143
    %1228 = vmatprep.subr.bf16.mxu0 %v1148
    %1229 = vmatpush1.bf16.msra.mxu0 %v1147
    %1230 = vmatprep.subr.bf16.mxu0 %v1152
    %1231 = vmatpush1.bf16.msra.mxu0 %v1151
    %1232 = vmatprep.subr.bf16.mxu0 %v1156
    %1233 = vmatpush1.bf16.msra.mxu0 %v1155
    %1234 = vmatprep.subr.bf16.mxu0 %v1160
    %1235 = vmatpush1.bf16.msra.mxu0 %v1159
    %1236 = vmatprep.subr.bf16.mxu0 %v1164
    %1237 = vmatpush1.bf16.msra.mxu0 %v1163
    %1238 = vmatprep.mubr.bf16.mxu0 %v1100
    %1239 = vmatmul.mubr.bf16.gmra.mrb[0].mxu0 %v1099
    %v1240 = vpop.f32.mrb[0].mxu0
    %v1241 = vadd.f32 %v699, %v1240
    %v1242 = vpop.f32.mrb[0].mxu0
    %v1243 = vadd.f32 %v703, %v1242
    %v1244 = vpop.f32.mrb[0].mxu0
    %v1245 = vpop.f32.mrb[0].mxu0
    %1246 = vdwg.mxu0
    %v1247 = vtanh.pop %v1200
    %v1248 = vtanh.pop %v1202
    %v1249 = vtanh.pop %v1241
    %v1250 = vtanh.pop %v1243
    %v1251 = vmul.f32 %v1247, 0.5
    %v1252 = vadd.f32 %v1251, 0.5
    %v1253 = vmul.f32 %v1248, 0.5
    %v1254 = vadd.f32 %v1253, 0.5
    %v1255 = vmul.f32 %v1250, 0.5
    %v1256 = vadd.f32 %v1255, 0.5
    %v1257 = vmul.f32 %v1254, %v802
    %v1258 = vmul.f32 %v1252, %v1249
    %v1259 = vadd.f32 %v1257, %v1258
    %v1260 = vtanh.pop %v1259
    %v1261 = vmul.f32 %v1256, %v1260
    %1262 = vst [vmem:[#allocation3 + $0x1] sm:$0x1] %v1261
    %v1263 = vld [vmem:[#allocation10] sm:$0xff]
    %v1264 = vld [vmem:[#allocation10 + $0x8] sm:$0xff]
    %v1265 = vld [vmem:[#allocation10 + $0x10] sm:$0xff]
    %v1266 = vld [vmem:[#allocation10 + $0x18] sm:$0xff]
    %v1267 = vld [vmem:[#allocation10 + $0x20] sm:$0xff]
    %v1268 = vld [vmem:[#allocation10 + $0x28] sm:$0xff]
    %v1269 = vld [vmem:[#allocation10 + $0x30] sm:$0xff]
    %v1270 = vld [vmem:[#allocation10 + $0x38] sm:$0xff]
    %v1271 = vld [vmem:[#allocation10 + $0x40] sm:$0xff]
    %v1272 = vld [vmem:[#allocation10 + $0x48] sm:$0xff]
    %v1273 = vld [vmem:[#allocation10 + $0x50] sm:$0xff]
    %v1274 = vld [vmem:[#allocation10 + $0x58] sm:$0xff]
    %v1275 = vld [vmem:[#allocation10 + $0x60] sm:$0xff]
    %v1276 = vld [vmem:[#allocation10 + $0x68] sm:$0xff]
    %v1277 = vld [vmem:[#allocation10 + $0x70] sm:$0xff]
    %v1278 = vld [vmem:[#allocation10 + $0x78] sm:$0xff]
    %v1279 = vld [vmem:[#allocation10 + $0x80] sm:$0xff]
    %v1280 = vld [vmem:[#allocation10 + $0x88] sm:$0xff]
    %v1281 = vld [vmem:[#allocation10 + $0x90] sm:$0xff]
    %v1282 = vld [vmem:[#allocation10 + $0x98] sm:$0xff]
    %v1283 = vld [vmem:[#allocation10 + $0xa0] sm:$0xff]
    %v1284 = vld [vmem:[#allocation10 + $0xa8] sm:$0xff]
    %v1285 = vld [vmem:[#allocation10 + $0xb0] sm:$0xff]
    %v1286 = vld [vmem:[#allocation10 + $0xb8] sm:$0xff]
    %v1287 = vld [vmem:[#allocation10 + $0xc0] sm:$0xff]
    %v1288 = vld [vmem:[#allocation10 + $0xc8] sm:$0xff]
    %v1289 = vld [vmem:[#allocation10 + $0xd0] sm:$0xff]
    %v1290 = vld [vmem:[#allocation10 + $0xd8] sm:$0xff]
    %v1291 = vld [vmem:[#allocation10 + $0xe0] sm:$0xff]
    %v1292 = vld [vmem:[#allocation10 + $0xe8] sm:$0xff]
    %v1293 = vld [vmem:[#allocation10 + $0xf0] sm:$0xff]
    %v1294 = vld [vmem:[#allocation10 + $0xf8] sm:$0xff]
    %v1327 = vunpack.c.l.b16 %v1263
    %v1328 = vunpack.c.h.b16 %v1263
    %v1329 = vunpack.c.l.b16 %v1264
    %v1330 = vunpack.c.h.b16 %v1264
    %v1331 = vunpack.c.l.b16 %v1265
    %v1332 = vunpack.c.h.b16 %v1265
    %v1333 = vunpack.c.l.b16 %v1266
    %v1334 = vunpack.c.h.b16 %v1266
    %v1335 = vunpack.c.l.b16 %v1267
    %v1336 = vunpack.c.h.b16 %v1267
    %v1337 = vunpack.c.l.b16 %v1268
    %v1338 = vunpack.c.h.b16 %v1268
    %v1339 = vunpack.c.l.b16 %v1269
    %v1340 = vunpack.c.h.b16 %v1269
    %v1341 = vunpack.c.l.b16 %v1270
    %v1342 = vunpack.c.h.b16 %v1270
    %v1343 = vunpack.c.l.b16 %v1271
    %v1344 = vunpack.c.h.b16 %v1271
    %v1345 = vunpack.c.l.b16 %v1272
    %v1346 = vunpack.c.h.b16 %v1272
    %v1347 = vunpack.c.l.b16 %v1273
    %v1348 = vunpack.c.h.b16 %v1273
    %v1349 = vunpack.c.l.b16 %v1274
    %v1350 = vunpack.c.h.b16 %v1274
    %v1351 = vunpack.c.l.b16 %v1275
    %v1352 = vunpack.c.h.b16 %v1275
    %v1353 = vunpack.c.l.b16 %v1276
    %v1354 = vunpack.c.h.b16 %v1276
    %v1355 = vunpack.c.l.b16 %v1277
    %v1356 = vunpack.c.h.b16 %v1277
    %v1357 = vunpack.c.l.b16 %v1278
    %v1358 = vunpack.c.h.b16 %v1278
    %v1359 = vunpack.c.l.b16 %v1279
    %v1360 = vunpack.c.h.b16 %v1279
    %v1361 = vunpack.c.l.b16 %v1280
    %v1362 = vunpack.c.h.b16 %v1280
    %v1363 = vunpack.c.l.b16 %v1281
    %v1364 = vunpack.c.h.b16 %v1281
    %v1365 = vunpack.c.l.b16 %v1282
    %v1366 = vunpack.c.h.b16 %v1282
    %v1367 = vunpack.c.l.b16 %v1283
    %v1368 = vunpack.c.h.b16 %v1283
    %v1369 = vunpack.c.l.b16 %v1284
    %v1370 = vunpack.c.h.b16 %v1284
    %v1371 = vunpack.c.l.b16 %v1285
    %v1372 = vunpack.c.h.b16 %v1285
    %v1373 = vunpack.c.l.b16 %v1286
    %v1374 = vunpack.c.h.b16 %v1286
    %v1375 = vunpack.c.l.b16 %v1287
    %v1376 = vunpack.c.h.b16 %v1287
    %v1377 = vunpack.c.l.b16 %v1288
    %v1378 = vunpack.c.h.b16 %v1288
    %v1379 = vunpack.c.l.b16 %v1289
    %v1380 = vunpack.c.h.b16 %v1289
    %v1381 = vunpack.c.l.b16 %v1290
    %v1382 = vunpack.c.h.b16 %v1290
    %v1383 = vunpack.c.l.b16 %v1291
    %v1384 = vunpack.c.h.b16 %v1291
    %v1385 = vunpack.c.l.b16 %v1292
    %v1386 = vunpack.c.h.b16 %v1292
    %v1387 = vunpack.c.l.b16 %v1293
    %v1388 = vunpack.c.h.b16 %v1293
    %v1389 = vunpack.c.l.b16 %v1294
    %v1390 = vunpack.c.h.b16 %v1294
    %v1391 = vpack.c.b16 %v1331, %v1327
    %v1392 = vpack.c.b16 %v1332, %v1328
    %v1393 = vpack.c.b16 %v1333, %v1329
    %v1394 = vpack.c.b16 %v1334, %v1330
    %v1395 = vpack.c.b16 %v1339, %v1335
    %v1396 = vpack.c.b16 %v1340, %v1336
    %v1397 = vpack.c.b16 %v1341, %v1337
    %v1398 = vpack.c.b16 %v1342, %v1338
    %v1399 = vpack.c.b16 %v1347, %v1343
    %v1400 = vpack.c.b16 %v1348, %v1344
    %v1401 = vpack.c.b16 %v1349, %v1345
    %v1402 = vpack.c.b16 %v1350, %v1346
    %v1403 = vpack.c.b16 %v1355, %v1351
    %v1404 = vpack.c.b16 %v1356, %v1352
    %v1405 = vpack.c.b16 %v1357, %v1353
    %v1406 = vpack.c.b16 %v1358, %v1354
    %v1407 = vpack.c.b16 %v1363, %v1359
    %v1408 = vpack.c.b16 %v1364, %v1360
    %v1409 = vpack.c.b16 %v1365, %v1361
    %v1410 = vpack.c.b16 %v1366, %v1362
    %v1411 = vpack.c.b16 %v1371, %v1367
    %v1412 = vpack.c.b16 %v1372, %v1368
    %v1413 = vpack.c.b16 %v1373, %v1369
    %v1414 = vpack.c.b16 %v1374, %v1370
    %v1415 = vpack.c.b16 %v1379, %v1375
    %v1416 = vpack.c.b16 %v1380, %v1376
    %v1417 = vpack.c.b16 %v1381, %v1377
    %v1418 = vpack.c.b16 %v1382, %v1378
    %v1419 = vpack.c.b16 %v1387, %v1383
    %v1420 = vpack.c.b16 %v1388, %v1384
    %v1421 = vpack.c.b16 %v1389, %v1385
    %v1422 = vpack.c.b16 %v1390, %v1386
    %1455 = vmatprep.subr.bf16.mxu0 %v1392
    %1456 = vmatpush1.bf16.msra.mxu0 %v1391
    %1457 = vmatprep.subr.bf16.mxu0 %v1396
    %1458 = vmatpush1.bf16.msra.mxu0 %v1395
    %1459 = vmatprep.subr.bf16.mxu0 %v1400
    %1460 = vmatpush1.bf16.msra.mxu0 %v1399
    %1461 = vmatprep.subr.bf16.mxu0 %v1404
    %1462 = vmatpush1.bf16.msra.mxu0 %v1403
    %1463 = vmatprep.subr.bf16.mxu0 %v1408
    %1464 = vmatpush1.bf16.msra.mxu0 %v1407
    %1465 = vmatprep.subr.bf16.mxu0 %v1412
    %1466 = vmatpush1.bf16.msra.mxu0 %v1411
    %1467 = vmatprep.subr.bf16.mxu0 %v1416
    %1468 = vmatpush1.bf16.msra.mxu0 %v1415
    %1469 = vmatprep.subr.bf16.mxu0 %v1420
    %1470 = vmatpush1.bf16.msra.mxu0 %v1419
    %1471 = vmatprep.subr.bf16.mxu0 0
    %1472 = vmatpush1.bf16.msra.mxu0 0
    %1473 = vmatprep.subr.bf16.mxu0 0
    %1474 = vmatpush1.bf16.msra.mxu0 0
    %1475 = vmatprep.subr.bf16.mxu0 0
    %1476 = vmatpush1.bf16.msra.mxu0 0
    %1477 = vmatprep.subr.bf16.mxu0 0
    %1478 = vmatpush1.bf16.msra.mxu0 0
    %1479 = vmatprep.subr.bf16.mxu0 0
    %1480 = vmatpush1.bf16.msra.mxu0 0
    %1481 = vmatprep.subr.bf16.mxu0 0
    %1482 = vmatpush1.bf16.msra.mxu0 0
    %1483 = vmatprep.subr.bf16.mxu0 0
    %1484 = vmatpush1.bf16.msra.mxu0 0
    %1485 = vmatprep.subr.bf16.mxu0 0
    %1486 = vmatpush1.bf16.msra.mxu0 0
    %1487 = vmatprep.mubr.bf16.mxu0 0
    %1488 = vmatmul.mubr.bf16.gmra.mrb[0].mxu0 %v1099
    %v1489 = vpop.f32.mrb[0].mxu0
    %v1490 = vadd.f32 0.0, %v1489
    %v1491 = vpop.f32.mrb[0].mxu0
    %v1492 = vadd.f32 0.0, %v1491
    %v1493 = vpop.f32.mrb[0].mxu0
    %v1494 = vpop.f32.mrb[0].mxu0
    %1495 = vdwg.mxu0
    %1496 = vmatprep.subr.bf16.mxu0 %v1394
    %1497 = vmatpush1.bf16.msra.mxu0 %v1393
    %1498 = vmatprep.subr.bf16.mxu0 %v1398
    %1499 = vmatpush1.bf16.msra.mxu0 %v1397
    %1500 = vmatprep.subr.bf16.mxu0 %v1402
    %1501 = vmatpush1.bf16.msra.mxu0 %v1401
    %1502 = vmatprep.subr.bf16.mxu0 %v1406
    %1503 = vmatpush1.bf16.msra.mxu0 %v1405
    %1504 = vmatprep.subr.bf16.mxu0 %v1410
    %1505 = vmatpush1.bf16.msra.mxu0 %v1409
    %1506 = vmatprep.subr.bf16.mxu0 %v1414
    %1507 = vmatpush1.bf16.msra.mxu0 %v1413
    %1508 = vmatprep.subr.bf16.mxu0 %v1418
    %1509 = vmatpush1.bf16.msra.mxu0 %v1417
    %1510 = vmatprep.subr.bf16.mxu0 %v1422
    %1511 = vmatpush1.bf16.msra.mxu0 %v1421
    %1512 = vmatprep.subr.bf16.mxu0 0
    %1513 = vmatpush1.bf16.msra.mxu0 0
    %1514 = vmatprep.subr.bf16.mxu0 0
    %1515 = vmatpush1.bf16.msra.mxu0 0
    %1516 = vmatprep.subr.bf16.mxu0 0
    %1517 = vmatpush1.bf16.msra.mxu0 0
    %1518 = vmatprep.subr.bf16.mxu0 0
    %1519 = vmatpush1.bf16.msra.mxu0 0
    %1520 = vmatprep.subr.bf16.mxu0 0
    %1521 = vmatpush1.bf16.msra.mxu0 0
    %1522 = vmatprep.subr.bf16.mxu0 0
    %1523 = vmatpush1.bf16.msra.mxu0 0
    %1524 = vmatprep.subr.bf16.mxu0 0
    %1525 = vmatpush1.bf16.msra.mxu0 0
    %1526 = vmatprep.subr.bf16.mxu0 0
    %1527 = vmatpush1.bf16.msra.mxu0 0
    %1528 = vmatprep.mubr.bf16.mxu0 0
    %1529 = vmatmul.mubr.bf16.gmra.mrb[0].mxu0 %v1099
    %v1530 = vpop.f32.mrb[0].mxu0
    %v1531 = vadd.f32 0.0, %v1530
    %v1532 = vpop.f32.mrb[0].mxu0
    %v1533 = vadd.f32 0.0, %v1532
    %v1534 = vpop.f32.mrb[0].mxu0
    %v1535 = vpop.f32.mrb[0].mxu0
    %1536 = vdwg.mxu0
    %v1537 = vadd.f32 %v276, %v1490
    %v1538 = vadd.f32 %v278, %v1492
    %v1539 = vadd.f32 %v317, %v1531
    %v1540 = vadd.f32 %v319, %v1533
    %v1541 = vtanh.pop %v1537
    %v1542 = vtanh.pop %v1538
    %v1543 = vtanh.pop %v1539
    %v1544 = vtanh.pop %v1540
    %v1545 = vmul.f32 %v1541, 0.5
    %v1546 = vadd.f32 %v1545, 0.5
    %v1547 = vmul.f32 %v1542, 0.5
    %v1548 = vadd.f32 %v1547, 0.5
    %v1549 = vmul.f32 %v1544, 0.5
    %v1550 = vadd.f32 %v1549, 0.5
    %v1551 = vmul.f32 %v1548, %v1096
    %v1552 = vmul.f32 %v1546, %v1543
    %v1553 = vadd.f32 %v1551, %v1552
    %v1554 = vtanh.pop %v1553
    %v1555 = vmul.f32 %v1550, %v1554
    %v1556 = vpack.c.bf16 %v1555, %v1555
    %v1557 = vpack.c.bf16 %v1261, %v1261
    %v1558 = vld [vmem:[#allocation2] sm:$0xff]
    %v1559 = vld [vmem:[#allocation2 + $0x8] sm:$0xff]
    %v1560 = vld [vmem:[#allocation2 + $0x10] sm:$0xff]
    %v1561 = vld [vmem:[#allocation2 + $0x18] sm:$0xff]
    %v1562 = vld [vmem:[#allocation2 + $0x20] sm:$0xff]
    %v1563 = vld [vmem:[#allocation2 + $0x28] sm:$0xff]
    %v1564 = vld [vmem:[#allocation2 + $0x30] sm:$0xff]
    %v1565 = vld [vmem:[#allocation2 + $0x38] sm:$0xff]
    %v1566 = vld [vmem:[#allocation2 + $0x40] sm:$0xff]
    %v1567 = vld [vmem:[#allocation2 + $0x48] sm:$0xff]
    %v1568 = vld [vmem:[#allocation2 + $0x50] sm:$0xff]
    %v1569 = vld [vmem:[#allocation2 + $0x58] sm:$0xff]
    %v1570 = vld [vmem:[#allocation2 + $0x60] sm:$0xff]
    %v1571 = vld [vmem:[#allocation2 + $0x68] sm:$0xff]
    %v1572 = vld [vmem:[#allocation2 + $0x70] sm:$0xff]
    %v1573 = vld [vmem:[#allocation2 + $0x78] sm:$0xff]
    %v1574 = vld [vmem:[#allocation2 + $0x80] sm:$0xff]
    %v1575 = vld [vmem:[#allocation2 + $0x88] sm:$0xff]
    %v1576 = vld [vmem:[#allocation2 + $0x90] sm:$0xff]
    %v1577 = vld [vmem:[#allocation2 + $0x98] sm:$0xff]
    %v1578 = vld [vmem:[#allocation2 + $0xa0] sm:$0xff]
    %v1579 = vld [vmem:[#allocation2 + $0xa8] sm:$0xff]
    %v1580 = vld [vmem:[#allocation2 + $0xb0] sm:$0xff]
    %v1581 = vld [vmem:[#allocation2 + $0xb8] sm:$0xff]
    %v1582 = vld [vmem:[#allocation2 + $0xc0] sm:$0xff]
    %v1583 = vld [vmem:[#allocation2 + $0xc8] sm:$0xff]
    %v1584 = vld [vmem:[#allocation2 + $0xd0] sm:$0xff]
    %v1585 = vld [vmem:[#allocation2 + $0xd8] sm:$0xff]
    %v1586 = vld [vmem:[#allocation2 + $0xe0] sm:$0xff]
    %v1587 = vld [vmem:[#allocation2 + $0xe8] sm:$0xff]
    %v1588 = vld [vmem:[#allocation2 + $0xf0] sm:$0xff]
    %v1589 = vld [vmem:[#allocation2 + $0xf8] sm:$0xff]
    %v1590 = vld [vmem:[#allocation2 + $0x100] sm:$0xff]
    %v1591 = vld [vmem:[#allocation2 + $0x108] sm:$0xff]
    %v1592 = vld [vmem:[#allocation2 + $0x110] sm:$0xff]
    %v1593 = vld [vmem:[#allocation2 + $0x118] sm:$0xff]
    %v1594 = vld [vmem:[#allocation2 + $0x120] sm:$0xff]
    %v1595 = vld [vmem:[#allocation2 + $0x128] sm:$0xff]
    %v1596 = vld [vmem:[#allocation2 + $0x130] sm:$0xff]
    %v1597 = vld [vmem:[#allocation2 + $0x138] sm:$0xff]
    %v1598 = vld [vmem:[#allocation2 + $0x140] sm:$0xff]
    %v1599 = vld [vmem:[#allocation2 + $0x148] sm:$0xff]
    %v1600 = vld [vmem:[#allocation2 + $0x150] sm:$0xff]
    %v1601 = vld [vmem:[#allocation2 + $0x158] sm:$0xff]
    %v1602 = vld [vmem:[#allocation2 + $0x160] sm:$0xff]
    %v1603 = vld [vmem:[#allocation2 + $0x168] sm:$0xff]
    %v1604 = vld [vmem:[#allocation2 + $0x170] sm:$0xff]
    %v1605 = vld [vmem:[#allocation2 + $0x178] sm:$0xff]
    %v1606 = vld [vmem:[#allocation2 + $0x180] sm:$0xff]
    %v1607 = vld [vmem:[#allocation2 + $0x188] sm:$0xff]
    %v1608 = vld [vmem:[#allocation2 + $0x190] sm:$0xff]
    %v1609 = vld [vmem:[#allocation2 + $0x198] sm:$0xff]
    %v1610 = vld [vmem:[#allocation2 + $0x1a0] sm:$0xff]
    %v1611 = vld [vmem:[#allocation2 + $0x1a8] sm:$0xff]
    %v1612 = vld [vmem:[#allocation2 + $0x1b0] sm:$0xff]
    %v1613 = vld [vmem:[#allocation2 + $0x1b8] sm:$0xff]
    %v1614 = vld [vmem:[#allocation2 + $0x1c0] sm:$0xff]
    %v1615 = vld [vmem:[#allocation2 + $0x1c8] sm:$0xff]
    %v1616 = vld [vmem:[#allocation2 + $0x1d0] sm:$0xff]
    %v1617 = vld [vmem:[#allocation2 + $0x1d8] sm:$0xff]
    %v1618 = vld [vmem:[#allocation2 + $0x1e0] sm:$0xff]
    %v1619 = vld [vmem:[#allocation2 + $0x1e8] sm:$0xff]
    %v1620 = vld [vmem:[#allocation2 + $0x1f0] sm:$0xff]
    %v1621 = vld [vmem:[#allocation2 + $0x1f8] sm:$0xff]
    %1622 = vmatprep.subr.bf16.mxu0 %v1559
    %1623 = vmatpush1.bf16.msra.mxu0 %v1558
    %1624 = vmatprep.subr.bf16.mxu0 %v1563
    %1625 = vmatpush1.bf16.msra.mxu0 %v1562
    %1626 = vmatprep.subr.bf16.mxu0 %v1567
    %1627 = vmatpush1.bf16.msra.mxu0 %v1566
    %1628 = vmatprep.subr.bf16.mxu0 %v1571
    %1629 = vmatpush1.bf16.msra.mxu0 %v1570
    %1630 = vmatprep.subr.bf16.mxu0 %v1575
    %1631 = vmatpush1.bf16.msra.mxu0 %v1574
    %1632 = vmatprep.subr.bf16.mxu0 %v1579
    %1633 = vmatpush1.bf16.msra.mxu0 %v1578
    %1634 = vmatprep.subr.bf16.mxu0 %v1583
    %1635 = vmatpush1.bf16.msra.mxu0 %v1582
    %1636 = vmatprep.subr.bf16.mxu0 %v1587
    %1637 = vmatpush1.bf16.msra.mxu0 %v1586
    %1638 = vmatprep.subr.bf16.mxu0 %v1591
    %1639 = vmatpush1.bf16.msra.mxu0 %v1590
    %1640 = vmatprep.subr.bf16.mxu0 %v1595
    %1641 = vmatpush1.bf16.msra.mxu0 %v1594
    %1642 = vmatprep.subr.bf16.mxu0 %v1599
    %1643 = vmatpush1.bf16.msra.mxu0 %v1598
    %1644 = vmatprep.subr.bf16.mxu0 %v1603
    %1645 = vmatpush1.bf16.msra.mxu0 %v1602
    %1646 = vmatprep.subr.bf16.mxu0 %v1607
    %1647 = vmatpush1.bf16.msra.mxu0 %v1606
    %1648 = vmatprep.subr.bf16.mxu0 %v1611
    %1649 = vmatpush1.bf16.msra.mxu0 %v1610
    %1650 = vmatprep.subr.bf16.mxu0 %v1615
    %1651 = vmatpush1.bf16.msra.mxu0 %v1614
    %1652 = vmatprep.subr.bf16.mxu0 %v1619
    %1653 = vmatpush1.bf16.msra.mxu0 %v1618
    %1654 = vmatprep.mubr.bf16.mxu0 %v1557
    %1655 = vmatmul.mubr.bf16.gmra.mrb[0].mxu0 %v1556
    %v1656 = vpop.f32.mrb[0].mxu0
    %v1657 = vadd.f32 %v691, %v1656
    %v1658 = vpop.f32.mrb[0].mxu0
    %v1659 = vadd.f32 %v695, %v1658
    %v1660 = vpop.f32.mrb[0].mxu0
    %v1661 = vpop.f32.mrb[0].mxu0
    %1662 = vdwg.mxu0
    %1663 = vmatprep.subr.bf16.mxu0 %v1561
    %1664 = vmatpush1.bf16.msra.mxu0 %v1560
    %1665 = vmatprep.subr.bf16.mxu0 %v1565
    %1666 = vmatpush1.bf16.msra.mxu0 %v1564
    %1667 = vmatprep.subr.bf16.mxu0 %v1569
    %1668 = vmatpush1.bf16.msra.mxu0 %v1568
    %1669 = vmatprep.subr.bf16.mxu0 %v1573
    %1670 = vmatpush1.bf16.msra.mxu0 %v1572
    %1671 = vmatprep.subr.bf16.mxu0 %v1577
    %1672 = vmatpush1.bf16.msra.mxu0 %v1576
    %1673 = vmatprep.subr.bf16.mxu0 %v1581
    %1674 = vmatpush1.bf16.msra.mxu0 %v1580
    %1675 = vmatprep.subr.bf16.mxu0 %v1585
    %1676 = vmatpush1.bf16.msra.mxu0 %v1584
    %1677 = vmatprep.subr.bf16.mxu0 %v1589
    %1678 = vmatpush1.bf16.msra.mxu0 %v1588
    %1679 = vmatprep.subr.bf16.mxu0 %v1593
    %1680 = vmatpush1.bf16.msra.mxu0 %v1592
    %1681 = vmatprep.subr.bf16.mxu0 %v1597
    %1682 = vmatpush1.bf16.msra.mxu0 %v1596
    %1683 = vmatprep.subr.bf16.mxu0 %v1601
    %1684 = vmatpush1.bf16.msra.mxu0 %v1600
    %1685 = vmatprep.subr.bf16.mxu0 %v1605
    %1686 = vmatpush1.bf16.msra.mxu0 %v1604
    %1687 = vmatprep.subr.bf16.mxu0 %v1609
    %1688 = vmatpush1.bf16.msra.mxu0 %v1608
    %1689 = vmatprep.subr.bf16.mxu0 %v1613
    %1690 = vmatpush1.bf16.msra.mxu0 %v1612
    %1691 = vmatprep.subr.bf16.mxu0 %v1617
    %1692 = vmatpush1.bf16.msra.mxu0 %v1616
    %1693 = vmatprep.subr.bf16.mxu0 %v1621
    %1694 = vmatpush1.bf16.msra.mxu0 %v1620
    %1695 = vmatprep.mubr.bf16.mxu0 %v1557
    %1696 = vmatmul.mubr.bf16.gmra.mrb[0].mxu0 %v1556
    %v1697 = vpop.f32.mrb[0].mxu0
    %v1698 = vadd.f32 %v699, %v1697
    %v1699 = vpop.f32.mrb[0].mxu0
    %v1700 = vadd.f32 %v703, %v1699
    %v1701 = vpop.f32.mrb[0].mxu0
    %v1702 = vpop.f32.mrb[0].mxu0
    %1703 = vdwg.mxu0
    %v1704 = vtanh.pop %v1657
    %v1705 = vtanh.pop %v1659
    %v1706 = vtanh.pop %v1698
    %v1707 = vtanh.pop %v1700
    %v1708 = vmul.f32 %v1704, 0.5
    %v1709 = vadd.f32 %v1708, 0.5
    %v1710 = vmul.f32 %v1705, 0.5
    %v1711 = vadd.f32 %v1710, 0.5
    %v1712 = vmul.f32 %v1707, 0.5
    %v1713 = vadd.f32 %v1712, 0.5
    %v1714 = vmul.f32 %v1711, %v1259
    %v1715 = vmul.f32 %v1709, %v1706
    %v1716 = vadd.f32 %v1714, %v1715
    %v1717 = vtanh.pop %v1716
    %v1718 = vmul.f32 %v1713, %v1717
    %1719 = vst [vmem:[#allocation3 + $0x2] sm:$0x1] %v1718
    %v1720 = vld [vmem:[#allocation10] sm:$0xff]
    %v1721 = vld [vmem:[#allocation10 + $0x8] sm:$0xff]
    %v1722 = vld [vmem:[#allocation10 + $0x10] sm:$0xff]
    %v1723 = vld [vmem:[#allocation10 + $0x18] sm:$0xff]
    %v1724 = vld [vmem:[#allocation10 + $0x20] sm:$0xff]
    %v1725 = vld [vmem:[#allocation10 + $0x28] sm:$0xff]
    %v1726 = vld [vmem:[#allocation10 + $0x30] sm:$0xff]
    %v1727 = vld [vmem:[#allocation10 + $0x38] sm:$0xff]
    %v1728 = vld [vmem:[#allocation10 + $0x40] sm:$0xff]
    %v1729 = vld [vmem:[#allocation10 + $0x48] sm:$0xff]
    %v1730 = vld [vmem:[#allocation10 + $0x50] sm:$0xff]
    %v1731 = vld [vmem:[#allocation10 + $0x58] sm:$0xff]
    %v1732 = vld [vmem:[#allocation10 + $0x60] sm:$0xff]
    %v1733 = vld [vmem:[#allocation10 + $0x68] sm:$0xff]
    %v1734 = vld [vmem:[#allocation10 + $0x70] sm:$0xff]
    %v1735 = vld [vmem:[#allocation10 + $0x78] sm:$0xff]
    %v1736 = vld [vmem:[#allocation10 + $0x80] sm:$0xff]
    %v1737 = vld [vmem:[#allocation10 + $0x88] sm:$0xff]
    %v1738 = vld [vmem:[#allocation10 + $0x90] sm:$0xff]
    %v1739 = vld [vmem:[#allocation10 + $0x98] sm:$0xff]
    %v1740 = vld [vmem:[#allocation10 + $0xa0] sm:$0xff]
    %v1741 = vld [vmem:[#allocation10 + $0xa8] sm:$0xff]
    %v1742 = vld [vmem:[#allocation10 + $0xb0] sm:$0xff]
    %v1743 = vld [vmem:[#allocation10 + $0xb8] sm:$0xff]
    %v1744 = vld [vmem:[#allocation10 + $0xc0] sm:$0xff]
    %v1745 = vld [vmem:[#allocation10 + $0xc8] sm:$0xff]
    %v1746 = vld [vmem:[#allocation10 + $0xd0] sm:$0xff]
    %v1747 = vld [vmem:[#allocation10 + $0xd8] sm:$0xff]
    %v1748 = vld [vmem:[#allocation10 + $0xe0] sm:$0xff]
    %v1749 = vld [vmem:[#allocation10 + $0xe8] sm:$0xff]
    %v1750 = vld [vmem:[#allocation10 + $0xf0] sm:$0xff]
    %v1751 = vld [vmem:[#allocation10 + $0xf8] sm:$0xff]
    %v1784 = vunpack.c.l.b16 %v1720
    %v1785 = vunpack.c.h.b16 %v1720
    %v1786 = vunpack.c.l.b16 %v1721
    %v1787 = vunpack.c.h.b16 %v1721
    %v1788 = vunpack.c.l.b16 %v1722
    %v1789 = vunpack.c.h.b16 %v1722
    %v1790 = vunpack.c.l.b16 %v1723
    %v1791 = vunpack.c.h.b16 %v1723
    %v1792 = vunpack.c.l.b16 %v1724
    %v1793 = vunpack.c.h.b16 %v1724
    %v1794 = vunpack.c.l.b16 %v1725
    %v1795 = vunpack.c.h.b16 %v1725
    %v1796 = vunpack.c.l.b16 %v1726
    %v1797 = vunpack.c.h.b16 %v1726
    %v1798 = vunpack.c.l.b16 %v1727
    %v1799 = vunpack.c.h.b16 %v1727
    %v1800 = vunpack.c.l.b16 %v1728
    %v1801 = vunpack.c.h.b16 %v1728
    %v1802 = vunpack.c.l.b16 %v1729
    %v1803 = vunpack.c.h.b16 %v1729
    %v1804 = vunpack.c.l.b16 %v1730
    %v1805 = vunpack.c.h.b16 %v1730
    %v1806 = vunpack.c.l.b16 %v1731
    %v1807 = vunpack.c.h.b16 %v1731
    %v1808 = vunpack.c.l.b16 %v1732
    %v1809 = vunpack.c.h.b16 %v1732
    %v1810 = vunpack.c.l.b16 %v1733
    %v1811 = vunpack.c.h.b16 %v1733
    %v1812 = vunpack.c.l.b16 %v1734
    %v1813 = vunpack.c.h.b16 %v1734
    %v1814 = vunpack.c.l.b16 %v1735
    %v1815 = vunpack.c.h.b16 %v1735
    %v1816 = vunpack.c.l.b16 %v1736
    %v1817 = vunpack.c.h.b16 %v1736
    %v1818 = vunpack.c.l.b16 %v1737
    %v1819 = vunpack.c.h.b16 %v1737
    %v1820 = vunpack.c.l.b16 %v1738
    %v1821 = vunpack.c.h.b16 %v1738
    %v1822 = vunpack.c.l.b16 %v1739
    %v1823 = vunpack.c.h.b16 %v1739
    %v1824 = vunpack.c.l.b16 %v1740
    %v1825 = vunpack.c.h.b16 %v1740
    %v1826 = vunpack.c.l.b16 %v1741
    %v1827 = vunpack.c.h.b16 %v1741
    %v1828 = vunpack.c.l.b16 %v1742
    %v1829 = vunpack.c.h.b16 %v1742
    %v1830 = vunpack.c.l.b16 %v1743
    %v1831 = vunpack.c.h.b16 %v1743
    %v1832 = vunpack.c.l.b16 %v1744
    %v1833 = vunpack.c.h.b16 %v1744
    %v1834 = vunpack.c.l.b16 %v1745
    %v1835 = vunpack.c.h.b16 %v1745
    %v1836 = vunpack.c.l.b16 %v1746
    %v1837 = vunpack.c.h.b16 %v1746
    %v1838 = vunpack.c.l.b16 %v1747
    %v1839 = vunpack.c.h.b16 %v1747
    %v1840 = vunpack.c.l.b16 %v1748
    %v1841 = vunpack.c.h.b16 %v1748
    %v1842 = vunpack.c.l.b16 %v1749
    %v1843 = vunpack.c.h.b16 %v1749
    %v1844 = vunpack.c.l.b16 %v1750
    %v1845 = vunpack.c.h.b16 %v1750
    %v1846 = vunpack.c.l.b16 %v1751
    %v1847 = vunpack.c.h.b16 %v1751
    %v1848 = vpack.c.b16 %v1788, %v1784
    %v1849 = vpack.c.b16 %v1789, %v1785
    %v1850 = vpack.c.b16 %v1790, %v1786
    %v1851 = vpack.c.b16 %v1791, %v1787
    %v1852 = vpack.c.b16 %v1796, %v1792
    %v1853 = vpack.c.b16 %v1797, %v1793
    %v1854 = vpack.c.b16 %v1798, %v1794
    %v1855 = vpack.c.b16 %v1799, %v1795
    %v1856 = vpack.c.b16 %v1804, %v1800
    %v1857 = vpack.c.b16 %v1805, %v1801
    %v1858 = vpack.c.b16 %v1806, %v1802
    %v1859 = vpack.c.b16 %v1807, %v1803
    %v1860 = vpack.c.b16 %v1812, %v1808
    %v1861 = vpack.c.b16 %v1813, %v1809
    %v1862 = vpack.c.b16 %v1814, %v1810
    %v1863 = vpack.c.b16 %v1815, %v1811
    %v1864 = vpack.c.b16 %v1820, %v1816
    %v1865 = vpack.c.b16 %v1821, %v1817
    %v1866 = vpack.c.b16 %v1822, %v1818
    %v1867 = vpack.c.b16 %v1823, %v1819
    %v1868 = vpack.c.b16 %v1828, %v1824
    %v1869 = vpack.c.b16 %v1829, %v1825
    %v1870 = vpack.c.b16 %v1830, %v1826
    %v1871 = vpack.c.b16 %v1831, %v1827
    %v1872 = vpack.c.b16 %v1836, %v1832
    %v1873 = vpack.c.b16 %v1837, %v1833
    %v1874 = vpack.c.b16 %v1838, %v1834
    %v1875 = vpack.c.b16 %v1839, %v1835
    %v1876 = vpack.c.b16 %v1844, %v1840
    %v1877 = vpack.c.b16 %v1845, %v1841
    %v1878 = vpack.c.b16 %v1846, %v1842
    %v1879 = vpack.c.b16 %v1847, %v1843
    %1912 = vmatprep.subr.bf16.mxu0 %v1849
    %1913 = vmatpush1.bf16.msra.mxu0 %v1848
    %1914 = vmatprep.subr.bf16.mxu0 %v1853
    %1915 = vmatpush1.bf16.msra.mxu0 %v1852
    %1916 = vmatprep.subr.bf16.mxu0 %v1857
    %1917 = vmatpush1.bf16.msra.mxu0 %v1856
    %1918 = vmatprep.subr.bf16.mxu0 %v1861
    %1919 = vmatpush1.bf16.msra.mxu0 %v1860
    %1920 = vmatprep.subr.bf16.mxu0 %v1865
    %1921 = vmatpush1.bf16.msra.mxu0 %v1864
    %1922 = vmatprep.subr.bf16.mxu0 %v1869
    %1923 = vmatpush1.bf16.msra.mxu0 %v1868
    %1924 = vmatprep.subr.bf16.mxu0 %v1873
    %1925 = vmatpush1.bf16.msra.mxu0 %v1872
    %1926 = vmatprep.subr.bf16.mxu0 %v1877
    %1927 = vmatpush1.bf16.msra.mxu0 %v1876
    %1928 = vmatprep.subr.bf16.mxu0 0
    %1929 = vmatpush1.bf16.msra.mxu0 0
    %1930 = vmatprep.subr.bf16.mxu0 0
    %1931 = vmatpush1.bf16.msra.mxu0 0
    %1932 = vmatprep.subr.bf16.mxu0 0
    %1933 = vmatpush1.bf16.msra.mxu0 0
    %1934 = vmatprep.subr.bf16.mxu0 0
    %1935 = vmatpush1.bf16.msra.mxu0 0
    %1936 = vmatprep.subr.bf16.mxu0 0
    %1937 = vmatpush1.bf16.msra.mxu0 0
    %1938 = vmatprep.subr.bf16.mxu0 0
    %1939 = vmatpush1.bf16.msra.mxu0 0
    %1940 = vmatprep.subr.bf16.mxu0 0
    %1941 = vmatpush1.bf16.msra.mxu0 0
    %1942 = vmatprep.subr.bf16.mxu0 0
    %1943 = vmatpush1.bf16.msra.mxu0 0
    %1944 = vmatprep.mubr.bf16.mxu0 0
    %1945 = vmatmul.mubr.bf16.gmra.mrb[0].mxu0 %v1556
    %v1946 = vpop.f32.mrb[0].mxu0
    %v1947 = vadd.f32 0.0, %v1946
    %v1948 = vpop.f32.mrb[0].mxu0
    %v1949 = vadd.f32 0.0, %v1948
    %v1950 = vpop.f32.mrb[0].mxu0
    %v1951 = vpop.f32.mrb[0].mxu0
    %1952 = vdwg.mxu0
    %1953 = vmatprep.subr.bf16.mxu0 %v1851
    %1954 = vmatpush1.bf16.msra.mxu0 %v1850
    %1955 = vmatprep.subr.bf16.mxu0 %v1855
    %1956 = vmatpush1.bf16.msra.mxu0 %v1854
    %1957 = vmatprep.subr.bf16.mxu0 %v1859
    %1958 = vmatpush1.bf16.msra.mxu0 %v1858
    %1959 = vmatprep.subr.bf16.mxu0 %v1863
    %1960 = vmatpush1.bf16.msra.mxu0 %v1862
    %1961 = vmatprep.subr.bf16.mxu0 %v1867
    %1962 = vmatpush1.bf16.msra.mxu0 %v1866
    %1963 = vmatprep.subr.bf16.mxu0 %v1871
    %1964 = vmatpush1.bf16.msra.mxu0 %v1870
    %1965 = vmatprep.subr.bf16.mxu0 %v1875
    %1966 = vmatpush1.bf16.msra.mxu0 %v1874
    %1967 = vmatprep.subr.bf16.mxu0 %v1879
    %1968 = vmatpush1.bf16.msra.mxu0 %v1878
    %1969 = vmatprep.subr.bf16.mxu0 0
    %1970 = vmatpush1.bf16.msra.mxu0 0
    %1971 = vmatprep.subr.bf16.mxu0 0
    %1972 = vmatpush1.bf16.msra.mxu0 0
    %1973 = vmatprep.subr.bf16.mxu0 0
    %1974 = vmatpush1.bf16.msra.mxu0 0
    %1975 = vmatprep.subr.bf16.mxu0 0
    %1976 = vmatpush1.bf16.msra.mxu0 0
    %1977 = vmatprep.subr.bf16.mxu0 0
    %1978 = vmatpush1.bf16.msra.mxu0 0
    %1979 = vmatprep.subr.bf16.mxu0 0
    %1980 = vmatpush1.bf16.msra.mxu0 0
    %1981 = vmatprep.subr.bf16.mxu0 0
    %1982 = vmatpush1.bf16.msra.mxu0 0
    %1983 = vmatprep.subr.bf16.mxu0 0
    %1984 = vmatpush1.bf16.msra.mxu0 0
    %1985 = vmatprep.mubr.bf16.mxu0 0
    %1986 = vmatmul.mubr.bf16.gmra.mrb[0].mxu0 %v1556
    %v1987 = vpop.f32.mrb[0].mxu0
    %v1988 = vadd.f32 0.0, %v1987
    %v1989 = vpop.f32.mrb[0].mxu0
    %v1990 = vadd.f32 0.0, %v1989
    %v1991 = vpop.f32.mrb[0].mxu0
    %v1992 = vpop.f32.mrb[0].mxu0
    %1993 = vdwg.mxu0
    %v1994 = vadd.f32 %v276, %v1947
    %v1995 = vadd.f32 %v278, %v1949
    %v1996 = vadd.f32 %v317, %v1988
    %v1997 = vadd.f32 %v319, %v1990
    %v1998 = vtanh.pop %v1994
    %v1999 = vtanh.pop %v1995
    %v2000 = vtanh.pop %v1996
    %v2001 = vtanh.pop %v1997
    %v2002 = vmul.f32 %v1998, 0.5
    %v2003 = vadd.f32 %v2002, 0.5
    %v2004 = vmul.f32 %v1999, 0.5
    %v2005 = vadd.f32 %v2004, 0.5
    %v2006 = vmul.f32 %v2001, 0.5
    %v2007 = vadd.f32 %v2006, 0.5
    %v2008 = vmul.f32 %v2005, %v1553
    %v2009 = vmul.f32 %v2003, %v2000
    %v2010 = vadd.f32 %v2008, %v2009
    %v2011 = vtanh.pop %v2010
    %v2012 = vmul.f32 %v2007, %v2011
    %v2013 = vpack.c.bf16 %v2012, %v2012
    %v2014 = vpack.c.bf16 %v1718, %v1718
    %v2015 = vld [vmem:[#allocation2] sm:$0xff]
    %v2016 = vld [vmem:[#allocation2 + $0x8] sm:$0xff]
    %v2017 = vld [vmem:[#allocation2 + $0x10] sm:$0xff]
    %v2018 = vld [vmem:[#allocation2 + $0x18] sm:$0xff]
    %v2019 = vld [vmem:[#allocation2 + $0x20] sm:$0xff]
    %v2020 = vld [vmem:[#allocation2 + $0x28] sm:$0xff]
    %v2021 = vld [vmem:[#allocation2 + $0x30] sm:$0xff]
    %v2022 = vld [vmem:[#allocation2 + $0x38] sm:$0xff]
    %v2023 = vld [vmem:[#allocation2 + $0x40] sm:$0xff]
    %v2024 = vld [vmem:[#allocation2 + $0x48] sm:$0xff]
    %v2025 = vld [vmem:[#allocation2 + $0x50] sm:$0xff]
    %v2026 = vld [vmem:[#allocation2 + $0x58] sm:$0xff]
    %v2027 = vld [vmem:[#allocation2 + $0x60] sm:$0xff]
    %v2028 = vld [vmem:[#allocation2 + $0x68] sm:$0xff]
    %v2029 = vld [vmem:[#allocation2 + $0x70] sm:$0xff]
    %v2030 = vld [vmem:[#allocation2 + $0x78] sm:$0xff]
    %v2031 = vld [vmem:[#allocation2 + $0x80] sm:$0xff]
    %v2032 = vld [vmem:[#allocation2 + $0x88] sm:$0xff]
    %v2033 = vld [vmem:[#allocation2 + $0x90] sm:$0xff]
    %v2034 = vld [vmem:[#allocation2 + $0x98] sm:$0xff]
    %v2035 = vld [vmem:[#allocation2 + $0xa0] sm:$0xff]
    %v2036 = vld [vmem:[#allocation2 + $0xa8] sm:$0xff]
    %v2037 = vld [vmem:[#allocation2 + $0xb0] sm:$0xff]
    %v2038 = vld [vmem:[#allocation2 + $0xb8] sm:$0xff]
    %v2039 = vld [vmem:[#allocation2 + $0xc0] sm:$0xff]
    %v2040 = vld [vmem:[#allocation2 + $0xc8] sm:$0xff]
    %v2041 = vld [vmem:[#allocation2 + $0xd0] sm:$0xff]
    %v2042 = vld [vmem:[#allocation2 + $0xd8] sm:$0xff]
    %v2043 = vld [vmem:[#allocation2 + $0xe0] sm:$0xff]
    %v2044 = vld [vmem:[#allocation2 + $0xe8] sm:$0xff]
    %v2045 = vld [vmem:[#allocation2 + $0xf0] sm:$0xff]
    %v2046 = vld [vmem:[#allocation2 + $0xf8] sm:$0xff]
    %v2047 = vld [vmem:[#allocation2 + $0x100] sm:$0xff]
    %v2048 = vld [vmem:[#allocation2 + $0x108] sm:$0xff]
    %v2049 = vld [vmem:[#allocation2 + $0x110] sm:$0xff]
    %v2050 = vld [vmem:[#allocation2 + $0x118] sm:$0xff]
    %v2051 = vld [vmem:[#allocation2 + $0x120] sm:$0xff]
    %v2052 = vld [vmem:[#allocation2 + $0x128] sm:$0xff]
    %v2053 = vld [vmem:[#allocation2 + $0x130] sm:$0xff]
    %v2054 = vld [vmem:[#allocation2 + $0x138] sm:$0xff]
    %v2055 = vld [vmem:[#allocation2 + $0x140] sm:$0xff]
    %v2056 = vld [vmem:[#allocation2 + $0x148] sm:$0xff]
    %v2057 = vld [vmem:[#allocation2 + $0x150] sm:$0xff]
    %v2058 = vld [vmem:[#allocation2 + $0x158] sm:$0xff]
    %v2059 = vld [vmem:[#allocation2 + $0x160] sm:$0xff]
    %v2060 = vld [vmem:[#allocation2 + $0x168] sm:$0xff]
    %v2061 = vld [vmem:[#allocation2 + $0x170] sm:$0xff]
    %v2062 = vld [vmem:[#allocation2 + $0x178] sm:$0xff]
    %v2063 = vld [vmem:[#allocation2 + $0x180] sm:$0xff]
    %v2064 = vld [vmem:[#allocation2 + $0x188] sm:$0xff]
    %v2065 = vld [vmem:[#allocation2 + $0x190] sm:$0xff]
    %v2066 = vld [vmem:[#allocation2 + $0x198] sm:$0xff]
    %v2067 = vld [vmem:[#allocation2 + $0x1a0] sm:$0xff]
    %v2068 = vld [vmem:[#allocation2 + $0x1a8] sm:$0xff]
    %v2069 = vld [vmem:[#allocation2 + $0x1b0] sm:$0xff]
    %v2070 = vld [vmem:[#allocation2 + $0x1b8] sm:$0xff]
    %v2071 = vld [vmem:[#allocation2 + $0x1c0] sm:$0xff]
    %v2072 = vld [vmem:[#allocation2 + $0x1c8] sm:$0xff]
    %v2073 = vld [vmem:[#allocation2 + $0x1d0] sm:$0xff]
    %v2074 = vld [vmem:[#allocation2 + $0x1d8] sm:$0xff]
    %v2075 = vld [vmem:[#allocation2 + $0x1e0] sm:$0xff]
    %v2076 = vld [vmem:[#allocation2 + $0x1e8] sm:$0xff]
    %v2077 = vld [vmem:[#allocation2 + $0x1f0] sm:$0xff]
    %v2078 = vld [vmem:[#allocation2 + $0x1f8] sm:$0xff]
    %2079 = vmatprep.subr.bf16.mxu0 %v2016
    %2080 = vmatpush1.bf16.msra.mxu0 %v2015
    %2081 = vmatprep.subr.bf16.mxu0 %v2020
    %2082 = vmatpush1.bf16.msra.mxu0 %v2019
    %2083 = vmatprep.subr.bf16.mxu0 %v2024
    %2084 = vmatpush1.bf16.msra.mxu0 %v2023
    %2085 = vmatprep.subr.bf16.mxu0 %v2028
    %2086 = vmatpush1.bf16.msra.mxu0 %v2027
    %2087 = vmatprep.subr.bf16.mxu0 %v2032
    %2088 = vmatpush1.bf16.msra.mxu0 %v2031
    %2089 = vmatprep.subr.bf16.mxu0 %v2036
    %2090 = vmatpush1.bf16.msra.mxu0 %v2035
    %2091 = vmatprep.subr.bf16.mxu0 %v2040
    %2092 = vmatpush1.bf16.msra.mxu0 %v2039
    %2093 = vmatprep.subr.bf16.mxu0 %v2044
    %2094 = vmatpush1.bf16.msra.mxu0 %v2043
    %2095 = vmatprep.subr.bf16.mxu0 %v2048
    %2096 = vmatpush1.bf16.msra.mxu0 %v2047
    %2097 = vmatprep.subr.bf16.mxu0 %v2052
    %2098 = vmatpush1.bf16.msra.mxu0 %v2051
    %2099 = vmatprep.subr.bf16.mxu0 %v2056
    %2100 = vmatpush1.bf16.msra.mxu0 %v2055
    %2101 = vmatprep.subr.bf16.mxu0 %v2060
    %2102 = vmatpush1.bf16.msra.mxu0 %v2059
    %2103 = vmatprep.subr.bf16.mxu0 %v2064
    %2104 = vmatpush1.bf16.msra.mxu0 %v2063
    %2105 = vmatprep.subr.bf16.mxu0 %v2068
    %2106 = vmatpush1.bf16.msra.mxu0 %v2067
    %2107 = vmatprep.subr.bf16.mxu0 %v2072
    %2108 = vmatpush1.bf16.msra.mxu0 %v2071
    %2109 = vmatprep.subr.bf16.mxu0 %v2076
    %2110 = vmatpush1.bf16.msra.mxu0 %v2075
    %2111 = vmatprep.mubr.bf16.mxu0 %v2014
    %2112 = vmatmul.mubr.bf16.gmra.mrb[0].mxu0 %v2013
    %v2113 = vpop.f32.mrb[0].mxu0
    %v2114 = vadd.f32 %v691, %v2113
    %v2115 = vpop.f32.mrb[0].mxu0
    %v2116 = vadd.f32 %v695, %v2115
    %v2117 = vpop.f32.mrb[0].mxu0
    %v2118 = vpop.f32.mrb[0].mxu0
    %2119 = vdwg.mxu0
    %2120 = vmatprep.subr.bf16.mxu0 %v2018
    %2121 = vmatpush1.bf16.msra.mxu0 %v2017
    %2122 = vmatprep.subr.bf16.mxu0 %v2022
    %2123 = vmatpush1.bf16.msra.mxu0 %v2021
    %2124 = vmatprep.subr.bf16.mxu0 %v2026
    %2125 = vmatpush1.bf16.msra.mxu0 %v2025
    %2126 = vmatprep.subr.bf16.mxu0 %v2030
    %2127 = vmatpush1.bf16.msra.mxu0 %v2029
    %2128 = vmatprep.subr.bf16.mxu0 %v2034
    %2129 = vmatpush1.bf16.msra.mxu0 %v2033
    %2130 = vmatprep.subr.bf16.mxu0 %v2038
    %2131 = vmatpush1.bf16.msra.mxu0 %v2037
    %2132 = vmatprep.subr.bf16.mxu0 %v2042
    %2133 = vmatpush1.bf16.msra.mxu0 %v2041
    %2134 = vmatprep.subr.bf16.mxu0 %v2046
    %2135 = vmatpush1.bf16.msra.mxu0 %v2045
    %2136 = vmatprep.subr.bf16.mxu0 %v2050
    %2137 = vmatpush1.bf16.msra.mxu0 %v2049
    %2138 = vmatprep.subr.bf16.mxu0 %v2054
    %2139 = vmatpush1.bf16.msra.mxu0 %v2053
    %2140 = vmatprep.subr.bf16.mxu0 %v2058
    %2141 = vmatpush1.bf16.msra.mxu0 %v2057
    %2142 = vmatprep.subr.bf16.mxu0 %v2062
    %2143 = vmatpush1.bf16.msra.mxu0 %v2061
    %2144 = vmatprep.subr.bf16.mxu0 %v2066
    %2145 = vmatpush1.bf16.msra.mxu0 %v2065
    %2146 = vmatprep.subr.bf16.mxu0 %v2070
    %2147 = vmatpush1.bf16.msra.mxu0 %v2069
    %2148 = vmatprep.subr.bf16.mxu0 %v2074
    %2149 = vmatpush1.bf16.msra.mxu0 %v2073
    %2150 = vmatprep.subr.bf16.mxu0 %v2078
    %2151 = vmatpush1.bf16.msra.mxu0 %v2077
    %2152 = vmatprep.mubr.bf16.mxu0 %v2014
    %2153 = vmatmul.mubr.bf16.gmra.mrb[0].mxu0 %v2013
    %v2154 = vpop.f32.mrb[0].mxu0
    %v2155 = vadd.f32 %v699, %v2154
    %v2156 = vpop.f32.mrb[0].mxu0
    %v2157 = vadd.f32 %v703, %v2156
    %v2158 = vpop.f32.mrb[0].mxu0
    %v2159 = vpop.f32.mrb[0].mxu0
    %2160 = vdwg.mxu0
    %v2161 = vtanh.pop %v2114
    %v2162 = vtanh.pop %v2116
    %v2163 = vtanh.pop %v2155
    %v2164 = vtanh.pop %v2157
    %v2165 = vmul.f32 %v2161, 0.5
    %v2166 = vadd.f32 %v2165, 0.5
    %v2167 = vmul.f32 %v2162, 0.5
    %v2168 = vadd.f32 %v2167, 0.5
    %v2169 = vmul.f32 %v2164, 0.5
    %v2170 = vadd.f32 %v2169, 0.5
    %v2171 = vmul.f32 %v2168, %v1716
    %v2172 = vmul.f32 %v2166, %v2163
    %v2173 = vadd.f32 %v2171, %v2172
    %v2174 = vtanh.pop %v2173
    %v2175 = vmul.f32 %v2170, %v2174
    %2176 = vst [vmem:[#allocation3 + $0x3] sm:$0x1] %v2175
    %v2177 = vld [vmem:[#allocation10] sm:$0xff]
    %v2178 = vld [vmem:[#allocation10 + $0x8] sm:$0xff]
    %v2179 = vld [vmem:[#allocation10 + $0x10] sm:$0xff]
    %v2180 = vld [vmem:[#allocation10 + $0x18] sm:$0xff]
    %v2181 = vld [vmem:[#allocation10 + $0x20] sm:$0xff]
    %v2182 = vld [vmem:[#allocation10 + $0x28] sm:$0xff]
    %v2183 = vld [vmem:[#allocation10 + $0x30] sm:$0xff]
    %v2184 = vld [vmem:[#allocation10 + $0x38] sm:$0xff]
    %v2185 = vld [vmem:[#allocation10 + $0x40] sm:$0xff]
    %v2186 = vld [vmem:[#allocation10 + $0x48] sm:$0xff]
    %v2187 = vld [vmem:[#allocation10 + $0x50] sm:$0xff]
    %v2188 = vld [vmem:[#allocation10 + $0x58] sm:$0xff]
    %v2189 = vld [vmem:[#allocation10 + $0x60] sm:$0xff]
    %v2190 = vld [vmem:[#allocation10 + $0x68] sm:$0xff]
    %v2191 = vld [vmem:[#allocation10 + $0x70] sm:$0xff]
    %v2192 = vld [vmem:[#allocation10 + $0x78] sm:$0xff]
    %v2193 = vld [vmem:[#allocation10 + $0x80] sm:$0xff]
    %v2194 = vld [vmem:[#allocation10 + $0x88] sm:$0xff]
    %v2195 = vld [vmem:[#allocation10 + $0x90] sm:$0xff]
    %v2196 = vld [vmem:[#allocation10 + $0x98] sm:$0xff]
    %v2197 = vld [vmem:[#allocation10 + $0xa0] sm:$0xff]
    %v2198 = vld [vmem:[#allocation10 + $0xa8] sm:$0xff]
    %v2199 = vld [vmem:[#allocation10 + $0xb0] sm:$0xff]
    %v2200 = vld [vmem:[#allocation10 + $0xb8] sm:$0xff]
    %v2201 = vld [vmem:[#allocation10 + $0xc0] sm:$0xff]
    %v2202 = vld [vmem:[#allocation10 + $0xc8] sm:$0xff]
    %v2203 = vld [vmem:[#allocation10 + $0xd0] sm:$0xff]
    %v2204 = vld [vmem:[#allocation10 + $0xd8] sm:$0xff]
    %v2205 = vld [vmem:[#allocation10 + $0xe0] sm:$0xff]
    %v2206 = vld [vmem:[#allocation10 + $0xe8] sm:$0xff]
    %v2207 = vld [vmem:[#allocation10 + $0xf0] sm:$0xff]
    %v2208 = vld [vmem:[#allocation10 + $0xf8] sm:$0xff]
    %v2241 = vunpack.c.l.b16 %v2177
    %v2242 = vunpack.c.h.b16 %v2177
    %v2243 = vunpack.c.l.b16 %v2178
    %v2244 = vunpack.c.h.b16 %v2178
    %v2245 = vunpack.c.l.b16 %v2179
    %v2246 = vunpack.c.h.b16 %v2179
    %v2247 = vunpack.c.l.b16 %v2180
    %v2248 = vunpack.c.h.b16 %v2180
    %v2249 = vunpack.c.l.b16 %v2181
    %v2250 = vunpack.c.h.b16 %v2181
    %v2251 = vunpack.c.l.b16 %v2182
    %v2252 = vunpack.c.h.b16 %v2182
    %v2253 = vunpack.c.l.b16 %v2183
    %v2254 = vunpack.c.h.b16 %v2183
    %v2255 = vunpack.c.l.b16 %v2184
    %v2256 = vunpack.c.h.b16 %v2184
    %v2257 = vunpack.c.l.b16 %v2185
    %v2258 = vunpack.c.h.b16 %v2185
    %v2259 = vunpack.c.l.b16 %v2186
    %v2260 = vunpack.c.h.b16 %v2186
    %v2261 = vunpack.c.l.b16 %v2187
    %v2262 = vunpack.c.h.b16 %v2187
    %v2263 = vunpack.c.l.b16 %v2188
    %v2264 = vunpack.c.h.b16 %v2188
    %v2265 = vunpack.c.l.b16 %v2189
    %v2266 = vunpack.c.h.b16 %v2189
    %v2267 = vunpack.c.l.b16 %v2190
    %v2268 = vunpack.c.h.b16 %v2190
    %v2269 = vunpack.c.l.b16 %v2191
    %v2270 = vunpack.c.h.b16 %v2191
    %v2271 = vunpack.c.l.b16 %v2192
    %v2272 = vunpack.c.h.b16 %v2192
    %v2273 = vunpack.c.l.b16 %v2193
    %v2274 = vunpack.c.h.b16 %v2193
    %v2275 = vunpack.c.l.b16 %v2194
    %v2276 = vunpack.c.h.b16 %v2194
    %v2277 = vunpack.c.l.b16 %v2195
    %v2278 = vunpack.c.h.b16 %v2195
    %v2279 = vunpack.c.l.b16 %v2196
    %v2280 = vunpack.c.h.b16 %v2196
    %v2281 = vunpack.c.l.b16 %v2197
    %v2282 = vunpack.c.h.b16 %v2197
    %v2283 = vunpack.c.l.b16 %v2198
    %v2284 = vunpack.c.h.b16 %v2198
    %v2285 = vunpack.c.l.b16 %v2199
    %v2286 = vunpack.c.h.b16 %v2199
    %v2287 = vunpack.c.l.b16 %v2200
    %v2288 = vunpack.c.h.b16 %v2200
    %v2289 = vunpack.c.l.b16 %v2201
    %v2290 = vunpack.c.h.b16 %v2201
    %v2291 = vunpack.c.l.b16 %v2202
    %v2292 = vunpack.c.h.b16 %v2202
    %v2293 = vunpack.c.l.b16 %v2203
    %v2294 = vunpack.c.h.b16 %v2203
    %v2295 = vunpack.c.l.b16 %v2204
    %v2296 = vunpack.c.h.b16 %v2204
    %v2297 = vunpack.c.l.b16 %v2205
    %v2298 = vunpack.c.h.b16 %v2205
    %v2299 = vunpack.c.l.b16 %v2206
    %v2300 = vunpack.c.h.b16 %v2206
    %v2301 = vunpack.c.l.b16 %v2207
    %v2302 = vunpack.c.h.b16 %v2207
    %v2303 = vunpack.c.l.b16 %v2208
    %v2304 = vunpack.c.h.b16 %v2208
    %v2305 = vpack.c.b16 %v2245, %v2241
    %v2306 = vpack.c.b16 %v2246, %v2242
    %v2307 = vpack.c.b16 %v2247, %v2243
    %v2308 = vpack.c.b16 %v2248, %v2244
    %v2309 = vpack.c.b16 %v2253, %v2249
    %v2310 = vpack.c.b16 %v2254, %v2250
    %v2311 = vpack.c.b16 %v2255, %v2251
    %v2312 = vpack.c.b16 %v2256, %v2252
    %v2313 = vpack.c.b16 %v2261, %v2257
    %v2314 = vpack.c.b16 %v2262, %v2258
    %v2315 = vpack.c.b16 %v2263, %v2259
    %v2316 = vpack.c.b16 %v2264, %v2260
    %v2317 = vpack.c.b16 %v2269, %v2265
    %v2318 = vpack.c.b16 %v2270, %v2266
    %v2319 = vpack.c.b16 %v2271, %v2267
    %v2320 = vpack.c.b16 %v2272, %v2268
    %v2321 = vpack.c.b16 %v2277, %v2273
    %v2322 = vpack.c.b16 %v2278, %v2274
    %v2323 = vpack.c.b16 %v2279, %v2275
    %v2324 = vpack.c.b16 %v2280, %v2276
    %v2325 = vpack.c.b16 %v2285, %v2281
    %v2326 = vpack.c.b16 %v2286, %v2282
    %v2327 = vpack.c.b16 %v2287, %v2283
    %v2328 = vpack.c.b16 %v2288, %v2284
    %v2329 = vpack.c.b16 %v2293, %v2289
    %v2330 = vpack.c.b16 %v2294, %v2290
    %v2331 = vpack.c.b16 %v2295, %v2291
    %v2332 = vpack.c.b16 %v2296, %v2292
    %v2333 = vpack.c.b16 %v2301, %v2297
    %v2334 = vpack.c.b16 %v2302, %v2298
    %v2335 = vpack.c.b16 %v2303, %v2299
    %v2336 = vpack.c.b16 %v2304, %v2300
    %2369 = vmatprep.subr.bf16.mxu0 %v2306
    %2370 = vmatpush1.bf16.msra.mxu0 %v2305
    %2371 = vmatprep.subr.bf16.mxu0 %v2310
    %2372 = vmatpush1.bf16.msra.mxu0 %v2309
    %2373 = vmatprep.subr.bf16.mxu0 %v2314
    %2374 = vmatpush1.bf16.msra.mxu0 %v2313
    %2375 = vmatprep.subr.bf16.mxu0 %v2318
    %2376 = vmatpush1.bf16.msra.mxu0 %v2317
    %2377 = vmatprep.subr.bf16.mxu0 %v2322
    %2378 = vmatpush1.bf16.msra.mxu0 %v2321
    %2379 = vmatprep.subr.bf16.mxu0 %v2326
    %2380 = vmatpush1.bf16.msra.mxu0 %v2325
    %2381 = vmatprep.subr.bf16.mxu0 %v2330
    %2382 = vmatpush1.bf16.msra.mxu0 %v2329
    %2383 = vmatprep.subr.bf16.mxu0 %v2334
    %2384 = vmatpush1.bf16.msra.mxu0 %v2333
    %2385 = vmatprep.subr.bf16.mxu0 0
    %2386 = vmatpush1.bf16.msra.mxu0 0
    %2387 = vmatprep.subr.bf16.mxu0 0
    %2388 = vmatpush1.bf16.msra.mxu0 0
    %2389 = vmatprep.subr.bf16.mxu0 0
    %2390 = vmatpush1.bf16.msra.mxu0 0
    %2391 = vmatprep.subr.bf16.mxu0 0
    %2392 = vmatpush1.bf16.msra.mxu0 0
    %2393 = vmatprep.subr.bf16.mxu0 0
    %2394 = vmatpush1.bf16.msra.mxu0 0
    %2395 = vmatprep.subr.bf16.mxu0 0
    %2396 = vmatpush1.bf16.msra.mxu0 0
    %2397 = vmatprep.subr.bf16.mxu0 0
    %2398 = vmatpush1.bf16.msra.mxu0 0
    %2399 = vmatprep.subr.bf16.mxu0 0
    %2400 = vmatpush1.bf16.msra.mxu0 0
    %2401 = vmatprep.mubr.bf16.mxu0 0
    %2402 = vmatmul.mubr.bf16.gmra.mrb[0].mxu0 %v2013
    %v2403 = vpop.f32.mrb[0].mxu0
    %v2404 = vadd.f32 0.0, %v2403
    %v2405 = vpop.f32.mrb[0].mxu0
    %v2406 = vadd.f32 0.0, %v2405
    %v2407 = vpop.f32.mrb[0].mxu0
    %v2408 = vpop.f32.mrb[0].mxu0
    %2409 = vdwg.mxu0
    %2410 = vmatprep.subr.bf16.mxu0 %v2308
    %2411 = vmatpush1.bf16.msra.mxu0 %v2307
    %2412 = vmatprep.subr.bf16.mxu0 %v2312
    %2413 = vmatpush1.bf16.msra.mxu0 %v2311
    %2414 = vmatprep.subr.bf16.mxu0 %v2316
    %2415 = vmatpush1.bf16.msra.mxu0 %v2315
    %2416 = vmatprep.subr.bf16.mxu0 %v2320
    %2417 = vmatpush1.bf16.msra.mxu0 %v2319
    %2418 = vmatprep.subr.bf16.mxu0 %v2324
    %2419 = vmatpush1.bf16.msra.mxu0 %v2323
    %2420 = vmatprep.subr.bf16.mxu0 %v2328
    %2421 = vmatpush1.bf16.msra.mxu0 %v2327
    %2422 = vmatprep.subr.bf16.mxu0 %v2332
    %2423 = vmatpush1.bf16.msra.mxu0 %v2331
    %2424 = vmatprep.subr.bf16.mxu0 %v2336
    %2425 = vmatpush1.bf16.msra.mxu0 %v2335
    %2426 = vmatprep.subr.bf16.mxu0 0
    %2427 = vmatpush1.bf16.msra.mxu0 0
    %2428 = vmatprep.subr.bf16.mxu0 0
    %2429 = vmatpush1.bf16.msra.mxu0 0
    %2430 = vmatprep.subr.bf16.mxu0 0
    %2431 = vmatpush1.bf16.msra.mxu0 0
    %2432 = vmatprep.subr.bf16.mxu0 0
    %2433 = vmatpush1.bf16.msra.mxu0 0
    %2434 = vmatprep.subr.bf16.mxu0 0
    %2435 = vmatpush1.bf16.msra.mxu0 0
    %2436 = vmatprep.subr.bf16.mxu0 0
    %2437 = vmatpush1.bf16.msra.mxu0 0
    %2438 = vmatprep.subr.bf16.mxu0 0
    %2439 = vmatpush1.bf16.msra.mxu0 0
    %2440 = vmatprep.subr.bf16.mxu0 0
    %2441 = vmatpush1.bf16.msra.mxu0 0
    %2442 = vmatprep.mubr.bf16.mxu0 0
    %2443 = vmatmul.mubr.bf16.gmra.mrb[0].mxu0 %v2013
    %v2444 = vpop.f32.mrb[0].mxu0
    %v2445 = vadd.f32 0.0, %v2444
    %v2446 = vpop.f32.mrb[0].mxu0
    %v2447 = vadd.f32 0.0, %v2446
    %v2448 = vpop.f32.mrb[0].mxu0
    %v2449 = vpop.f32.mrb[0].mxu0
    %2450 = vdwg.mxu0
    %v2451 = vadd.f32 %v276, %v2404
    %v2452 = vadd.f32 %v278, %v2406
    %v2453 = vadd.f32 %v317, %v2445
    %v2454 = vadd.f32 %v319, %v2447
    %v2455 = vtanh.pop %v2451
    %v2456 = vtanh.pop %v2452
    %v2457 = vtanh.pop %v2453
    %v2458 = vtanh.pop %v2454
    %v2459 = vmul.f32 %v2455, 0.5
    %v2460 = vadd.f32 %v2459, 0.5
    %v2461 = vmul.f32 %v2456, 0.5
    %v2462 = vadd.f32 %v2461, 0.5
    %v2463 = vmul.f32 %v2458, 0.5
    %v2464 = vadd.f32 %v2463, 0.5
    %v2465 = vmul.f32 %v2462, %v2010
    %v2466 = vmul.f32 %v2460, %v2457
    %v2467 = vadd.f32 %v2465, %v2466
    %v2468 = vtanh.pop %v2467
    %v2469 = vmul.f32 %v2464, %v2468
    %v2470 = vpack.c.bf16 %v2469, %v2469
    %v2471 = vpack.c.bf16 %v2175, %v2175
    %v2472 = vld [vmem:[#allocation2] sm:$0xff]
    %v2473 = vld [vmem:[#allocation2 + $0x8] sm:$0xff]
    %v2474 = vld [vmem:[#allocation2 + $0x10] sm:$0xff]
    %v2475 = vld [vmem:[#allocation2 + $0x18] sm:$0xff]
    %v2476 = vld [vmem:[#allocation2 + $0x20] sm:$0xff]
    %v2477 = vld [vmem:[#allocation2 + $0x28] sm:$0xff]
    %v2478 = vld [vmem:[#allocation2 + $0x30] sm:$0xff]
    %v2479 = vld [vmem:[#allocation2 + $0x38] sm:$0xff]
    %v2480 = vld [vmem:[#allocation2 + $0x40] sm:$0xff]
    %v2481 = vld [vmem:[#allocation2 + $0x48] sm:$0xff]
    %v2482 = vld [vmem:[#allocation2 + $0x50] sm:$0xff]
    %v2483 = vld [vmem:[#allocation2 + $0x58] sm:$0xff]
    %v2484 = vld [vmem:[#allocation2 + $0x60] sm:$0xff]
    %v2485 = vld [vmem:[#allocation2 + $0x68] sm:$0xff]
    %v2486 = vld [vmem:[#allocation2 + $0x70] sm:$0xff]
    %v2487 = vld [vmem:[#allocation2 + $0x78] sm:$0xff]
    %v2488 = vld [vmem:[#allocation2 + $0x80] sm:$0xff]
    %v2489 = vld [vmem:[#allocation2 + $0x88] sm:$0xff]
    %v2490 = vld [vmem:[#allocation2 + $0x90] sm:$0xff]
    %v2491 = vld [vmem:[#allocation2 + $0x98] sm:$0xff]
    %v2492 = vld [vmem:[#allocation2 + $0xa0] sm:$0xff]
    %v2493 = vld [vmem:[#allocation2 + $0xa8] sm:$0xff]
    %v2494 = vld [vmem:[#allocation2 + $0xb0] sm:$0xff]
    %v2495 = vld [vmem:[#allocation2 + $0xb8] sm:$0xff]
    %v2496 = vld [vmem:[#allocation2 + $0xc0] sm:$0xff]
    %v2497 = vld [vmem:[#allocation2 + $0xc8] sm:$0xff]
    %v2498 = vld [vmem:[#allocation2 + $0xd0] sm:$0xff]
    %v2499 = vld [vmem:[#allocation2 + $0xd8] sm:$0xff]
    %v2500 = vld [vmem:[#allocation2 + $0xe0] sm:$0xff]
    %v2501 = vld [vmem:[#allocation2 + $0xe8] sm:$0xff]
    %v2502 = vld [vmem:[#allocation2 + $0xf0] sm:$0xff]
    %v2503 = vld [vmem:[#allocation2 + $0xf8] sm:$0xff]
    %v2504 = vld [vmem:[#allocation2 + $0x100] sm:$0xff]
    %v2505 = vld [vmem:[#allocation2 + $0x108] sm:$0xff]
    %v2506 = vld [vmem:[#allocation2 + $0x110] sm:$0xff]
    %v2507 = vld [vmem:[#allocation2 + $0x118] sm:$0xff]
    %v2508 = vld [vmem:[#allocation2 + $0x120] sm:$0xff]
    %v2509 = vld [vmem:[#allocation2 + $0x128] sm:$0xff]
    %v2510 = vld [vmem:[#allocation2 + $0x130] sm:$0xff]
    %v2511 = vld [vmem:[#allocation2 + $0x138] sm:$0xff]
    %v2512 = vld [vmem:[#allocation2 + $0x140] sm:$0xff]
    %v2513 = vld [vmem:[#allocation2 + $0x148] sm:$0xff]
    %v2514 = vld [vmem:[#allocation2 + $0x150] sm:$0xff]
    %v2515 = vld [vmem:[#allocation2 + $0x158] sm:$0xff]
    %v2516 = vld [vmem:[#allocation2 + $0x160] sm:$0xff]
    %v2517 = vld [vmem:[#allocation2 + $0x168] sm:$0xff]
    %v2518 = vld [vmem:[#allocation2 + $0x170] sm:$0xff]
    %v2519 = vld [vmem:[#allocation2 + $0x178] sm:$0xff]
    %v2520 = vld [vmem:[#allocation2 + $0x180] sm:$0xff]
    %v2521 = vld [vmem:[#allocation2 + $0x188] sm:$0xff]
    %v2522 = vld [vmem:[#allocation2 + $0x190] sm:$0xff]
    %v2523 = vld [vmem:[#allocation2 + $0x198] sm:$0xff]
    %v2524 = vld [vmem:[#allocation2 + $0x1a0] sm:$0xff]
    %v2525 = vld [vmem:[#allocation2 + $0x1a8] sm:$0xff]
    %v2526 = vld [vmem:[#allocation2 + $0x1b0] sm:$0xff]
    %v2527 = vld [vmem:[#allocation2 + $0x1b8] sm:$0xff]
    %v2528 = vld [vmem:[#allocation2 + $0x1c0] sm:$0xff]
    %v2529 = vld [vmem:[#allocation2 + $0x1c8] sm:$0xff]
    %v2530 = vld [vmem:[#allocation2 + $0x1d0] sm:$0xff]
    %v2531 = vld [vmem:[#allocation2 + $0x1d8] sm:$0xff]
    %v2532 = vld [vmem:[#allocation2 + $0x1e0] sm:$0xff]
    %v2533 = vld [vmem:[#allocation2 + $0x1e8] sm:$0xff]
    %v2534 = vld [vmem:[#allocation2 + $0x1f0] sm:$0xff]
    %v2535 = vld [vmem:[#allocation2 + $0x1f8] sm:$0xff]
    %2536 = vmatprep.subr.bf16.mxu0 %v2473
    %2537 = vmatpush1.bf16.msra.mxu0 %v2472
    %2538 = vmatprep.subr.bf16.mxu0 %v2477
    %2539 = vmatpush1.bf16.msra.mxu0 %v2476
    %2540 = vmatprep.subr.bf16.mxu0 %v2481
    %2541 = vmatpush1.bf16.msra.mxu0 %v2480
    %2542 = vmatprep.subr.bf16.mxu0 %v2485
    %2543 = vmatpush1.bf16.msra.mxu0 %v2484
    %2544 = vmatprep.subr.bf16.mxu0 %v2489
    %2545 = vmatpush1.bf16.msra.mxu0 %v2488
    %2546 = vmatprep.subr.bf16.mxu0 %v2493
    %2547 = vmatpush1.bf16.msra.mxu0 %v2492
    %2548 = vmatprep.subr.bf16.mxu0 %v2497
    %2549 = vmatpush1.bf16.msra.mxu0 %v2496
    %2550 = vmatprep.subr.bf16.mxu0 %v2501
    %2551 = vmatpush1.bf16.msra.mxu0 %v2500
    %2552 = vmatprep.subr.bf16.mxu0 %v2505
    %2553 = vmatpush1.bf16.msra.mxu0 %v2504
    %2554 = vmatprep.subr.bf16.mxu0 %v2509
    %2555 = vmatpush1.bf16.msra.mxu0 %v2508
    %2556 = vmatprep.subr.bf16.mxu0 %v2513
    %2557 = vmatpush1.bf16.msra.mxu0 %v2512
    %2558 = vmatprep.subr.bf16.mxu0 %v2517
    %2559 = vmatpush1.bf16.msra.mxu0 %v2516
    %2560 = vmatprep.subr.bf16.mxu0 %v2521
    %2561 = vmatpush1.bf16.msra.mxu0 %v2520
    %2562 = vmatprep.subr.bf16.mxu0 %v2525
    %2563 = vmatpush1.bf16.msra.mxu0 %v2524
    %2564 = vmatprep.subr.bf16.mxu0 %v2529
    %2565 = vmatpush1.bf16.msra.mxu0 %v2528
    %2566 = vmatprep.subr.bf16.mxu0 %v2533
    %2567 = vmatpush1.bf16.msra.mxu0 %v2532
    %2568 = vmatprep.mubr.bf16.mxu0 %v2471
    %2569 = vmatmul.mubr.bf16.gmra.mrb[0].mxu0 %v2470
    %v2570 = vpop.f32.mrb[0].mxu0
    %v2571 = vadd.f32 %v691, %v2570
    %v2572 = vpop.f32.mrb[0].mxu0
    %v2573 = vadd.f32 %v695, %v2572
    %v2574 = vpop.f32.mrb[0].mxu0
    %v2575 = vpop.f32.mrb[0].mxu0
    %2576 = vdwg.mxu0
    %2577 = vmatprep.subr.bf16.mxu0 %v2475
    %2578 = vmatpush1.bf16.msra.mxu0 %v2474
    %2579 = vmatprep.subr.bf16.mxu0 %v2479
    %2580 = vmatpush1.bf16.msra.mxu0 %v2478
    %2581 = vmatprep.subr.bf16.mxu0 %v2483
    %2582 = vmatpush1.bf16.msra.mxu0 %v2482
    %2583 = vmatprep.subr.bf16.mxu0 %v2487
    %2584 = vmatpush1.bf16.msra.mxu0 %v2486
    %2585 = vmatprep.subr.bf16.mxu0 %v2491
    %2586 = vmatpush1.bf16.msra.mxu0 %v2490
    %2587 = vmatprep.subr.bf16.mxu0 %v2495
    %2588 = vmatpush1.bf16.msra.mxu0 %v2494
    %2589 = vmatprep.subr.bf16.mxu0 %v2499
    %2590 = vmatpush1.bf16.msra.mxu0 %v2498
    %2591 = vmatprep.subr.bf16.mxu0 %v2503
    %2592 = vmatpush1.bf16.msra.mxu0 %v2502
    %2593 = vmatprep.subr.bf16.mxu0 %v2507
    %2594 = vmatpush1.bf16.msra.mxu0 %v2506
    %2595 = vmatprep.subr.bf16.mxu0 %v2511
    %2596 = vmatpush1.bf16.msra.mxu0 %v2510
    %2597 = vmatprep.subr.bf16.mxu0 %v2515
    %2598 = vmatpush1.bf16.msra.mxu0 %v2514
    %2599 = vmatprep.subr.bf16.mxu0 %v2519
    %2600 = vmatpush1.bf16.msra.mxu0 %v2518
    %2601 = vmatprep.subr.bf16.mxu0 %v2523
    %2602 = vmatpush1.bf16.msra.mxu0 %v2522
    %2603 = vmatprep.subr.bf16.mxu0 %v2527
    %2604 = vmatpush1.bf16.msra.mxu0 %v2526
    %2605 = vmatprep.subr.bf16.mxu0 %v2531
    %2606 = vmatpush1.bf16.msra.mxu0 %v2530
    %2607 = vmatprep.subr.bf16.mxu0 %v2535
    %2608 = vmatpush1.bf16.msra.mxu0 %v2534
    %2609 = vmatprep.mubr.bf16.mxu0 %v2471
    %2610 = vmatmul.mubr.bf16.gmra.mrb[0].mxu0 %v2470
    %v2611 = vpop.f32.mrb[0].mxu0
    %v2612 = vadd.f32 %v699, %v2611
    %v2613 = vpop.f32.mrb[0].mxu0
    %v2614 = vadd.f32 %v703, %v2613
    %v2615 = vpop.f32.mrb[0].mxu0
    %v2616 = vpop.f32.mrb[0].mxu0
    %2617 = vdwg.mxu0
    %v2618 = vtanh.pop %v2571
    %v2619 = vtanh.pop %v2573
    %v2620 = vtanh.pop %v2612
    %v2621 = vtanh.pop %v2614
    %v2622 = vmul.f32 %v2618, 0.5
    %v2623 = vadd.f32 %v2622, 0.5
    %v2624 = vmul.f32 %v2619, 0.5
    %v2625 = vadd.f32 %v2624, 0.5
    %v2626 = vmul.f32 %v2621, 0.5
    %v2627 = vadd.f32 %v2626, 0.5
    %v2628 = vmul.f32 %v2625, %v2173
    %v2629 = vmul.f32 %v2623, %v2620
    %v2630 = vadd.f32 %v2628, %v2629
    %v2631 = vtanh.pop %v2630
    %v2632 = vmul.f32 %v2627, %v2631
    %2633 = vst [vmem:[#allocation3 + $0x4] sm:$0x1] %v2632
    %v2634 = vld [vmem:[#allocation10] sm:$0xff]
    %v2635 = vld [vmem:[#allocation10 + $0x8] sm:$0xff]
    %v2636 = vld [vmem:[#allocation10 + $0x10] sm:$0xff]
    %v2637 = vld [vmem:[#allocation10 + $0x18] sm:$0xff]
    %v2638 = vld [vmem:[#allocation10 + $0x20] sm:$0xff]
    %v2639 = vld [vmem:[#allocation10 + $0x28] sm:$0xff]
    %v2640 = vld [vmem:[#allocation10 + $0x30] sm:$0xff]
    %v2641 = vld [vmem:[#allocation10 + $0x38] sm:$0xff]
    %v2642 = vld [vmem:[#allocation10 + $0x40] sm:$0xff]
    %v2643 = vld [vmem:[#allocation10 + $0x48] sm:$0xff]
    %v2644 = vld [vmem:[#allocation10 + $0x50] sm:$0xff]
    %v2645 = vld [vmem:[#allocation10 + $0x58] sm:$0xff]
    %v2646 = vld [vmem:[#allocation10 + $0x60] sm:$0xff]
    %v2647 = vld [vmem:[#allocation10 + $0x68] sm:$0xff]
    %v2648 = vld [vmem:[#allocation10 + $0x70] sm:$0xff]
    %v2649 = vld [vmem:[#allocation10 + $0x78] sm:$0xff]
    %v2650 = vld [vmem:[#allocation10 + $0x80] sm:$0xff]
    %v2651 = vld [vmem:[#allocation10 + $0x88] sm:$0xff]
    %v2652 = vld [vmem:[#allocation10 + $0x90] sm:$0xff]
    %v2653 = vld [vmem:[#allocation10 + $0x98] sm:$0xff]
    %v2654 = vld [vmem:[#allocation10 + $0xa0] sm:$0xff]
    %v2655 = vld [vmem:[#allocation10 + $0xa8] sm:$0xff]
    %v2656 = vld [vmem:[#allocation10 + $0xb0] sm:$0xff]
    %v2657 = vld [vmem:[#allocation10 + $0xb8] sm:$0xff]
    %v2658 = vld [vmem:[#allocation10 + $0xc0] sm:$0xff]
    %v2659 = vld [vmem:[#allocation10 + $0xc8] sm:$0xff]
    %v2660 = vld [vmem:[#allocation10 + $0xd0] sm:$0xff]
    %v2661 = vld [vmem:[#allocation10 + $0xd8] sm:$0xff]
    %v2662 = vld [vmem:[#allocation10 + $0xe0] sm:$0xff]
    %v2663 = vld [vmem:[#allocation10 + $0xe8] sm:$0xff]
    %v2664 = vld [vmem:[#allocation10 + $0xf0] sm:$0xff]
    %v2665 = vld [vmem:[#allocation10 + $0xf8] sm:$0xff]
    %v2698 = vunpack.c.l.b16 %v2634
    %v2699 = vunpack.c.h.b16 %v2634
    %v2700 = vunpack.c.l.b16 %v2635
    %v2701 = vunpack.c.h.b16 %v2635
    %v2702 = vunpack.c.l.b16 %v2636
    %v2703 = vunpack.c.h.b16 %v2636
    %v2704 = vunpack.c.l.b16 %v2637
    %v2705 = vunpack.c.h.b16 %v2637
    %v2706 = vunpack.c.l.b16 %v2638
    %v2707 = vunpack.c.h.b16 %v2638
    %v2708 = vunpack.c.l.b16 %v2639
    %v2709 = vunpack.c.h.b16 %v2639
    %v2710 = vunpack.c.l.b16 %v2640
    %v2711 = vunpack.c.h.b16 %v2640
    %v2712 = vunpack.c.l.b16 %v2641
    %v2713 = vunpack.c.h.b16 %v2641
    %v2714 = vunpack.c.l.b16 %v2642
    %v2715 = vunpack.c.h.b16 %v2642
    %v2716 = vunpack.c.l.b16 %v2643
    %v2717 = vunpack.c.h.b16 %v2643
    %v2718 = vunpack.c.l.b16 %v2644
    %v2719 = vunpack.c.h.b16 %v2644
    %v2720 = vunpack.c.l.b16 %v2645
    %v2721 = vunpack.c.h.b16 %v2645
    %v2722 = vunpack.c.l.b16 %v2646
    %v2723 = vunpack.c.h.b16 %v2646
    %v2724 = vunpack.c.l.b16 %v2647
    %v2725 = vunpack.c.h.b16 %v2647
    %v2726 = vunpack.c.l.b16 %v2648
    %v2727 = vunpack.c.h.b16 %v2648
    %v2728 = vunpack.c.l.b16 %v2649
    %v2729 = vunpack.c.h.b16 %v2649
    %v2730 = vunpack.c.l.b16 %v2650
    %v2731 = vunpack.c.h.b16 %v2650
    %v2732 = vunpack.c.l.b16 %v2651
    %v2733 = vunpack.c.h.b16 %v2651
    %v2734 = vunpack.c.l.b16 %v2652
    %v2735 = vunpack.c.h.b16 %v2652
    %v2736 = vunpack.c.l.b16 %v2653
    %v2737 = vunpack.c.h.b16 %v2653
    %v2738 = vunpack.c.l.b16 %v2654
    %v2739 = vunpack.c.h.b16 %v2654
    %v2740 = vunpack.c.l.b16 %v2655
    %v2741 = vunpack.c.h.b16 %v2655
    %v2742 = vunpack.c.l.b16 %v2656
    %v2743 = vunpack.c.h.b16 %v2656
    %v2744 = vunpack.c.l.b16 %v2657
    %v2745 = vunpack.c.h.b16 %v2657
    %v2746 = vunpack.c.l.b16 %v2658
    %v2747 = vunpack.c.h.b16 %v2658
    %v2748 = vunpack.c.l.b16 %v2659
    %v2749 = vunpack.c.h.b16 %v2659
    %v2750 = vunpack.c.l.b16 %v2660
    %v2751 = vunpack.c.h.b16 %v2660
    %v2752 = vunpack.c.l.b16 %v2661
    %v2753 = vunpack.c.h.b16 %v2661
    %v2754 = vunpack.c.l.b16 %v2662
    %v2755 = vunpack.c.h.b16 %v2662
    %v2756 = vunpack.c.l.b16 %v2663
    %v2757 = vunpack.c.h.b16 %v2663
    %v2758 = vunpack.c.l.b16 %v2664
    %v2759 = vunpack.c.h.b16 %v2664
    %v2760 = vunpack.c.l.b16 %v2665
    %v2761 = vunpack.c.h.b16 %v2665
    %v2762 = vpack.c.b16 %v2702, %v2698
    %v2763 = vpack.c.b16 %v2703, %v2699
    %v2764 = vpack.c.b16 %v2704, %v2700
    %v2765 = vpack.c.b16 %v2705, %v2701
    %v2766 = vpack.c.b16 %v2710, %v2706
    %v2767 = vpack.c.b16 %v2711, %v2707
    %v2768 = vpack.c.b16 %v2712, %v2708
    %v2769 = vpack.c.b16 %v2713, %v2709
    %v2770 = vpack.c.b16 %v2718, %v2714
    %v2771 = vpack.c.b16 %v2719, %v2715
    %v2772 = vpack.c.b16 %v2720, %v2716
    %v2773 = vpack.c.b16 %v2721, %v2717
    %v2774 = vpack.c.b16 %v2726, %v2722
    %v2775 = vpack.c.b16 %v2727, %v2723
    %v2776 = vpack.c.b16 %v2728, %v2724
    %v2777 = vpack.c.b16 %v2729, %v2725
    %v2778 = vpack.c.b16 %v2734, %v2730
    %v2779 = vpack.c.b16 %v2735, %v2731
    %v2780 = vpack.c.b16 %v2736, %v2732
    %v2781 = vpack.c.b16 %v2737, %v2733
    %v2782 = vpack.c.b16 %v2742, %v2738
    %v2783 = vpack.c.b16 %v2743, %v2739
    %v2784 = vpack.c.b16 %v2744, %v2740
    %v2785 = vpack.c.b16 %v2745, %v2741
    %v2786 = vpack.c.b16 %v2750, %v2746
    %v2787 = vpack.c.b16 %v2751, %v2747
    %v2788 = vpack.c.b16 %v2752, %v2748
    %v2789 = vpack.c.b16 %v2753, %v2749
    %v2790 = vpack.c.b16 %v2758, %v2754
    %v2791 = vpack.c.b16 %v2759, %v2755
    %v2792 = vpack.c.b16 %v2760, %v2756
    %v2793 = vpack.c.b16 %v2761, %v2757
    %2826 = vmatprep.subr.bf16.mxu0 %v2763
    %2827 = vmatpush1.bf16.msra.mxu0 %v2762
    %2828 = vmatprep.subr.bf16.mxu0 %v2767
    %2829 = vmatpush1.bf16.msra.mxu0 %v2766
    %2830 = vmatprep.subr.bf16.mxu0 %v2771
    %2831 = vmatpush1.bf16.msra.mxu0 %v2770
    %2832 = vmatprep.subr.bf16.mxu0 %v2775
    %2833 = vmatpush1.bf16.msra.mxu0 %v2774
    %2834 = vmatprep.subr.bf16.mxu0 %v2779
    %2835 = vmatpush1.bf16.msra.mxu0 %v2778
    %2836 = vmatprep.subr.bf16.mxu0 %v2783
    %2837 = vmatpush1.bf16.msra.mxu0 %v2782
    %2838 = vmatprep.subr.bf16.mxu0 %v2787
    %2839 = vmatpush1.bf16.msra.mxu0 %v2786
    %2840 = vmatprep.subr.bf16.mxu0 %v2791
    %2841 = vmatpush1.bf16.msra.mxu0 %v2790
    %2842 = vmatprep.subr.bf16.mxu0 0
    %2843 = vmatpush1.bf16.msra.mxu0 0
    %2844 = vmatprep.subr.bf16.mxu0 0
    %2845 = vmatpush1.bf16.msra.mxu0 0
    %2846 = vmatprep.subr.bf16.mxu0 0
    %2847 = vmatpush1.bf16.msra.mxu0 0
    %2848 = vmatprep.subr.bf16.mxu0 0
    %2849 = vmatpush1.bf16.msra.mxu0 0
    %2850 = vmatprep.subr.bf16.mxu0 0
    %2851 = vmatpush1.bf16.msra.mxu0 0
    %2852 = vmatprep.subr.bf16.mxu0 0
    %2853 = vmatpush1.bf16.msra.mxu0 0
    %2854 = vmatprep.subr.bf16.mxu0 0
    %2855 = vmatpush1.bf16.msra.mxu0 0
    %2856 = vmatprep.subr.bf16.mxu0 0
    %2857 = vmatpush1.bf16.msra.mxu0 0
    %2858 = vmatprep.mubr.bf16.mxu0 0
    %2859 = vmatmul.mubr.bf16.gmra.mrb[0].mxu0 %v2470
    %v2860 = vpop.f32.mrb[0].mxu0
    %v2861 = vadd.f32 0.0, %v2860
    %v2862 = vpop.f32.mrb[0].mxu0
    %v2863 = vadd.f32 0.0, %v2862
    %v2864 = vpop.f32.mrb[0].mxu0
    %v2865 = vpop.f32.mrb[0].mxu0
    %2866 = vdwg.mxu0
    %2867 = vmatprep.subr.bf16.mxu0 %v2765
    %2868 = vmatpush1.bf16.msra.mxu0 %v2764
    %2869 = vmatprep.subr.bf16.mxu0 %v2769
    %2870 = vmatpush1.bf16.msra.mxu0 %v2768
    %2871 = vmatprep.subr.bf16.mxu0 %v2773
    %2872 = vmatpush1.bf16.msra.mxu0 %v2772
    %2873 = vmatprep.subr.bf16.mxu0 %v2777
    %2874 = vmatpush1.bf16.msra.mxu0 %v2776
    %2875 = vmatprep.subr.bf16.mxu0 %v2781
    %2876 = vmatpush1.bf16.msra.mxu0 %v2780
    %2877 = vmatprep.subr.bf16.mxu0 %v2785
    %2878 = vmatpush1.bf16.msra.mxu0 %v2784
    %2879 = vmatprep.subr.bf16.mxu0 %v2789
    %2880 = vmatpush1.bf16.msra.mxu0 %v2788
    %2881 = vmatprep.subr.bf16.mxu0 %v2793
    %2882 = vmatpush1.bf16.msra.mxu0 %v2792
    %2883 = vmatprep.subr.bf16.mxu0 0
    %2884 = vmatpush1.bf16.msra.mxu0 0
    %2885 = vmatprep.subr.bf16.mxu0 0
    %2886 = vmatpush1.bf16.msra.mxu0 0
    %2887 = vmatprep.subr.bf16.mxu0 0
    %2888 = vmatpush1.bf16.msra.mxu0 0
    %2889 = vmatprep.subr.bf16.mxu0 0
    %2890 = vmatpush1.bf16.msra.mxu0 0
    %2891 = vmatprep.subr.bf16.mxu0 0
    %2892 = vmatpush1.bf16.msra.mxu0 0
    %2893 = vmatprep.subr.bf16.mxu0 0
    %2894 = vmatpush1.bf16.msra.mxu0 0
    %2895 = vmatprep.subr.bf16.mxu0 0
    %2896 = vmatpush1.bf16.msra.mxu0 0
    %2897 = vmatprep.subr.bf16.mxu0 0
    %2898 = vmatpush1.bf16.msra.mxu0 0
    %2899 = vmatprep.mubr.bf16.mxu0 0
    %2900 = vmatmul.mubr.bf16.gmra.mrb[0].mxu0 %v2470
    %v2901 = vpop.f32.mrb[0].mxu0
    %v2902 = vadd.f32 0.0, %v2901
    %v2903 = vpop.f32.mrb[0].mxu0
    %v2904 = vadd.f32 0.0, %v2903
    %v2905 = vpop.f32.mrb[0].mxu0
    %v2906 = vpop.f32.mrb[0].mxu0
    %2907 = vdwg.mxu0
    %v2908 = vadd.f32 %v276, %v2861
    %v2909 = vadd.f32 %v278, %v2863
    %v2910 = vadd.f32 %v317, %v2902
    %v2911 = vadd.f32 %v319, %v2904
    %v2912 = vtanh.pop %v2908
    %v2913 = vtanh.pop %v2909
    %v2914 = vtanh.pop %v2910
    %v2915 = vtanh.pop %v2911
    %v2916 = vmul.f32 %v2912, 0.5
    %v2917 = vadd.f32 %v2916, 0.5
    %v2918 = vmul.f32 %v2913, 0.5
    %v2919 = vadd.f32 %v2918, 0.5
    %v2920 = vmul.f32 %v2915, 0.5
    %v2921 = vadd.f32 %v2920, 0.5
    %v2922 = vmul.f32 %v2919, %v2467
    %v2923 = vmul.f32 %v2917, %v2914
    %v2924 = vadd.f32 %v2922, %v2923
    %v2925 = vtanh.pop %v2924
    %v2926 = vmul.f32 %v2921, %v2925
    %v2927 = vpack.c.bf16 %v2926, %v2926
    %v2928 = vpack.c.bf16 %v2632, %v2632
    %v2929 = vld [vmem:[#allocation2] sm:$0xff]
    %v2930 = vld [vmem:[#allocation2 + $0x8] sm:$0xff]
    %v2931 = vld [vmem:[#allocation2 + $0x10] sm:$0xff]
    %v2932 = vld [vmem:[#allocation2 + $0x18] sm:$0xff]
    %v2933 = vld [vmem:[#allocation2 + $0x20] sm:$0xff]
    %v2934 = vld [vmem:[#allocation2 + $0x28] sm:$0xff]
    %v2935 = vld [vmem:[#allocation2 + $0x30] sm:$0xff]
    %v2936 = vld [vmem:[#allocation2 + $0x38] sm:$0xff]
    %v2937 = vld [vmem:[#allocation2 + $0x40] sm:$0xff]
    %v2938 = vld [vmem:[#allocation2 + $0x48] sm:$0xff]
    %v2939 = vld [vmem:[#allocation2 + $0x50] sm:$0xff]
    %v2940 = vld [vmem:[#allocation2 + $0x58] sm:$0xff]
    %v2941 = vld [vmem:[#allocation2 + $0x60] sm:$0xff]
    %v2942 = vld [vmem:[#allocation2 + $0x68] sm:$0xff]
    %v2943 = vld [vmem:[#allocation2 + $0x70] sm:$0xff]
    %v2944 = vld [vmem:[#allocation2 + $0x78] sm:$0xff]
    %v2945 = vld [vmem:[#allocation2 + $0x80] sm:$0xff]
    %v2946 = vld [vmem:[#allocation2 + $0x88] sm:$0xff]
    %v2947 = vld [vmem:[#allocation2 + $0x90] sm:$0xff]
    %v2948 = vld [vmem:[#allocation2 + $0x98] sm:$0xff]
    %v2949 = vld [vmem:[#allocation2 + $0xa0] sm:$0xff]
    %v2950 = vld [vmem:[#allocation2 + $0xa8] sm:$0xff]
    %v2951 = vld [vmem:[#allocation2 + $0xb0] sm:$0xff]
    %v2952 = vld [vmem:[#allocation2 + $0xb8] sm:$0xff]
    %v2953 = vld [vmem:[#allocation2 + $0xc0] sm:$0xff]
    %v2954 = vld [vmem:[#allocation2 + $0xc8] sm:$0xff]
    %v2955 = vld [vmem:[#allocation2 + $0xd0] sm:$0xff]
    %v2956 = vld [vmem:[#allocation2 + $0xd8] sm:$0xff]
    %v2957 = vld [vmem:[#allocation2 + $0xe0] sm:$0xff]
    %v2958 = vld [vmem:[#allocation2 + $0xe8] sm:$0xff]
    %v2959 = vld [vmem:[#allocation2 + $0xf0] sm:$0xff]
    %v2960 = vld [vmem:[#allocation2 + $0xf8] sm:$0xff]
    %v2961 = vld [vmem:[#allocation2 + $0x100] sm:$0xff]
    %v2962 = vld [vmem:[#allocation2 + $0x108] sm:$0xff]
    %v2963 = vld [vmem:[#allocation2 + $0x110] sm:$0xff]
    %v2964 = vld [vmem:[#allocation2 + $0x118] sm:$0xff]
    %v2965 = vld [vmem:[#allocation2 + $0x120] sm:$0xff]
    %v2966 = vld [vmem:[#allocation2 + $0x128] sm:$0xff]
    %v2967 = vld [vmem:[#allocation2 + $0x130] sm:$0xff]
    %v2968 = vld [vmem:[#allocation2 + $0x138] sm:$0xff]
    %v2969 = vld [vmem:[#allocation2 + $0x140] sm:$0xff]
    %v2970 = vld [vmem:[#allocation2 + $0x148] sm:$0xff]
    %v2971 = vld [vmem:[#allocation2 + $0x150] sm:$0xff]
    %v2972 = vld [vmem:[#allocation2 + $0x158] sm:$0xff]
    %v2973 = vld [vmem:[#allocation2 + $0x160] sm:$0xff]
    %v2974 = vld [vmem:[#allocation2 + $0x168] sm:$0xff]
    %v2975 = vld [vmem:[#allocation2 + $0x170] sm:$0xff]
    %v2976 = vld [vmem:[#allocation2 + $0x178] sm:$0xff]
    %v2977 = vld [vmem:[#allocation2 + $0x180] sm:$0xff]
    %v2978 = vld [vmem:[#allocation2 + $0x188] sm:$0xff]
    %v2979 = vld [vmem:[#allocation2 + $0x190] sm:$0xff]
    %v2980 = vld [vmem:[#allocation2 + $0x198] sm:$0xff]
    %v2981 = vld [vmem:[#allocation2 + $0x1a0] sm:$0xff]
    %v2982 = vld [vmem:[#allocation2 + $0x1a8] sm:$0xff]
    %v2983 = vld [vmem:[#allocation2 + $0x1b0] sm:$0xff]
    %v2984 = vld [vmem:[#allocation2 + $0x1b8] sm:$0xff]
    %v2985 = vld [vmem:[#allocation2 + $0x1c0] sm:$0xff]
    %v2986 = vld [vmem:[#allocation2 + $0x1c8] sm:$0xff]
    %v2987 = vld [vmem:[#allocation2 + $0x1d0] sm:$0xff]
    %v2988 = vld [vmem:[#allocation2 + $0x1d8] sm:$0xff]
    %v2989 = vld [vmem:[#allocation2 + $0x1e0] sm:$0xff]
    %v2990 = vld [vmem:[#allocation2 + $0x1e8] sm:$0xff]
    %v2991 = vld [vmem:[#allocation2 + $0x1f0] sm:$0xff]
    %v2992 = vld [vmem:[#allocation2 + $0x1f8] sm:$0xff]
    %2993 = vmatprep.subr.bf16.mxu0 %v2930
    %2994 = vmatpush1.bf16.msra.mxu0 %v2929
    %2995 = vmatprep.subr.bf16.mxu0 %v2934
    %2996 = vmatpush1.bf16.msra.mxu0 %v2933
    %2997 = vmatprep.subr.bf16.mxu0 %v2938
    %2998 = vmatpush1.bf16.msra.mxu0 %v2937
    %2999 = vmatprep.subr.bf16.mxu0 %v2942
    %3000 = vmatpush1.bf16.msra.mxu0 %v2941
    %3001 = vmatprep.subr.bf16.mxu0 %v2946
    %3002 = vmatpush1.bf16.msra.mxu0 %v2945
    %3003 = vmatprep.subr.bf16.mxu0 %v2950
    %3004 = vmatpush1.bf16.msra.mxu0 %v2949
    %3005 = vmatprep.subr.bf16.mxu0 %v2954
    %3006 = vmatpush1.bf16.msra.mxu0 %v2953
    %3007 = vmatprep.subr.bf16.mxu0 %v2958
    %3008 = vmatpush1.bf16.msra.mxu0 %v2957
    %3009 = vmatprep.subr.bf16.mxu0 %v2962
    %3010 = vmatpush1.bf16.msra.mxu0 %v2961
    %3011 = vmatprep.subr.bf16.mxu0 %v2966
    %3012 = vmatpush1.bf16.msra.mxu0 %v2965
    %3013 = vmatprep.subr.bf16.mxu0 %v2970
    %3014 = vmatpush1.bf16.msra.mxu0 %v2969
    %3015 = vmatprep.subr.bf16.mxu0 %v2974
    %3016 = vmatpush1.bf16.msra.mxu0 %v2973
    %3017 = vmatprep.subr.bf16.mxu0 %v2978
    %3018 = vmatpush1.bf16.msra.mxu0 %v2977
    %3019 = vmatprep.subr.bf16.mxu0 %v2982
    %3020 = vmatpush1.bf16.msra.mxu0 %v2981
    %3021 = vmatprep.subr.bf16.mxu0 %v2986
    %3022 = vmatpush1.bf16.msra.mxu0 %v2985
    %3023 = vmatprep.subr.bf16.mxu0 %v2990
    %3024 = vmatpush1.bf16.msra.mxu0 %v2989
    %3025 = vmatprep.mubr.bf16.mxu0 %v2928
    %3026 = vmatmul.mubr.bf16.gmra.mrb[0].mxu0 %v2927
    %v3027 = vpop.f32.mrb[0].mxu0
    %v3028 = vadd.f32 %v691, %v3027
    %v3029 = vpop.f32.mrb[0].mxu0
    %v3030 = vadd.f32 %v695, %v3029
    %v3031 = vpop.f32.mrb[0].mxu0
    %v3032 = vpop.f32.mrb[0].mxu0
    %3033 = vdwg.mxu0
    %3034 = vmatprep.subr.bf16.mxu0 %v2932
    %3035 = vmatpush1.bf16.msra.mxu0 %v2931
    %3036 = vmatprep.subr.bf16.mxu0 %v2936
    %3037 = vmatpush1.bf16.msra.mxu0 %v2935
    %3038 = vmatprep.subr.bf16.mxu0 %v2940
    %3039 = vmatpush1.bf16.msra.mxu0 %v2939
    %3040 = vmatprep.subr.bf16.mxu0 %v2944
    %3041 = vmatpush1.bf16.msra.mxu0 %v2943
    %3042 = vmatprep.subr.bf16.mxu0 %v2948
    %3043 = vmatpush1.bf16.msra.mxu0 %v2947
    %3044 = vmatprep.subr.bf16.mxu0 %v2952
    %3045 = vmatpush1.bf16.msra.mxu0 %v2951
    %3046 = vmatprep.subr.bf16.mxu0 %v2956
    %3047 = vmatpush1.bf16.msra.mxu0 %v2955
    %3048 = vmatprep.subr.bf16.mxu0 %v2960
    %3049 = vmatpush1.bf16.msra.mxu0 %v2959
    %3050 = vmatprep.subr.bf16.mxu0 %v2964
    %3051 = vmatpush1.bf16.msra.mxu0 %v2963
    %3052 = vmatprep.subr.bf16.mxu0 %v2968
    %3053 = vmatpush1.bf16.msra.mxu0 %v2967
    %3054 = vmatprep.subr.bf16.mxu0 %v2972
    %3055 = vmatpush1.bf16.msra.mxu0 %v2971
    %3056 = vmatprep.subr.bf16.mxu0 %v2976
    %3057 = vmatpush1.bf16.msra.mxu0 %v2975
    %3058 = vmatprep.subr.bf16.mxu0 %v2980
    %3059 = vmatpush1.bf16.msra.mxu0 %v2979
    %3060 = vmatprep.subr.bf16.mxu0 %v2984
    %3061 = vmatpush1.bf16.msra.mxu0 %v2983
    %3062 = vmatprep.subr.bf16.mxu0 %v2988
    %3063 = vmatpush1.bf16.msra.mxu0 %v2987
    %3064 = vmatprep.subr.bf16.mxu0 %v2992
    %3065 = vmatpush1.bf16.msra.mxu0 %v2991
    %3066 = vmatprep.mubr.bf16.mxu0 %v2928
    %3067 = vmatmul.mubr.bf16.gmra.mrb[0].mxu0 %v2927
    %v3068 = vpop.f32.mrb[0].mxu0
    %v3069 = vadd.f32 %v699, %v3068
    %v3070 = vpop.f32.mrb[0].mxu0
    %v3071 = vadd.f32 %v703, %v3070
    %v3072 = vpop.f32.mrb[0].mxu0
    %v3073 = vpop.f32.mrb[0].mxu0
    %3074 = vdwg.mxu0
    %v3075 = vtanh.pop %v3028
    %v3076 = vtanh.pop %v3030
    %v3077 = vtanh.pop %v3069
    %v3078 = vtanh.pop %v3071
    %v3079 = vmul.f32 %v3075, 0.5
    %v3080 = vadd.f32 %v3079, 0.5
    %v3081 = vmul.f32 %v3076, 0.5
    %v3082 = vadd.f32 %v3081, 0.5
    %v3083 = vmul.f32 %v3078, 0.5
    %v3084 = vadd.f32 %v3083, 0.5
    %v3085 = vmul.f32 %v3082, %v2630
    %v3086 = vmul.f32 %v3080, %v3077
    %v3087 = vadd.f32 %v3085, %v3086
    %v3088 = vtanh.pop %v3087
    %v3089 = vmul.f32 %v3084, %v3088
    %3090 = vst [vmem:[#allocation3 + $0x5] sm:$0x1] %v3089
    %v3091 = vld [vmem:[#allocation10] sm:$0xff]
    %v3092 = vld [vmem:[#allocation10 + $0x8] sm:$0xff]
    %v3093 = vld [vmem:[#allocation10 + $0x10] sm:$0xff]
    %v3094 = vld [vmem:[#allocation10 + $0x18] sm:$0xff]
    %v3095 = vld [vmem:[#allocation10 + $0x20] sm:$0xff]
    %v3096 = vld [vmem:[#allocation10 + $0x28] sm:$0xff]
    %v3097 = vld [vmem:[#allocation10 + $0x30] sm:$0xff]
    %v3098 = vld [vmem:[#allocation10 + $0x38] sm:$0xff]
    %v3099 = vld [vmem:[#allocation10 + $0x40] sm:$0xff]
    %v3100 = vld [vmem:[#allocation10 + $0x48] sm:$0xff]
    %v3101 = vld [vmem:[#allocation10 + $0x50] sm:$0xff]
    %v3102 = vld [vmem:[#allocation10 + $0x58] sm:$0xff]
    %v3103 = vld [vmem:[#allocation10 + $0x60] sm:$0xff]
    %v3104 = vld [vmem:[#allocation10 + $0x68] sm:$0xff]
    %v3105 = vld [vmem:[#allocation10 + $0x70] sm:$0xff]
    %v3106 = vld [vmem:[#allocation10 + $0x78] sm:$0xff]
    %v3107 = vld [vmem:[#allocation10 + $0x80] sm:$0xff]
    %v3108 = vld [vmem:[#allocation10 + $0x88] sm:$0xff]
    %v3109 = vld [vmem:[#allocation10 + $0x90] sm:$0xff]
    %v3110 = vld [vmem:[#allocation10 + $0x98] sm:$0xff]
    %v3111 = vld [vmem:[#allocation10 + $0xa0] sm:$0xff]
    %v3112 = vld [vmem:[#allocation10 + $0xa8] sm:$0xff]
    %v3113 = vld [vmem:[#allocation10 + $0xb0] sm:$0xff]
    %v3114 = vld [vmem:[#allocation10 + $0xb8] sm:$0xff]
    %v3115 = vld [vmem:[#allocation10 + $0xc0] sm:$0xff]
    %v3116 = vld [vmem:[#allocation10 + $0xc8] sm:$0xff]
    %v3117 = vld [vmem:[#allocation10 + $0xd0] sm:$0xff]
    %v3118 = vld [vmem:[#allocation10 + $0xd8] sm:$0xff]
    %v3119 = vld [vmem:[#allocation10 + $0xe0] sm:$0xff]
    %v3120 = vld [vmem:[#allocation10 + $0xe8] sm:$0xff]
    %v3121 = vld [vmem:[#allocation10 + $0xf0] sm:$0xff]
    %v3122 = vld [vmem:[#allocation10 + $0xf8] sm:$0xff]
    %v3155 = vunpack.c.l.b16 %v3091
    %v3156 = vunpack.c.h.b16 %v3091
    %v3157 = vunpack.c.l.b16 %v3092
    %v3158 = vunpack.c.h.b16 %v3092
    %v3159 = vunpack.c.l.b16 %v3093
    %v3160 = vunpack.c.h.b16 %v3093
    %v3161 = vunpack.c.l.b16 %v3094
    %v3162 = vunpack.c.h.b16 %v3094
    %v3163 = vunpack.c.l.b16 %v3095
    %v3164 = vunpack.c.h.b16 %v3095
    %v3165 = vunpack.c.l.b16 %v3096
    %v3166 = vunpack.c.h.b16 %v3096
    %v3167 = vunpack.c.l.b16 %v3097
    %v3168 = vunpack.c.h.b16 %v3097
    %v3169 = vunpack.c.l.b16 %v3098
    %v3170 = vunpack.c.h.b16 %v3098
    %v3171 = vunpack.c.l.b16 %v3099
    %v3172 = vunpack.c.h.b16 %v3099
    %v3173 = vunpack.c.l.b16 %v3100
    %v3174 = vunpack.c.h.b16 %v3100
    %v3175 = vunpack.c.l.b16 %v3101
    %v3176 = vunpack.c.h.b16 %v3101
    %v3177 = vunpack.c.l.b16 %v3102
    %v3178 = vunpack.c.h.b16 %v3102
    %v3179 = vunpack.c.l.b16 %v3103
    %v3180 = vunpack.c.h.b16 %v3103
    %v3181 = vunpack.c.l.b16 %v3104
    %v3182 = vunpack.c.h.b16 %v3104
    %v3183 = vunpack.c.l.b16 %v3105
    %v3184 = vunpack.c.h.b16 %v3105
    %v3185 = vunpack.c.l.b16 %v3106
    %v3186 = vunpack.c.h.b16 %v3106
    %v3187 = vunpack.c.l.b16 %v3107
    %v3188 = vunpack.c.h.b16 %v3107
    %v3189 = vunpack.c.l.b16 %v3108
    %v3190 = vunpack.c.h.b16 %v3108
    %v3191 = vunpack.c.l.b16 %v3109
    %v3192 = vunpack.c.h.b16 %v3109
    %v3193 = vunpack.c.l.b16 %v3110
    %v3194 = vunpack.c.h.b16 %v3110
    %v3195 = vunpack.c.l.b16 %v3111
    %v3196 = vunpack.c.h.b16 %v3111
    %v3197 = vunpack.c.l.b16 %v3112
    %v3198 = vunpack.c.h.b16 %v3112
    %v3199 = vunpack.c.l.b16 %v3113
    %v3200 = vunpack.c.h.b16 %v3113
    %v3201 = vunpack.c.l.b16 %v3114
    %v3202 = vunpack.c.h.b16 %v3114
    %v3203 = vunpack.c.l.b16 %v3115
    %v3204 = vunpack.c.h.b16 %v3115
    %v3205 = vunpack.c.l.b16 %v3116
    %v3206 = vunpack.c.h.b16 %v3116
    %v3207 = vunpack.c.l.b16 %v3117
    %v3208 = vunpack.c.h.b16 %v3117
    %v3209 = vunpack.c.l.b16 %v3118
    %v3210 = vunpack.c.h.b16 %v3118
    %v3211 = vunpack.c.l.b16 %v3119
    %v3212 = vunpack.c.h.b16 %v3119
    %v3213 = vunpack.c.l.b16 %v3120
    %v3214 = vunpack.c.h.b16 %v3120
    %v3215 = vunpack.c.l.b16 %v3121
    %v3216 = vunpack.c.h.b16 %v3121
    %v3217 = vunpack.c.l.b16 %v3122
    %v3218 = vunpack.c.h.b16 %v3122
    %v3219 = vpack.c.b16 %v3159, %v3155
    %v3220 = vpack.c.b16 %v3160, %v3156
    %v3221 = vpack.c.b16 %v3161, %v3157
    %v3222 = vpack.c.b16 %v3162, %v3158
    %v3223 = vpack.c.b16 %v3167, %v3163
    %v3224 = vpack.c.b16 %v3168, %v3164
    %v3225 = vpack.c.b16 %v3169, %v3165
    %v3226 = vpack.c.b16 %v3170, %v3166
    %v3227 = vpack.c.b16 %v3175, %v3171
    %v3228 = vpack.c.b16 %v3176, %v3172
    %v3229 = vpack.c.b16 %v3177, %v3173
    %v3230 = vpack.c.b16 %v3178, %v3174
    %v3231 = vpack.c.b16 %v3183, %v3179
    %v3232 = vpack.c.b16 %v3184, %v3180
    %v3233 = vpack.c.b16 %v3185, %v3181
    %v3234 = vpack.c.b16 %v3186, %v3182
    %v3235 = vpack.c.b16 %v3191, %v3187
    %v3236 = vpack.c.b16 %v3192, %v3188
    %v3237 = vpack.c.b16 %v3193, %v3189
    %v3238 = vpack.c.b16 %v3194, %v3190
    %v3239 = vpack.c.b16 %v3199, %v3195
    %v3240 = vpack.c.b16 %v3200, %v3196
    %v3241 = vpack.c.b16 %v3201, %v3197
    %v3242 = vpack.c.b16 %v3202, %v3198
    %v3243 = vpack.c.b16 %v3207, %v3203
    %v3244 = vpack.c.b16 %v3208, %v3204
    %v3245 = vpack.c.b16 %v3209, %v3205
    %v3246 = vpack.c.b16 %v3210, %v3206
    %v3247 = vpack.c.b16 %v3215, %v3211
    %v3248 = vpack.c.b16 %v3216, %v3212
    %v3249 = vpack.c.b16 %v3217, %v3213
    %v3250 = vpack.c.b16 %v3218, %v3214
    %3283 = vmatprep.subr.bf16.mxu0 %v3220
    %3284 = vmatpush1.bf16.msra.mxu0 %v3219
    %3285 = vmatprep.subr.bf16.mxu0 %v3224
    %3286 = vmatpush1.bf16.msra.mxu0 %v3223
    %3287 = vmatprep.subr.bf16.mxu0 %v3228
    %3288 = vmatpush1.bf16.msra.mxu0 %v3227
    %3289 = vmatprep.subr.bf16.mxu0 %v3232
    %3290 = vmatpush1.bf16.msra.mxu0 %v3231
    %3291 = vmatprep.subr.bf16.mxu0 %v3236
    %3292 = vmatpush1.bf16.msra.mxu0 %v3235
    %3293 = vmatprep.subr.bf16.mxu0 %v3240
    %3294 = vmatpush1.bf16.msra.mxu0 %v3239
    %3295 = vmatprep.subr.bf16.mxu0 %v3244
    %3296 = vmatpush1.bf16.msra.mxu0 %v3243
    %3297 = vmatprep.subr.bf16.mxu0 %v3248
    %3298 = vmatpush1.bf16.msra.mxu0 %v3247
    %3299 = vmatprep.subr.bf16.mxu0 0
    %3300 = vmatpush1.bf16.msra.mxu0 0
    %3301 = vmatprep.subr.bf16.mxu0 0
    %3302 = vmatpush1.bf16.msra.mxu0 0
    %3303 = vmatprep.subr.bf16.mxu0 0
    %3304 = vmatpush1.bf16.msra.mxu0 0
    %3305 = vmatprep.subr.bf16.mxu0 0
    %3306 = vmatpush1.bf16.msra.mxu0 0
    %3307 = vmatprep.subr.bf16.mxu0 0
    %3308 = vmatpush1.bf16.msra.mxu0 0
    %3309 = vmatprep.subr.bf16.mxu0 0
    %3310 = vmatpush1.bf16.msra.mxu0 0
    %3311 = vmatprep.subr.bf16.mxu0 0
    %3312 = vmatpush1.bf16.msra.mxu0 0
    %3313 = vmatprep.subr.bf16.mxu0 0
    %3314 = vmatpush1.bf16.msra.mxu0 0
    %3315 = vmatprep.mubr.bf16.mxu0 0
    %3316 = vmatmul.mubr.bf16.gmra.mrb[0].mxu0 %v2927
    %v3317 = vpop.f32.mrb[0].mxu0
    %v3318 = vadd.f32 0.0, %v3317
    %v3319 = vpop.f32.mrb[0].mxu0
    %v3320 = vadd.f32 0.0, %v3319
    %v3321 = vpop.f32.mrb[0].mxu0
    %v3322 = vpop.f32.mrb[0].mxu0
    %3323 = vdwg.mxu0
    %3324 = vmatprep.subr.bf16.mxu0 %v3222
    %3325 = vmatpush1.bf16.msra.mxu0 %v3221
    %3326 = vmatprep.subr.bf16.mxu0 %v3226
    %3327 = vmatpush1.bf16.msra.mxu0 %v3225
    %3328 = vmatprep.subr.bf16.mxu0 %v3230
    %3329 = vmatpush1.bf16.msra.mxu0 %v3229
    %3330 = vmatprep.subr.bf16.mxu0 %v3234
    %3331 = vmatpush1.bf16.msra.mxu0 %v3233
    %3332 = vmatprep.subr.bf16.mxu0 %v3238
    %3333 = vmatpush1.bf16.msra.mxu0 %v3237
    %3334 = vmatprep.subr.bf16.mxu0 %v3242
    %3335 = vmatpush1.bf16.msra.mxu0 %v3241
    %3336 = vmatprep.subr.bf16.mxu0 %v3246
    %3337 = vmatpush1.bf16.msra.mxu0 %v3245
    %3338 = vmatprep.subr.bf16.mxu0 %v3250
    %3339 = vmatpush1.bf16.msra.mxu0 %v3249
    %3340 = vmatprep.subr.bf16.mxu0 0
    %3341 = vmatpush1.bf16.msra.mxu0 0
    %3342 = vmatprep.subr.bf16.mxu0 0
    %3343 = vmatpush1.bf16.msra.mxu0 0
    %3344 = vmatprep.subr.bf16.mxu0 0
    %3345 = vmatpush1.bf16.msra.mxu0 0
    %3346 = vmatprep.subr.bf16.mxu0 0
    %3347 = vmatpush1.bf16.msra.mxu0 0
    %3348 = vmatprep.subr.bf16.mxu0 0
    %3349 = vmatpush1.bf16.msra.mxu0 0
    %3350 = vmatprep.subr.bf16.mxu0 0
    %3351 = vmatpush1.bf16.msra.mxu0 0
    %3352 = vmatprep.subr.bf16.mxu0 0
    %3353 = vmatpush1.bf16.msra.mxu0 0
    %3354 = vmatprep.subr.bf16.mxu0 0
    %3355 = vmatpush1.bf16.msra.mxu0 0
    %3356 = vmatprep.mubr.bf16.mxu0 0
    %3357 = vmatmul.mubr.bf16.gmra.mrb[0].mxu0 %v2927
    %v3358 = vpop.f32.mrb[0].mxu0
    %v3359 = vadd.f32 0.0, %v3358
    %v3360 = vpop.f32.mrb[0].mxu0
    %v3361 = vadd.f32 0.0, %v3360
    %v3362 = vpop.f32.mrb[0].mxu0
    %v3363 = vpop.f32.mrb[0].mxu0
    %3364 = vdwg.mxu0
    %v3365 = vadd.f32 %v276, %v3318
    %v3366 = vadd.f32 %v278, %v3320
    %v3367 = vadd.f32 %v317, %v3359
    %v3368 = vadd.f32 %v319, %v3361
    %v3369 = vtanh.pop %v3365
    %v3370 = vtanh.pop %v3366
    %v3371 = vtanh.pop %v3367
    %v3372 = vtanh.pop %v3368
    %v3373 = vmul.f32 %v3369, 0.5
    %v3374 = vadd.f32 %v3373, 0.5
    %v3375 = vmul.f32 %v3370, 0.5
    %v3376 = vadd.f32 %v3375, 0.5
    %v3377 = vmul.f32 %v3372, 0.5
    %v3378 = vadd.f32 %v3377, 0.5
    %v3379 = vmul.f32 %v3376, %v2924
    %v3380 = vmul.f32 %v3374, %v3371
    %v3381 = vadd.f32 %v3379, %v3380
    %v3382 = vtanh.pop %v3381
    %v3383 = vmul.f32 %v3378, %v3382
    %v3384 = vpack.c.bf16 %v3383, %v3383
    %v3385 = vpack.c.bf16 %v3089, %v3089
    %v3386 = vld [vmem:[#allocation2] sm:$0xff]
    %v3387 = vld [vmem:[#allocation2 + $0x8] sm:$0xff]
    %v3388 = vld [vmem:[#allocation2 + $0x10] sm:$0xff]
    %v3389 = vld [vmem:[#allocation2 + $0x18] sm:$0xff]
    %v3390 = vld [vmem:[#allocation2 + $0x20] sm:$0xff]
    %v3391 = vld [vmem:[#allocation2 + $0x28] sm:$0xff]
    %v3392 = vld [vmem:[#allocation2 + $0x30] sm:$0xff]
    %v3393 = vld [vmem:[#allocation2 + $0x38] sm:$0xff]
    %v3394 = vld [vmem:[#allocation2 + $0x40] sm:$0xff]
    %v3395 = vld [vmem:[#allocation2 + $0x48] sm:$0xff]
    %v3396 = vld [vmem:[#allocation2 + $0x50] sm:$0xff]
    %v3397 = vld [vmem:[#allocation2 + $0x58] sm:$0xff]
    %v3398 = vld [vmem:[#allocation2 + $0x60] sm:$0xff]
    %v3399 = vld [vmem:[#allocation2 + $0x68] sm:$0xff]
    %v3400 = vld [vmem:[#allocation2 + $0x70] sm:$0xff]
    %v3401 = vld [vmem:[#allocation2 + $0x78] sm:$0xff]
    %v3402 = vld [vmem:[#allocation2 + $0x80] sm:$0xff]
    %v3403 = vld [vmem:[#allocation2 + $0x88] sm:$0xff]
    %v3404 = vld [vmem:[#allocation2 + $0x90] sm:$0xff]
    %v3405 = vld [vmem:[#allocation2 + $0x98] sm:$0xff]
    %v3406 = vld [vmem:[#allocation2 + $0xa0] sm:$0xff]
    %v3407 = vld [vmem:[#allocation2 + $0xa8] sm:$0xff]
    %v3408 = vld [vmem:[#allocation2 + $0xb0] sm:$0xff]
    %v3409 = vld [vmem:[#allocation2 + $0xb8] sm:$0xff]
    %v3410 = vld [vmem:[#allocation2 + $0xc0] sm:$0xff]
    %v3411 = vld [vmem:[#allocation2 + $0xc8] sm:$0xff]
    %v3412 = vld [vmem:[#allocation2 + $0xd0] sm:$0xff]
    %v3413 = vld [vmem:[#allocation2 + $0xd8] sm:$0xff]
    %v3414 = vld [vmem:[#allocation2 + $0xe0] sm:$0xff]
    %v3415 = vld [vmem:[#allocation2 + $0xe8] sm:$0xff]
    %v3416 = vld [vmem:[#allocation2 + $0xf0] sm:$0xff]
    %v3417 = vld [vmem:[#allocation2 + $0xf8] sm:$0xff]
    %v3418 = vld [vmem:[#allocation2 + $0x100] sm:$0xff]
    %v3419 = vld [vmem:[#allocation2 + $0x108] sm:$0xff]
    %v3420 = vld [vmem:[#allocation2 + $0x110] sm:$0xff]
    %v3421 = vld [vmem:[#allocation2 + $0x118] sm:$0xff]
    %v3422 = vld [vmem:[#allocation2 + $0x120] sm:$0xff]
    %v3423 = vld [vmem:[#allocation2 + $0x128] sm:$0xff]
    %v3424 = vld [vmem:[#allocation2 + $0x130] sm:$0xff]
    %v3425 = vld [vmem:[#allocation2 + $0x138] sm:$0xff]
    %v3426 = vld [vmem:[#allocation2 + $0x140] sm:$0xff]
    %v3427 = vld [vmem:[#allocation2 + $0x148] sm:$0xff]
    %v3428 = vld [vmem:[#allocation2 + $0x150] sm:$0xff]
    %v3429 = vld [vmem:[#allocation2 + $0x158] sm:$0xff]
    %v3430 = vld [vmem:[#allocation2 + $0x160] sm:$0xff]
    %v3431 = vld [vmem:[#allocation2 + $0x168] sm:$0xff]
    %v3432 = vld [vmem:[#allocation2 + $0x170] sm:$0xff]
    %v3433 = vld [vmem:[#allocation2 + $0x178] sm:$0xff]
    %v3434 = vld [vmem:[#allocation2 + $0x180] sm:$0xff]
    %v3435 = vld [vmem:[#allocation2 + $0x188] sm:$0xff]
    %v3436 = vld [vmem:[#allocation2 + $0x190] sm:$0xff]
    %v3437 = vld [vmem:[#allocation2 + $0x198] sm:$0xff]
    %v3438 = vld [vmem:[#allocation2 + $0x1a0] sm:$0xff]
    %v3439 = vld [vmem:[#allocation2 + $0x1a8] sm:$0xff]
    %v3440 = vld [vmem:[#allocation2 + $0x1b0] sm:$0xff]
    %v3441 = vld [vmem:[#allocation2 + $0x1b8] sm:$0xff]
    %v3442 = vld [vmem:[#allocation2 + $0x1c0] sm:$0xff]
    %v3443 = vld [vmem:[#allocation2 + $0x1c8] sm:$0xff]
    %v3444 = vld [vmem:[#allocation2 + $0x1d0] sm:$0xff]
    %v3445 = vld [vmem:[#allocation2 + $0x1d8] sm:$0xff]
    %v3446 = vld [vmem:[#allocation2 + $0x1e0] sm:$0xff]
    %v3447 = vld [vmem:[#allocation2 + $0x1e8] sm:$0xff]
    %v3448 = vld [vmem:[#allocation2 + $0x1f0] sm:$0xff]
    %v3449 = vld [vmem:[#allocation2 + $0x1f8] sm:$0xff]
    %3450 = vmatprep.subr.bf16.mxu0 %v3387
    %3451 = vmatpush1.bf16.msra.mxu0 %v3386
    %3452 = vmatprep.subr.bf16.mxu0 %v3391
    %3453 = vmatpush1.bf16.msra.mxu0 %v3390
    %3454 = vmatprep.subr.bf16.mxu0 %v3395
    %3455 = vmatpush1.bf16.msra.mxu0 %v3394
    %3456 = vmatprep.subr.bf16.mxu0 %v3399
    %3457 = vmatpush1.bf16.msra.mxu0 %v3398
    %3458 = vmatprep.subr.bf16.mxu0 %v3403
    %3459 = vmatpush1.bf16.msra.mxu0 %v3402
    %3460 = vmatprep.subr.bf16.mxu0 %v3407
    %3461 = vmatpush1.bf16.msra.mxu0 %v3406
    %3462 = vmatprep.subr.bf16.mxu0 %v3411
    %3463 = vmatpush1.bf16.msra.mxu0 %v3410
    %3464 = vmatprep.subr.bf16.mxu0 %v3415
    %3465 = vmatpush1.bf16.msra.mxu0 %v3414
    %3466 = vmatprep.subr.bf16.mxu0 %v3419
    %3467 = vmatpush1.bf16.msra.mxu0 %v3418
    %3468 = vmatprep.subr.bf16.mxu0 %v3423
    %3469 = vmatpush1.bf16.msra.mxu0 %v3422
    %3470 = vmatprep.subr.bf16.mxu0 %v3427
    %3471 = vmatpush1.bf16.msra.mxu0 %v3426
    %3472 = vmatprep.subr.bf16.mxu0 %v3431
    %3473 = vmatpush1.bf16.msra.mxu0 %v3430
    %3474 = vmatprep.subr.bf16.mxu0 %v3435
    %3475 = vmatpush1.bf16.msra.mxu0 %v3434
    %3476 = vmatprep.subr.bf16.mxu0 %v3439
    %3477 = vmatpush1.bf16.msra.mxu0 %v3438
    %3478 = vmatprep.subr.bf16.mxu0 %v3443
    %3479 = vmatpush1.bf16.msra.mxu0 %v3442
    %3480 = vmatprep.subr.bf16.mxu0 %v3447
    %3481 = vmatpush1.bf16.msra.mxu0 %v3446
    %3482 = vmatprep.mubr.bf16.mxu0 %v3385
    %3483 = vmatmul.mubr.bf16.gmra.mrb[0].mxu0 %v3384
    %v3484 = vpop.f32.mrb[0].mxu0
    %v3485 = vadd.f32 %v691, %v3484
    %v3486 = vpop.f32.mrb[0].mxu0
    %v3487 = vadd.f32 %v695, %v3486
    %v3488 = vpop.f32.mrb[0].mxu0
    %v3489 = vpop.f32.mrb[0].mxu0
    %3490 = vdwg.mxu0
    %3491 = vmatprep.subr.bf16.mxu0 %v3389
    %3492 = vmatpush1.bf16.msra.mxu0 %v3388
    %3493 = vmatprep.subr.bf16.mxu0 %v3393
    %3494 = vmatpush1.bf16.msra.mxu0 %v3392
    %3495 = vmatprep.subr.bf16.mxu0 %v3397
    %3496 = vmatpush1.bf16.msra.mxu0 %v3396
    %3497 = vmatprep.subr.bf16.mxu0 %v3401
    %3498 = vmatpush1.bf16.msra.mxu0 %v3400
    %3499 = vmatprep.subr.bf16.mxu0 %v3405
    %3500 = vmatpush1.bf16.msra.mxu0 %v3404
    %3501 = vmatprep.subr.bf16.mxu0 %v3409
    %3502 = vmatpush1.bf16.msra.mxu0 %v3408
    %3503 = vmatprep.subr.bf16.mxu0 %v3413
    %3504 = vmatpush1.bf16.msra.mxu0 %v3412
    %3505 = vmatprep.subr.bf16.mxu0 %v3417
    %3506 = vmatpush1.bf16.msra.mxu0 %v3416
    %3507 = vmatprep.subr.bf16.mxu0 %v3421
    %3508 = vmatpush1.bf16.msra.mxu0 %v3420
    %3509 = vmatprep.subr.bf16.mxu0 %v3425
    %3510 = vmatpush1.bf16.msra.mxu0 %v3424
    %3511 = vmatprep.subr.bf16.mxu0 %v3429
    %3512 = vmatpush1.bf16.msra.mxu0 %v3428
    %3513 = vmatprep.subr.bf16.mxu0 %v3433
    %3514 = vmatpush1.bf16.msra.mxu0 %v3432
    %3515 = vmatprep.subr.bf16.mxu0 %v3437
    %3516 = vmatpush1.bf16.msra.mxu0 %v3436
    %3517 = vmatprep.subr.bf16.mxu0 %v3441
    %3518 = vmatpush1.bf16.msra.mxu0 %v3440
    %3519 = vmatprep.subr.bf16.mxu0 %v3445
    %3520 = vmatpush1.bf16.msra.mxu0 %v3444
    %3521 = vmatprep.subr.bf16.mxu0 %v3449
    %3522 = vmatpush1.bf16.msra.mxu0 %v3448
    %3523 = vmatprep.mubr.bf16.mxu0 %v3385
    %3524 = vmatmul.mubr.bf16.gmra.mrb[0].mxu0 %v3384
    %v3525 = vpop.f32.mrb[0].mxu0
    %v3526 = vadd.f32 %v699, %v3525
    %v3527 = vpop.f32.mrb[0].mxu0
    %v3528 = vadd.f32 %v703, %v3527
    %v3529 = vpop.f32.mrb[0].mxu0
    %v3530 = vpop.f32.mrb[0].mxu0
    %3531 = vdwg.mxu0
    %v3532 = vtanh.pop %v3485
    %v3533 = vtanh.pop %v3487
    %v3534 = vtanh.pop %v3526
    %v3535 = vtanh.pop %v3528
    %v3536 = vmul.f32 %v3532, 0.5
    %v3537 = vadd.f32 %v3536, 0.5
    %v3538 = vmul.f32 %v3533, 0.5
    %v3539 = vadd.f32 %v3538, 0.5
    %v3540 = vmul.f32 %v3535, 0.5
    %v3541 = vadd.f32 %v3540, 0.5
    %v3542 = vmul.f32 %v3539, %v3087
    %v3543 = vmul.f32 %v3537, %v3534
    %v3544 = vadd.f32 %v3542, %v3543
    %v3545 = vtanh.pop %v3544
    %v3546 = vmul.f32 %v3541, %v3545
    %3547 = vst [vmem:[#allocation3 + $0x6] sm:$0x1] %v3546
    %v3548 = vld [vmem:[#allocation10] sm:$0xff]
    %v3549 = vld [vmem:[#allocation10 + $0x8] sm:$0xff]
    %v3550 = vld [vmem:[#allocation10 + $0x10] sm:$0xff]
    %v3551 = vld [vmem:[#allocation10 + $0x18] sm:$0xff]
    %v3552 = vld [vmem:[#allocation10 + $0x20] sm:$0xff]
    %v3553 = vld [vmem:[#allocation10 + $0x28] sm:$0xff]
    %v3554 = vld [vmem:[#allocation10 + $0x30] sm:$0xff]
    %v3555 = vld [vmem:[#allocation10 + $0x38] sm:$0xff]
    %v3556 = vld [vmem:[#allocation10 + $0x40] sm:$0xff]
    %v3557 = vld [vmem:[#allocation10 + $0x48] sm:$0xff]
    %v3558 = vld [vmem:[#allocation10 + $0x50] sm:$0xff]
    %v3559 = vld [vmem:[#allocation10 + $0x58] sm:$0xff]
    %v3560 = vld [vmem:[#allocation10 + $0x60] sm:$0xff]
    %v3561 = vld [vmem:[#allocation10 + $0x68] sm:$0xff]
    %v3562 = vld [vmem:[#allocation10 + $0x70] sm:$0xff]
    %v3563 = vld [vmem:[#allocation10 + $0x78] sm:$0xff]
    %v3564 = vld [vmem:[#allocation10 + $0x80] sm:$0xff]
    %v3565 = vld [vmem:[#allocation10 + $0x88] sm:$0xff]
    %v3566 = vld [vmem:[#allocation10 + $0x90] sm:$0xff]
    %v3567 = vld [vmem:[#allocation10 + $0x98] sm:$0xff]
    %v3568 = vld [vmem:[#allocation10 + $0xa0] sm:$0xff]
    %v3569 = vld [vmem:[#allocation10 + $0xa8] sm:$0xff]
    %v3570 = vld [vmem:[#allocation10 + $0xb0] sm:$0xff]
    %v3571 = vld [vmem:[#allocation10 + $0xb8] sm:$0xff]
    %v3572 = vld [vmem:[#allocation10 + $0xc0] sm:$0xff]
    %v3573 = vld [vmem:[#allocation10 + $0xc8] sm:$0xff]
    %v3574 = vld [vmem:[#allocation10 + $0xd0] sm:$0xff]
    %v3575 = vld [vmem:[#allocation10 + $0xd8] sm:$0xff]
    %v3576 = vld [vmem:[#allocation10 + $0xe0] sm:$0xff]
    %v3577 = vld [vmem:[#allocation10 + $0xe8] sm:$0xff]
    %v3578 = vld [vmem:[#allocation10 + $0xf0] sm:$0xff]
    %v3579 = vld [vmem:[#allocation10 + $0xf8] sm:$0xff]
    %v3612 = vunpack.c.l.b16 %v3548
    %v3613 = vunpack.c.h.b16 %v3548
    %v3614 = vunpack.c.l.b16 %v3549
    %v3615 = vunpack.c.h.b16 %v3549
    %v3616 = vunpack.c.l.b16 %v3550
    %v3617 = vunpack.c.h.b16 %v3550
    %v3618 = vunpack.c.l.b16 %v3551
    %v3619 = vunpack.c.h.b16 %v3551
    %v3620 = vunpack.c.l.b16 %v3552
    %v3621 = vunpack.c.h.b16 %v3552
    %v3622 = vunpack.c.l.b16 %v3553
    %v3623 = vunpack.c.h.b16 %v3553
    %v3624 = vunpack.c.l.b16 %v3554
    %v3625 = vunpack.c.h.b16 %v3554
    %v3626 = vunpack.c.l.b16 %v3555
    %v3627 = vunpack.c.h.b16 %v3555
    %v3628 = vunpack.c.l.b16 %v3556
    %v3629 = vunpack.c.h.b16 %v3556
    %v3630 = vunpack.c.l.b16 %v3557
    %v3631 = vunpack.c.h.b16 %v3557
    %v3632 = vunpack.c.l.b16 %v3558
    %v3633 = vunpack.c.h.b16 %v3558
    %v3634 = vunpack.c.l.b16 %v3559
    %v3635 = vunpack.c.h.b16 %v3559
    %v3636 = vunpack.c.l.b16 %v3560
    %v3637 = vunpack.c.h.b16 %v3560
    %v3638 = vunpack.c.l.b16 %v3561
    %v3639 = vunpack.c.h.b16 %v3561
    %v3640 = vunpack.c.l.b16 %v3562
    %v3641 = vunpack.c.h.b16 %v3562
    %v3642 = vunpack.c.l.b16 %v3563
    %v3643 = vunpack.c.h.b16 %v3563
    %v3644 = vunpack.c.l.b16 %v3564
    %v3645 = vunpack.c.h.b16 %v3564
    %v3646 = vunpack.c.l.b16 %v3565
    %v3647 = vunpack.c.h.b16 %v3565
    %v3648 = vunpack.c.l.b16 %v3566
    %v3649 = vunpack.c.h.b16 %v3566
    %v3650 = vunpack.c.l.b16 %v3567
    %v3651 = vunpack.c.h.b16 %v3567
    %v3652 = vunpack.c.l.b16 %v3568
    %v3653 = vunpack.c.h.b16 %v3568
    %v3654 = vunpack.c.l.b16 %v3569
    %v3655 = vunpack.c.h.b16 %v3569
    %v3656 = vunpack.c.l.b16 %v3570
    %v3657 = vunpack.c.h.b16 %v3570
    %v3658 = vunpack.c.l.b16 %v3571
    %v3659 = vunpack.c.h.b16 %v3571
    %v3660 = vunpack.c.l.b16 %v3572
    %v3661 = vunpack.c.h.b16 %v3572
    %v3662 = vunpack.c.l.b16 %v3573
    %v3663 = vunpack.c.h.b16 %v3573
    %v3664 = vunpack.c.l.b16 %v3574
    %v3665 = vunpack.c.h.b16 %v3574
    %v3666 = vunpack.c.l.b16 %v3575
    %v3667 = vunpack.c.h.b16 %v3575
    %v3668 = vunpack.c.l.b16 %v3576
    %v3669 = vunpack.c.h.b16 %v3576
    %v3670 = vunpack.c.l.b16 %v3577
    %v3671 = vunpack.c.h.b16 %v3577
    %v3672 = vunpack.c.l.b16 %v3578
    %v3673 = vunpack.c.h.b16 %v3578
    %v3674 = vunpack.c.l.b16 %v3579
    %v3675 = vunpack.c.h.b16 %v3579
    %v3676 = vpack.c.b16 %v3616, %v3612
    %v3677 = vpack.c.b16 %v3617, %v3613
    %v3678 = vpack.c.b16 %v3618, %v3614
    %v3679 = vpack.c.b16 %v3619, %v3615
    %v3680 = vpack.c.b16 %v3624, %v3620
    %v3681 = vpack.c.b16 %v3625, %v3621
    %v3682 = vpack.c.b16 %v3626, %v3622
    %v3683 = vpack.c.b16 %v3627, %v3623
    %v3684 = vpack.c.b16 %v3632, %v3628
    %v3685 = vpack.c.b16 %v3633, %v3629
    %v3686 = vpack.c.b16 %v3634, %v3630
    %v3687 = vpack.c.b16 %v3635, %v3631
    %v3688 = vpack.c.b16 %v3640, %v3636
    %v3689 = vpack.c.b16 %v3641, %v3637
    %v3690 = vpack.c.b16 %v3642, %v3638
    %v3691 = vpack.c.b16 %v3643, %v3639
    %v3692 = vpack.c.b16 %v3648, %v3644
    %v3693 = vpack.c.b16 %v3649, %v3645
    %v3694 = vpack.c.b16 %v3650, %v3646
    %v3695 = vpack.c.b16 %v3651, %v3647
    %v3696 = vpack.c.b16 %v3656, %v3652
    %v3697 = vpack.c.b16 %v3657, %v3653
    %v3698 = vpack.c.b16 %v3658, %v3654
    %v3699 = vpack.c.b16 %v3659, %v3655
    %v3700 = vpack.c.b16 %v3664, %v3660
    %v3701 = vpack.c.b16 %v3665, %v3661
    %v3702 = vpack.c.b16 %v3666, %v3662
    %v3703 = vpack.c.b16 %v3667, %v3663
    %v3704 = vpack.c.b16 %v3672, %v3668
    %v3705 = vpack.c.b16 %v3673, %v3669
    %v3706 = vpack.c.b16 %v3674, %v3670
    %v3707 = vpack.c.b16 %v3675, %v3671
    %3740 = vmatprep.subr.bf16.mxu0 %v3677
    %3741 = vmatpush1.bf16.msra.mxu0 %v3676
    %3742 = vmatprep.subr.bf16.mxu0 %v3681
    %3743 = vmatpush1.bf16.msra.mxu0 %v3680
    %3744 = vmatprep.subr.bf16.mxu0 %v3685
    %3745 = vmatpush1.bf16.msra.mxu0 %v3684
    %3746 = vmatprep.subr.bf16.mxu0 %v3689
    %3747 = vmatpush1.bf16.msra.mxu0 %v3688
    %3748 = vmatprep.subr.bf16.mxu0 %v3693
    %3749 = vmatpush1.bf16.msra.mxu0 %v3692
    %3750 = vmatprep.subr.bf16.mxu0 %v3697
    %3751 = vmatpush1.bf16.msra.mxu0 %v3696
    %3752 = vmatprep.subr.bf16.mxu0 %v3701
    %3753 = vmatpush1.bf16.msra.mxu0 %v3700
    %3754 = vmatprep.subr.bf16.mxu0 %v3705
    %3755 = vmatpush1.bf16.msra.mxu0 %v3704
    %3756 = vmatprep.subr.bf16.mxu0 0
    %3757 = vmatpush1.bf16.msra.mxu0 0
    %3758 = vmatprep.subr.bf16.mxu0 0
    %3759 = vmatpush1.bf16.msra.mxu0 0
    %3760 = vmatprep.subr.bf16.mxu0 0
    %3761 = vmatpush1.bf16.msra.mxu0 0
    %3762 = vmatprep.subr.bf16.mxu0 0
    %3763 = vmatpush1.bf16.msra.mxu0 0
    %3764 = vmatprep.subr.bf16.mxu0 0
    %3765 = vmatpush1.bf16.msra.mxu0 0
    %3766 = vmatprep.subr.bf16.mxu0 0
    %3767 = vmatpush1.bf16.msra.mxu0 0
    %3768 = vmatprep.subr.bf16.mxu0 0
    %3769 = vmatpush1.bf16.msra.mxu0 0
    %3770 = vmatprep.subr.bf16.mxu0 0
    %3771 = vmatpush1.bf16.msra.mxu0 0
    %3772 = vmatprep.mubr.bf16.mxu0 0
    %3773 = vmatmul.mubr.bf16.gmra.mrb[0].mxu0 %v3384
    %v3774 = vpop.f32.mrb[0].mxu0
    %v3775 = vadd.f32 0.0, %v3774
    %v3776 = vpop.f32.mrb[0].mxu0
    %v3777 = vadd.f32 0.0, %v3776
    %v3778 = vpop.f32.mrb[0].mxu0
    %v3779 = vpop.f32.mrb[0].mxu0
    %3780 = vdwg.mxu0
    %3781 = vmatprep.subr.bf16.mxu0 %v3679
    %3782 = vmatpush1.bf16.msra.mxu0 %v3678
    %3783 = vmatprep.subr.bf16.mxu0 %v3683
    %3784 = vmatpush1.bf16.msra.mxu0 %v3682
    %3785 = vmatprep.subr.bf16.mxu0 %v3687
    %3786 = vmatpush1.bf16.msra.mxu0 %v3686
    %3787 = vmatprep.subr.bf16.mxu0 %v3691
    %3788 = vmatpush1.bf16.msra.mxu0 %v3690
    %3789 = vmatprep.subr.bf16.mxu0 %v3695
    %3790 = vmatpush1.bf16.msra.mxu0 %v3694
    %3791 = vmatprep.subr.bf16.mxu0 %v3699
    %3792 = vmatpush1.bf16.msra.mxu0 %v3698
    %3793 = vmatprep.subr.bf16.mxu0 %v3703
    %3794 = vmatpush1.bf16.msra.mxu0 %v3702
    %3795 = vmatprep.subr.bf16.mxu0 %v3707
    %3796 = vmatpush1.bf16.msra.mxu0 %v3706
    %3797 = vmatprep.subr.bf16.mxu0 0
    %3798 = vmatpush1.bf16.msra.mxu0 0
    %3799 = vmatprep.subr.bf16.mxu0 0
    %3800 = vmatpush1.bf16.msra.mxu0 0
    %3801 = vmatprep.subr.bf16.mxu0 0
    %3802 = vmatpush1.bf16.msra.mxu0 0
    %3803 = vmatprep.subr.bf16.mxu0 0
    %3804 = vmatpush1.bf16.msra.mxu0 0
    %3805 = vmatprep.subr.bf16.mxu0 0
    %3806 = vmatpush1.bf16.msra.mxu0 0
    %3807 = vmatprep.subr.bf16.mxu0 0
    %3808 = vmatpush1.bf16.msra.mxu0 0
    %3809 = vmatprep.subr.bf16.mxu0 0
    %3810 = vmatpush1.bf16.msra.mxu0 0
    %3811 = vmatprep.subr.bf16.mxu0 0
    %3812 = vmatpush1.bf16.msra.mxu0 0
    %3813 = vmatprep.mubr.bf16.mxu0 0
    %3814 = vmatmul.mubr.bf16.gmra.mrb[0].mxu0 %v3384
    %v3815 = vpop.f32.mrb[0].mxu0
    %v3816 = vadd.f32 0.0, %v3815
    %v3817 = vpop.f32.mrb[0].mxu0
    %v3818 = vadd.f32 0.0, %v3817
    %v3819 = vpop.f32.mrb[0].mxu0
    %v3820 = vpop.f32.mrb[0].mxu0
    %3821 = vdwg.mxu0
    %v3822 = vadd.f32 %v276, %v3775
    %v3823 = vadd.f32 %v278, %v3777
    %v3824 = vadd.f32 %v317, %v3816
    %v3825 = vadd.f32 %v319, %v3818
    %v3826 = vtanh.pop %v3822
    %v3827 = vtanh.pop %v3823
    %v3828 = vtanh.pop %v3824
    %v3829 = vtanh.pop %v3825
    %v3830 = vmul.f32 %v3826, 0.5
    %v3831 = vadd.f32 %v3830, 0.5
    %v3832 = vmul.f32 %v3827, 0.5
    %v3833 = vadd.f32 %v3832, 0.5
    %v3834 = vmul.f32 %v3829, 0.5
    %v3835 = vadd.f32 %v3834, 0.5
    %v3836 = vmul.f32 %v3833, %v3381
    %v3837 = vmul.f32 %v3831, %v3828
    %v3838 = vadd.f32 %v3836, %v3837
    %v3839 = vtanh.pop %v3838
    %v3840 = vmul.f32 %v3835, %v3839
    %v3841 = vpack.c.bf16 %v3840, %v3840
    %v3842 = vpack.c.bf16 %v3546, %v3546
    %v3843 = vld [vmem:[#allocation2] sm:$0xff]
    %v3844 = vld [vmem:[#allocation2 + $0x8] sm:$0xff]
    %v3845 = vld [vmem:[#allocation2 + $0x10] sm:$0xff]
    %v3846 = vld [vmem:[#allocation2 + $0x18] sm:$0xff]
    %v3847 = vld [vmem:[#allocation2 + $0x20] sm:$0xff]
    %v3848 = vld [vmem:[#allocation2 + $0x28] sm:$0xff]
    %v3849 = vld [vmem:[#allocation2 + $0x30] sm:$0xff]
    %v3850 = vld [vmem:[#allocation2 + $0x38] sm:$0xff]
    %v3851 = vld [vmem:[#allocation2 + $0x40] sm:$0xff]
    %v3852 = vld [vmem:[#allocation2 + $0x48] sm:$0xff]
    %v3853 = vld [vmem:[#allocation2 + $0x50] sm:$0xff]
    %v3854 = vld [vmem:[#allocation2 + $0x58] sm:$0xff]
    %v3855 = vld [vmem:[#allocation2 + $0x60] sm:$0xff]
    %v3856 = vld [vmem:[#allocation2 + $0x68] sm:$0xff]
    %v3857 = vld [vmem:[#allocation2 + $0x70] sm:$0xff]
    %v3858 = vld [vmem:[#allocation2 + $0x78] sm:$0xff]
    %v3859 = vld [vmem:[#allocation2 + $0x80] sm:$0xff]
    %v3860 = vld [vmem:[#allocation2 + $0x88] sm:$0xff]
    %v3861 = vld [vmem:[#allocation2 + $0x90] sm:$0xff]
    %v3862 = vld [vmem:[#allocation2 + $0x98] sm:$0xff]
    %v3863 = vld [vmem:[#allocation2 + $0xa0] sm:$0xff]
    %v3864 = vld [vmem:[#allocation2 + $0xa8] sm:$0xff]
    %v3865 = vld [vmem:[#allocation2 + $0xb0] sm:$0xff]
    %v3866 = vld [vmem:[#allocation2 + $0xb8] sm:$0xff]
    %v3867 = vld [vmem:[#allocation2 + $0xc0] sm:$0xff]
    %v3868 = vld [vmem:[#allocation2 + $0xc8] sm:$0xff]
    %v3869 = vld [vmem:[#allocation2 + $0xd0] sm:$0xff]
    %v3870 = vld [vmem:[#allocation2 + $0xd8] sm:$0xff]
    %v3871 = vld [vmem:[#allocation2 + $0xe0] sm:$0xff]
    %v3872 = vld [vmem:[#allocation2 + $0xe8] sm:$0xff]
    %v3873 = vld [vmem:[#allocation2 + $0xf0] sm:$0xff]
    %v3874 = vld [vmem:[#allocation2 + $0xf8] sm:$0xff]
    %v3875 = vld [vmem:[#allocation2 + $0x100] sm:$0xff]
    %v3876 = vld [vmem:[#allocation2 + $0x108] sm:$0xff]
    %v3877 = vld [vmem:[#allocation2 + $0x110] sm:$0xff]
    %v3878 = vld [vmem:[#allocation2 + $0x118] sm:$0xff]
    %v3879 = vld [vmem:[#allocation2 + $0x120] sm:$0xff]
    %v3880 = vld [vmem:[#allocation2 + $0x128] sm:$0xff]
    %v3881 = vld [vmem:[#allocation2 + $0x130] sm:$0xff]
    %v3882 = vld [vmem:[#allocation2 + $0x138] sm:$0xff]
    %v3883 = vld [vmem:[#allocation2 + $0x140] sm:$0xff]
    %v3884 = vld [vmem:[#allocation2 + $0x148] sm:$0xff]
    %v3885 = vld [vmem:[#allocation2 + $0x150] sm:$0xff]
    %v3886 = vld [vmem:[#allocation2 + $0x158] sm:$0xff]
    %v3887 = vld [vmem:[#allocation2 + $0x160] sm:$0xff]
    %v3888 = vld [vmem:[#allocation2 + $0x168] sm:$0xff]
    %v3889 = vld [vmem:[#allocation2 + $0x170] sm:$0xff]
    %v3890 = vld [vmem:[#allocation2 + $0x178] sm:$0xff]
    %v3891 = vld [vmem:[#allocation2 + $0x180] sm:$0xff]
    %v3892 = vld [vmem:[#allocation2 + $0x188] sm:$0xff]
    %v3893 = vld [vmem:[#allocation2 + $0x190] sm:$0xff]
    %v3894 = vld [vmem:[#allocation2 + $0x198] sm:$0xff]
    %v3895 = vld [vmem:[#allocation2 + $0x1a0] sm:$0xff]
    %v3896 = vld [vmem:[#allocation2 + $0x1a8] sm:$0xff]
    %v3897 = vld [vmem:[#allocation2 + $0x1b0] sm:$0xff]
    %v3898 = vld [vmem:[#allocation2 + $0x1b8] sm:$0xff]
    %v3899 = vld [vmem:[#allocation2 + $0x1c0] sm:$0xff]
    %v3900 = vld [vmem:[#allocation2 + $0x1c8] sm:$0xff]
    %v3901 = vld [vmem:[#allocation2 + $0x1d0] sm:$0xff]
    %v3902 = vld [vmem:[#allocation2 + $0x1d8] sm:$0xff]
    %v3903 = vld [vmem:[#allocation2 + $0x1e0] sm:$0xff]
    %v3904 = vld [vmem:[#allocation2 + $0x1e8] sm:$0xff]
    %v3905 = vld [vmem:[#allocation2 + $0x1f0] sm:$0xff]
    %v3906 = vld [vmem:[#allocation2 + $0x1f8] sm:$0xff]
    %3907 = vmatprep.subr.bf16.mxu0 %v3844
    %3908 = vmatpush1.bf16.msra.mxu0 %v3843
    %3909 = vmatprep.subr.bf16.mxu0 %v3848
    %3910 = vmatpush1.bf16.msra.mxu0 %v3847
    %3911 = vmatprep.subr.bf16.mxu0 %v3852
    %3912 = vmatpush1.bf16.msra.mxu0 %v3851
    %3913 = vmatprep.subr.bf16.mxu0 %v3856
    %3914 = vmatpush1.bf16.msra.mxu0 %v3855
    %3915 = vmatprep.subr.bf16.mxu0 %v3860
    %3916 = vmatpush1.bf16.msra.mxu0 %v3859
    %3917 = vmatprep.subr.bf16.mxu0 %v3864
    %3918 = vmatpush1.bf16.msra.mxu0 %v3863
    %3919 = vmatprep.subr.bf16.mxu0 %v3868
    %3920 = vmatpush1.bf16.msra.mxu0 %v3867
    %3921 = vmatprep.subr.bf16.mxu0 %v3872
    %3922 = vmatpush1.bf16.msra.mxu0 %v3871
    %3923 = vmatprep.subr.bf16.mxu0 %v3876
    %3924 = vmatpush1.bf16.msra.mxu0 %v3875
    %3925 = vmatprep.subr.bf16.mxu0 %v3880
    %3926 = vmatpush1.bf16.msra.mxu0 %v3879
    %3927 = vmatprep.subr.bf16.mxu0 %v3884
    %3928 = vmatpush1.bf16.msra.mxu0 %v3883
    %3929 = vmatprep.subr.bf16.mxu0 %v3888
    %3930 = vmatpush1.bf16.msra.mxu0 %v3887
    %3931 = vmatprep.subr.bf16.mxu0 %v3892
    %3932 = vmatpush1.bf16.msra.mxu0 %v3891
    %3933 = vmatprep.subr.bf16.mxu0 %v3896
    %3934 = vmatpush1.bf16.msra.mxu0 %v3895
    %3935 = vmatprep.subr.bf16.mxu0 %v3900
    %3936 = vmatpush1.bf16.msra.mxu0 %v3899
    %3937 = vmatprep.subr.bf16.mxu0 %v3904
    %3938 = vmatpush1.bf16.msra.mxu0 %v3903
    %3939 = vmatprep.mubr.bf16.mxu0 %v3842
    %3940 = vmatmul.mubr.bf16.gmra.mrb[0].mxu0 %v3841
    %v3941 = vpop.f32.mrb[0].mxu0
    %v3942 = vadd.f32 %v691, %v3941
    %v3943 = vpop.f32.mrb[0].mxu0
    %v3944 = vadd.f32 %v695, %v3943
    %v3945 = vpop.f32.mrb[0].mxu0
    %v3946 = vpop.f32.mrb[0].mxu0
    %3947 = vdwg.mxu0
    %3948 = vmatprep.subr.bf16.mxu0 %v3846
    %3949 = vmatpush1.bf16.msra.mxu0 %v3845
    %3950 = vmatprep.subr.bf16.mxu0 %v3850
    %3951 = vmatpush1.bf16.msra.mxu0 %v3849
    %3952 = vmatprep.subr.bf16.mxu0 %v3854
    %3953 = vmatpush1.bf16.msra.mxu0 %v3853
    %3954 = vmatprep.subr.bf16.mxu0 %v3858
    %3955 = vmatpush1.bf16.msra.mxu0 %v3857
    %3956 = vmatprep.subr.bf16.mxu0 %v3862
    %3957 = vmatpush1.bf16.msra.mxu0 %v3861
    %3958 = vmatprep.subr.bf16.mxu0 %v3866
    %3959 = vmatpush1.bf16.msra.mxu0 %v3865
    %3960 = vmatprep.subr.bf16.mxu0 %v3870
    %3961 = vmatpush1.bf16.msra.mxu0 %v3869
    %3962 = vmatprep.subr.bf16.mxu0 %v3874
    %3963 = vmatpush1.bf16.msra.mxu0 %v3873
    %3964 = vmatprep.subr.bf16.mxu0 %v3878
    %3965 = vmatpush1.bf16.msra.mxu0 %v3877
    %3966 = vmatprep.subr.bf16.mxu0 %v3882
    %3967 = vmatpush1.bf16.msra.mxu0 %v3881
    %3968 = vmatprep.subr.bf16.mxu0 %v3886
    %3969 = vmatpush1.bf16.msra.mxu0 %v3885
    %3970 = vmatprep.subr.bf16.mxu0 %v3890
    %3971 = vmatpush1.bf16.msra.mxu0 %v3889
    %3972 = vmatprep.subr.bf16.mxu0 %v3894
    %3973 = vmatpush1.bf16.msra.mxu0 %v3893
    %3974 = vmatprep.subr.bf16.mxu0 %v3898
    %3975 = vmatpush1.bf16.msra.mxu0 %v3897
    %3976 = vmatprep.subr.bf16.mxu0 %v3902
    %3977 = vmatpush1.bf16.msra.mxu0 %v3901
    %3978 = vmatprep.subr.bf16.mxu0 %v3906
    %3979 = vmatpush1.bf16.msra.mxu0 %v3905
    %3980 = vmatprep.mubr.bf16.mxu0 %v3842
    %3981 = vmatmul.mubr.bf16.gmra.mrb[0].mxu0 %v3841
    %v3982 = vpop.f32.mrb[0].mxu0
    %v3983 = vadd.f32 %v699, %v3982
    %v3984 = vpop.f32.mrb[0].mxu0
    %v3985 = vadd.f32 %v703, %v3984
    %v3986 = vpop.f32.mrb[0].mxu0
    %v3987 = vpop.f32.mrb[0].mxu0
    %3988 = vdwg.mxu0
    %v3989 = vtanh.pop %v3942
    %v3990 = vtanh.pop %v3944
    %v3991 = vtanh.pop %v3983
    %v3992 = vtanh.pop %v3985
    %v3993 = vmul.f32 %v3989, 0.5
    %v3994 = vadd.f32 %v3993, 0.5
    %v3995 = vmul.f32 %v3990, 0.5
    %v3996 = vadd.f32 %v3995, 0.5
    %v3997 = vmul.f32 %v3992, 0.5
    %v3998 = vadd.f32 %v3997, 0.5
    %v3999 = vmul.f32 %v3996, %v3544
    %v4000 = vmul.f32 %v3994, %v3991
    %v4001 = vadd.f32 %v3999, %v4000
    %v4002 = vtanh.pop %v4001
    %v4003 = vmul.f32 %v3998, %v4002
    %4004 = vst [vmem:[#allocation3 + $0x7] sm:$0x1] %v4003
    %v4005 = vld [vmem:[#allocation3] sm:$0xff]
    %v4006 = vpack.c.bf16 %v4005, %v4005
    %v4007 = vld [vmem:[#allocation11] sm:$0xf]
    %v4008 = vld [vmem:[#allocation11 + $0x4] sm:$0xf]
    %v4009 = vld [vmem:[#allocation11 + $0x8] sm:$0xf]
    %v4010 = vld [vmem:[#allocation11 + $0xc] sm:$0xf]
    %v4011 = vld [vmem:[#allocation11 + $0x10] sm:$0xf]
    %v4012 = vld [vmem:[#allocation11 + $0x14] sm:$0xf]
    %v4013 = vld [vmem:[#allocation11 + $0x18] sm:$0xf]
    %v4014 = vld [vmem:[#allocation11 + $0x1c] sm:$0xf]
    %v4015 = vld [vmem:[#allocation11 + $0x20] sm:$0xf]
    %v4016 = vld [vmem:[#allocation11 + $0x24] sm:$0xf]
    %v4017 = vld [vmem:[#allocation11 + $0x28] sm:$0xf]
    %v4018 = vld [vmem:[#allocation11 + $0x2c] sm:$0xf]
    %v4019 = vld [vmem:[#allocation11 + $0x30] sm:$0xf]
    %v4020 = vld [vmem:[#allocation11 + $0x34] sm:$0xf]
    %v4021 = vld [vmem:[#allocation11 + $0x38] sm:$0xf]
    %v4022 = vld [vmem:[#allocation11 + $0x3c] sm:$0xf]
    %v4023 = vld [vmem:[%s7] sm:$0x1]
    %v4025 = vlaneseq
    %v4026 = vshrl.u32 %v4025, 7
    %v4027 = vsub.s32 0, %v4026
    %v4028 = vrot.slane %v4023, %v4027
    %v4046 = vunpack.c.l.b16 %v4007
    %v4047 = vunpack.c.l.b16 %v4008
    %v4048 = vunpack.c.l.b16 %v4009
    %v4049 = vunpack.c.l.b16 %v4010
    %v4050 = vunpack.c.l.b16 %v4011
    %v4051 = vunpack.c.l.b16 %v4012
    %v4052 = vunpack.c.l.b16 %v4013
    %v4053 = vunpack.c.l.b16 %v4014
    %v4054 = vunpack.c.l.b16 %v4015
    %v4055 = vunpack.c.l.b16 %v4016
    %v4056 = vunpack.c.l.b16 %v4017
    %v4057 = vunpack.c.l.b16 %v4018
    %v4058 = vunpack.c.l.b16 %v4019
    %v4059 = vunpack.c.l.b16 %v4020
    %v4060 = vunpack.c.l.b16 %v4021
    %v4061 = vunpack.c.l.b16 %v4022
    %v4062 = vpack.c.b16 %v4047, %v4046
    %v4063 = vpack.c.b16 %v4049, %v4048
    %v4064 = vpack.c.b16 %v4051, %v4050
    %v4065 = vpack.c.b16 %v4053, %v4052
    %v4066 = vpack.c.b16 %v4055, %v4054
    %v4067 = vpack.c.b16 %v4057, %v4056
    %v4068 = vpack.c.b16 %v4059, %v4058
    %v4069 = vpack.c.b16 %v4061, %v4060
    %4078 = vmatprep.subr.bf16.mxu0 0
    %4079 = vmatpush1.bf16.msra.mxu0 %v4062
    %4080 = vmatprep.subr.bf16.mxu0 0
    %4081 = vmatpush1.bf16.msra.mxu0 %v4063
    %4082 = vmatprep.subr.bf16.mxu0 0
    %4083 = vmatpush1.bf16.msra.mxu0 %v4064
    %4084 = vmatprep.subr.bf16.mxu0 0
    %4085 = vmatpush1.bf16.msra.mxu0 %v4065
    %4086 = vmatprep.subr.bf16.mxu0 0
    %4087 = vmatpush1.bf16.msra.mxu0 %v4066
    %4088 = vmatprep.subr.bf16.mxu0 0
    %4089 = vmatpush1.bf16.msra.mxu0 %v4067
    %4090 = vmatprep.subr.bf16.mxu0 0
    %4091 = vmatpush1.bf16.msra.mxu0 %v4068
    %4092 = vmatprep.subr.bf16.mxu0 0
    %4093 = vmatpush1.bf16.msra.mxu0 %v4069
    %4094 = vmatprep.subr.bf16.mxu0 0
    %4095 = vmatpush1.bf16.msra.mxu0 0
    %4096 = vmatprep.subr.bf16.mxu0 0
    %4097 = vmatpush1.bf16.msra.mxu0 0
    %4098 = vmatprep.subr.bf16.mxu0 0
    %4099 = vmatpush1.bf16.msra.mxu0 0
    %4100 = vmatprep.subr.bf16.mxu0 0
    %4101 = vmatpush1.bf16.msra.mxu0 0
    %4102 = vmatprep.subr.bf16.mxu0 0
    %4103 = vmatpush1.bf16.msra.mxu0 0
    %4104 = vmatprep.subr.bf16.mxu0 0
    %4105 = vmatpush1.bf16.msra.mxu0 0
    %4106 = vmatprep.subr.bf16.mxu0 0
    %4107 = vmatpush1.bf16.msra.mxu0 0
    %4108 = vmatprep.subr.bf16.mxu0 0
    %4109 = vmatpush1.bf16.msra.mxu0 0
    %4110 = vmatprep.mubr.bf16.mxu0 0
    %4111 = vmatmul.mubr.bf16.gmra.mrb[0].mxu0 %v4006
    %v4112 = vpop.f32.mrb[0].mxu0
    %v4113 = vadd.f32 %v4028, %v4112
    %v4114 = vpop.f32.mrb[0].mxu0
    %v4115 = vpop.f32.mrb[0].mxu0
    %v4116 = vpop.f32.mrb[0].mxu0
    %4117 = vdwg.mxu0
    %4118 = vst [vmem:[#allocation13] sm:$0xff] %v4113
    // Predicated region
    $region46: #{tpu_custom_call.1} parent=1 // pred_check
      _
    $region47: #{tpu_custom_call.1} parent=1 // pred_check_branch
      %4120 = sbr.rel (0) target = $region49
    $region48: #{tpu_custom_call.1} parent=1 // pred_region
      %s4122 = ssub.s32 128, 128
      %4123 = vsyncadd [#allocation7], %s4122
      %s4125 = sshll.u32 [#allocation13], 4
      %s4126 = int_to_ptr.vmem [resolvable:$true] %s4125
      %4128 = dma.vmem_to_hbm [thread:$0]  %s4126, 128, %s8, [#allocation7]
    $region49: #{tpu_custom_call.1} parent=1 // pred_fallthru
      _
    // Predicated region
    $region50: #{tpu_custom_call.1} parent=1 // pred_check
      _
    $region51: #{tpu_custom_call.1} parent=1 // pred_check_branch
      %4130 = sbr.rel (0) target = $region53
    $region52: #{tpu_custom_call.1} parent=1 // pred_region
      %4131 = dma.done [#allocation7], 128
    $region53: #{tpu_custom_call.1} parent=1 // pred_fallthru
      _
    %4132 = vsyncpa [#allocation6], 1
    %4133 = vsyncpa [#allocation9], 1
    %4134 = vsyncpa [#allocation12], 1
    %4135 = vsyncpa [#allocation7], 1
  %4136 = vsyncmov [#allocation4]
  %s4137 = vpop.sfrf %4136
  %p4138 = scmp.eq.s32.totalorder %s4137, 0
  %p4139 = pneg %p4138
  %4141 = shalt.err (%p4139)

</llo_original>
